<compile_context>
chip_gen: v6e
topology: v6e:2x2x1
jax: 0.10.0
libtpu: 0.0.40
codegen_flags: <defaults>
</compile_context>

<pallas_src>
import jax
import jax.numpy as jnp
import numpy as np
from jax.experimental import pallas as pl
from jax.experimental.pallas import tpu as pltpu

MASK_VALUE = -1e30


# ---------------------------------------------------------------------------
# Fused kernel: start_JSemb -> end_JSemb -> start/end Conv1D heads
# ---------------------------------------------------------------------------
def _cmp_fused_kernel(ff_ref, rf_ref, colm_ref, mrow_ref,
                      ws_ref, bias_ref, wea_ref, web_ref,
                      w1s_ref, w1e_ref, w2_ref, b2_ref, out_ref):
    f32, bf16 = jnp.float32, jnp.bfloat16
    H = rf_ref.shape[1]

    ff = ff_ref[...]                       # (M, 4H) bf16, M = Bb*T flattened rows
    rf = rf_ref[...]                       # (M, H)  bf16

    # Hoisted column masks (precomputed on host -> zero VPU cost here).
    mcol = colm_ref[:, 0:1]                # video mask              (M, 1) f32
    nf = colm_ref[:, 1:2]                  # "t != 0   in segment"   (M, 1) f32
    nl = colm_ref[:, 2:3]                  # "t != T-1 in segment"   (M, 1) f32
    neg = (1.0 - mrow_ref[...]) * MASK_VALUE   # logits mask, lane-dense (1, M)

    bs, be = bias_ref[0:1, :], bias_ref[1:2, :]     # packed (1, H) biases
    b1s, b1e = bias_ref[2:3, :], bias_ref[3:4, :]

    # ---- start_JSemb: Linear(4H -> H) -> ReLU -> zero masked rows ----------
    sf = jnp.dot(ff, ws_ref[...], preferred_element_type=f32) + bs
    sf = jnp.maximum(sf, 0.0) * mcol                                   # (M, H) f32
    sf_b = sf.astype(bf16)

    # ---- conditional_end_JSemb on cat([res, start], -1): split-weight form -
    ef = (jnp.dot(rf, wea_ref[...], preferred_element_type=f32)
          + jnp.dot(sf_b, web_ref[...], preferred_element_type=f32) + be)
    ef = jnp.maximum(ef, 0.0) * mcol                                   # (M, H) f32
    ef_b = ef.astype(bf16)

    def conv_head(x_b, w1_ref, b1):
        # Conv1d(H->H, k=3, pad=1) in wide-N form: one (M,H)@(H,3H) matmul,
        # then sublane-shift the tap results and mask per-video boundaries.
        y = jnp.dot(x_b, w1_ref[...], preferred_element_type=f32)     # (M, 3H)
        m_rows = y.shape[0]
        y_prev = nf * pltpu.roll(y[:, 0:H], shift=1, axis=0)              # x[t-1] tap
        y_next = nl * pltpu.roll(y[:, 2 * H:3 * H], shift=m_rows - 1, axis=0)  # x[t+1]
        h = jnp.maximum(y_prev + y[:, H:2 * H] + y_next + b1, 0.0)
        return h.astype(bf16)                                          # (M, H)

    h_s = conv_head(sf_b, w1s_ref, b1s)
    h_e = conv_head(ef_b, w1e_ref, b1e)

    # Conv1d(H->1, k=1) for both heads: contract H so scores land lane-dense.
    dn = (((1,), (1,)), ((), ()))
    s2 = jax.lax.dot_general(w2_ref[...], h_s, dimension_numbers=dn,
                             preferred_element_type=f32)               # (8, M)
    e2 = jax.lax.dot_general(w2_ref[...], h_e, dimension_numbers=dn,
                             preferred_element_type=f32)               # (8, M)
    out_ref[0:1, :] = s2[0:1, :] + b2_ref[0] + neg                     # start row
    out_ref[1:2, :] = e2[1:2, :] + b2_ref[1] + neg                     # end row


# ---------------------------------------------------------------------------
# Wrapper: one fused pallas_call, batch-blocked parallel grid
# ---------------------------------------------------------------------------
def conditional_moment_prediction(params, final_feat, res_feat, vid_mask,
                                  *, batch_block=None):
    B, T, Din = final_feat.shape
    H = params["wea"].shape[0]
    assert Din == 4 * H and res_feat.shape == (B, T, H) and vid_mask.shape == (B, T)
    assert H % 128 == 0, "hidden_dim must be a multiple of the 128-lane width"
    assert T % 8 == 0, "sequence length must be sublane (8) aligned"

    if batch_block is None:
        # Largest divisor of B that still leaves >= 2 grid steps (both of
        # v7x's TensorCores get work); falls back to 1.
        batch_block = 1
        for d in range(1, max(B // 2, 1) + 1):
            if B % d == 0:
                batch_block = d
    Bb = batch_block
    assert B % Bb == 0
    G = B // Bb
    M = Bb * T
    assert (M % 128 == 0) or (G == 1), "lane-partitioned blocks need Bb*T % 128 == 0"

    # Flattened (batch*time, feature) views — contiguous reshapes are free.
    ff = final_feat.astype(jnp.bfloat16).reshape(B * T, 4 * H)
    rf = res_feat.astype(jnp.bfloat16).reshape(B * T, H)
    m = vid_mask.astype(jnp.float32)
    tix = jnp.arange(T, dtype=jnp.int32)
    nf = jnp.broadcast_to((tix != 0).astype(jnp.float32)[None, :], (B, T))
    nl = jnp.broadcast_to((tix != T - 1).astype(jnp.float32)[None, :], (B, T))
    colm = jnp.stack([m, nf, nl], axis=-1).reshape(B * T, 3)   # one column-mask input
    mrow = m.reshape(1, B * T)                                  # lane-dense logits mask

    rows = lambda i: (i, 0)       # row-partitioned per grid step
    lanes = lambda i: (0, i)      # lane-partitioned per grid step
    whole = lambda i: (0, 0)      # weights (constant block)

    out = pl.pallas_call(
        _cmp_fused_kernel,
        out_shape=jax.ShapeDtypeStruct((2, B * T), jnp.float32),
        grid=(G,),
        in_specs=[
            pl.BlockSpec((M, 4 * H), rows),      # final_feat
            pl.BlockSpec((M, H), rows),          # res_feat
            pl.BlockSpec((M, 3), rows),          # [vid_mask | not_first | not_last]
            pl.BlockSpec((1, M), lanes),         # vid_mask, lane-dense
            pl.BlockSpec((4 * H, H), whole),     # ws: start_JSemb Linear(4H->H)
            pl.BlockSpec((8, H), whole),         # packed biases bs/be/b1s/b1e
            pl.BlockSpec((H, H), whole),         # wea (res_feat half of end proj)
            pl.BlockSpec((H, H), whole),         # web (start_features half)
            pl.BlockSpec((H, 3 * H), whole),     # start conv k=3 taps, wide-N
            pl.BlockSpec((H, 3 * H), whole),     # end conv k=3 taps, wide-N
            pl.BlockSpec((8, H), whole),         # w2: row0=start, row1=end
            pl.BlockSpec(memory_space=pltpu.MemorySpace.SMEM),  # b2 scalars
        ],
        out_specs=pl.BlockSpec((2, M), lanes),
        compiler_params=pltpu.CompilerParams(
            dimension_semantics=("parallel",),
        ),
    )(ff, rf, colm, mrow,
      params["ws"], params["biases"], params["wea"], params["web"],
      params["w1s"], params["w1e"], params["w2_both"], params["b2_both"])

    out = out.reshape(2, B, T)
    return out[0], out[1]


# ---------------------------------------------------------------------------
# Parameters (deterministic, synthetic; stored kernel-ready)
# ---------------------------------------------------------------------------
def init_params(key, hidden_dim):
    H = hidden_dim
    ks = jax.random.split(key, 12)

    def w(k, shape, scale=0.1):
        return scale * jax.random.normal(k, shape, dtype=jnp.float32)

    bf = lambda a: a.astype(jnp.bfloat16)

    # Four (H,) biases packed in one (8,H) f32 tile (rows 4..7 = padding):
    # row0 start_JSemb, row1 end_JSemb, row2 start-conv k=3, row3 end-conv k=3.
    biases = jnp.zeros((8, H), jnp.float32)
    for r in range(4):
        biases = biases.at[r].set(w(ks[r], (H,)))

    # Conv1d(H->1,k=1) weights for both heads packed in one (8,H) tile
    # (row0 start, row1 end) so each score pops out lane-dense from one pass.
    w2_both = jnp.zeros((8, H), jnp.float32)
    w2_both = w2_both.at[0].set(w(ks[4], (H,)))
    w2_both = w2_both.at[1].set(w(ks[5], (H,)))

    # Conv1d(H->H,k=3) taps in wide-N layout (H, 3H): columns [kH:(k+1)H] hold
    # tap k (k=0 <-> t-1).  From a torch Conv1d weight W(out,in,3) this is
    # concatenate([W[:,:,0].T, W[:,:,1].T, W[:,:,2].T], axis=1).
    return {
        "ws": bf(w(ks[6], (4 * H, H))),
        "wea": bf(w(ks[7], (H, H))),
        "web": bf(w(ks[8], (H, H))),
        "w1s": bf(w(ks[9], (H, 3 * H))),
        "w1e": bf(w(ks[10], (H, 3 * H))),
        "w2_both": bf(w2_both),
        "biases": biases,
        "b2_both": w(ks[11], (2,)),            # k=1 conv scalar biases (SMEM)
    }


# ---------------------------------------------------------------------------
# Pure-JAX reference (same quantization points: bf16 MXU operands, f32 acc)
# ---------------------------------------------------------------------------
def forward_ref(params, final_feat, res_feat, vid_mask):
    f32, bf16 = jnp.float32, jnp.bfloat16
    H = params["wea"].shape[0]
    bias = params["biases"]
    bs, be, b1s, b1e = bias[0], bias[1], bias[2], bias[3]
    m3 = vid_mask[:, :, None].astype(f32)

    ff = final_feat.astype(bf16)
    rf = res_feat.astype(bf16)

    sf = jnp.einsum("btd,dh->bth", ff, params["ws"],
                    preferred_element_type=f32) + bs
    sf = jnp.maximum(sf, 0.0) * m3
    sf_b = sf.astype(bf16)

    ef = (jnp.einsum("btd,dh->bth", rf, params["wea"], preferred_element_type=f32)
          + jnp.einsum("btd,dh->bth", sf_b, params["web"], preferred_element_type=f32)
          + be)
    ef = jnp.maximum(ef, 0.0) * m3
    ef_b = ef.astype(bf16)

    def head(x_b, w1_wide, b1, w2_row, b2):
        # Conv1d(H->H, k=3, pad=1): zero-padded temporal shifts of the taps.
        y = jnp.einsum("btc,cn->btn", x_b, w1_wide, preferred_element_type=f32)
        y0, y1, y2 = y[..., 0:H], y[..., H:2 * H], y[..., 2 * H:3 * H]
        y_prev = jnp.pad(y0[:, :-1, :], ((0, 0), (1, 0), (0, 0)))   # x[t-1] tap
        y_next = jnp.pad(y2[:, 1:, :], ((0, 0), (0, 1), (0, 0)))    # x[t+1] tap
        h = jnp.maximum(y_prev + y1 + y_next + b1, 0.0)
        s = jnp.einsum("bth,h->bt", h.astype(bf16), w2_row,
                       preferred_element_type=f32) + b2
        return s + (1.0 - vid_mask) * MASK_VALUE

    sd = head(sf_b, params["w1s"], b1s, params["w2_both"][0], params["b2_both"][0])
    ed = head(ef_b, params["w1e"], b1e, params["w2_both"][1], params["b2_both"][1])
    return sd, ed


if __name__ == "__main__":
    H = 128            # hidden_dim: fills the 128-lane channel axis
    B, T = 4, 128      # batch, video sequence length (Bb=2 rows per grid step)

    key = jax.random.PRNGKey(0)
    k1, k2, kp = jax.random.split(key, 3)
    final_feat = jax.random.normal(k1, (B, T, 4 * H), dtype=jnp.float32)
    res_feat = jax.random.normal(k2, (B, T, H), dtype=jnp.float32)
    valid_lens = jnp.array([T, T - 24, T - 8, 40])
    vid_mask = (jnp.arange(T)[None, :] < valid_lens[:, None]).astype(jnp.float32)

    params = init_params(kp, H)

    start_dist, end_dist = jax.block_until_ready(
        conditional_moment_prediction(params, final_feat, res_feat, vid_mask))

    sd_ref, ed_ref = forward_ref(params, final_feat, res_feat, vid_mask)
    valid = np.asarray(vid_mask) > 0
    np.testing.assert_allclose(np.asarray(start_dist)[valid],
                               np.asarray(sd_ref)[valid], rtol=2e-2, atol=2e-2)
    np.testing.assert_allclose(np.asarray(end_dist)[valid],
                               np.asarray(ed_ref)[valid], rtol=2e-2, atol=2e-2)
    assert np.all(np.asarray(start_dist)[~valid] < -1e29)
    assert np.all(np.asarray(end_dist)[~valid] < -1e29)

    print("KERNEL_OK")
</pallas_src>

<mosaic_0001>
module attributes {stable_mosaic.version = 11 : i64} {
  func.func @_cmp_fused_kernel(%arg0: i32, %arg1: memref<256x512xbf16, #tpu.memory_space<vmem>>, %arg2: memref<256x128xbf16, #tpu.memory_space<vmem>>, %arg3: memref<256x3xf32, #tpu.memory_space<vmem>>, %arg4: memref<1x256xf32, #tpu.memory_space<vmem>>, %arg5: memref<512x128xbf16, #tpu.memory_space<vmem>>, %arg6: memref<8x128xf32, #tpu.memory_space<vmem>>, %arg7: memref<128x128xbf16, #tpu.memory_space<vmem>>, %arg8: memref<128x128xbf16, #tpu.memory_space<vmem>>, %arg9: memref<128x384xbf16, #tpu.memory_space<vmem>>, %arg10: memref<128x384xbf16, #tpu.memory_space<vmem>>, %arg11: memref<8x128xbf16, #tpu.memory_space<vmem>>, %arg12: memref<2xf32, #tpu.memory_space<smem>>, %arg13: memref<2x256xf32, #tpu.memory_space<vmem>>) attributes {dimension_semantics = [#tpu.dimension_semantics<parallel>], iteration_bounds = array<i64: 2>, scalar_prefetch = 0 : i64, scratch_operands = 0 : i64, tpu.core_type = #tpu.core_type<tc>, window_params = [{transform_indices = @transform_0, window_bounds = array<i64: 256, 512>}, {transform_indices = @transform_1, window_bounds = array<i64: 256, 128>}, {transform_indices = @transform_2, window_bounds = array<i64: 256, 3>}, {transform_indices = @transform_3, window_bounds = array<i64: 1, 256>}, {pipeline_mode = #tpu.pipeline_mode<synchronous>, transform_indices = @transform_4, window_bounds = array<i64: 512, 128>}, {pipeline_mode = #tpu.pipeline_mode<synchronous>, transform_indices = @transform_5, window_bounds = array<i64: 8, 128>}, {pipeline_mode = #tpu.pipeline_mode<synchronous>, transform_indices = @transform_6, window_bounds = array<i64: 128, 128>}, {pipeline_mode = #tpu.pipeline_mode<synchronous>, transform_indices = @transform_7, window_bounds = array<i64: 128, 128>}, {pipeline_mode = #tpu.pipeline_mode<synchronous>, transform_indices = @transform_8, window_bounds = array<i64: 128, 384>}, {pipeline_mode = #tpu.pipeline_mode<synchronous>, transform_indices = @transform_9, window_bounds = array<i64: 128, 384>}, {pipeline_mode = #tpu.pipeline_mode<synchronous>, transform_indices = @transform_10, window_bounds = array<i64: 8, 128>}, {transform_indices = @transform_11, window_bounds = array<i64: 2>}, {transform_indices = @transform_12, window_bounds = array<i64: 2, 256>}]} {
    %c0 = arith.constant 0 : index
    %c0_0 = arith.constant 0 : index
    %0 = vector.load %arg1[%c0, %c0_0] : memref<256x512xbf16, #tpu.memory_space<vmem>>, vector<256x512xbf16>
    %c0_1 = arith.constant 0 : index
    %c0_2 = arith.constant 0 : index
    %1 = vector.load %arg2[%c0_1, %c0_2] : memref<256x128xbf16, #tpu.memory_space<vmem>>, vector<256x128xbf16>
    %c0_3 = arith.constant 0 : index
    %c0_4 = arith.constant 0 : index
    %2 = vector.load %arg3[%c0_3, %c0_4] : memref<256x3xf32, #tpu.memory_space<vmem>>, vector<256x1xf32>
    %c0_5 = arith.constant 0 : index
    %c1 = arith.constant 1 : index
    %3 = vector.load %arg3[%c0_5, %c1] : memref<256x3xf32, #tpu.memory_space<vmem>>, vector<256x1xf32>
    %c0_6 = arith.constant 0 : index
    %c2 = arith.constant 2 : index
    %4 = vector.load %arg3[%c0_6, %c2] : memref<256x3xf32, #tpu.memory_space<vmem>>, vector<256x1xf32>
    %c0_7 = arith.constant 0 : index
    %c0_8 = arith.constant 0 : index
    %5 = vector.load %arg4[%c0_7, %c0_8] : memref<1x256xf32, #tpu.memory_space<vmem>>, vector<1x256xf32>
    %cst = arith.constant 1.000000e+00 : f32
    %6 = vector.broadcast %cst : f32 to vector<1x256xf32>
    %7 = arith.subf %6, %5 : vector<1x256xf32>
    %cst_9 = arith.constant -1.000000e+30 : f32
    %8 = vector.broadcast %cst_9 : f32 to vector<1x256xf32>
    %9 = arith.mulf %7, %8 : vector<1x256xf32>
    %c0_10 = arith.constant 0 : index
    %c0_11 = arith.constant 0 : index
    %10 = vector.load %arg6[%c0_10, %c0_11] : memref<8x128xf32, #tpu.memory_space<vmem>>, vector<1x128xf32>
    %c1_12 = arith.constant 1 : index
    %c0_13 = arith.constant 0 : index
    %11 = vector.load %arg6[%c1_12, %c0_13] : memref<8x128xf32, #tpu.memory_space<vmem>>, vector<1x128xf32>
    %c2_14 = arith.constant 2 : index
    %c0_15 = arith.constant 0 : index
    %12 = vector.load %arg6[%c2_14, %c0_15] : memref<8x128xf32, #tpu.memory_space<vmem>>, vector<1x128xf32>
    %c3 = arith.constant 3 : index
    %c0_16 = arith.constant 0 : index
    %13 = vector.load %arg6[%c3, %c0_16] : memref<8x128xf32, #tpu.memory_space<vmem>>, vector<1x128xf32>
    %c0_17 = arith.constant 0 : index
    %c0_18 = arith.constant 0 : index
    %14 = vector.load %arg5[%c0_17, %c0_18] : memref<512x128xbf16, #tpu.memory_space<vmem>>, vector<512x128xbf16>
    %cst_19 = arith.constant dense<0.000000e+00> : vector<256x128xf32>
    %15 = tpu.matmul %0, %14, %cst_19 {dimension_numbers = #tpu.dot_dimension_numbers<[1], [0], [0], [1], [0, 0, 1, 1], [], []>} : vector<256x512xbf16>, vector<512x128xbf16>, vector<256x128xf32> -> vector<256x128xf32>
    %16 = vector.broadcast %10 : vector<1x128xf32> to vector<256x128xf32>
    %17 = arith.addf %15, %16 : vector<256x128xf32>
    %cst_20 = arith.constant 0.000000e+00 : f32
    %18 = vector.broadcast %cst_20 : f32 to vector<256x128xf32>
    %19 = arith.maximumf %17, %18 : vector<256x128xf32>
    %20 = vector.broadcast %2 : vector<256x1xf32> to vector<256x128xf32>
    %21 = arith.mulf %19, %20 : vector<256x128xf32>
    %22 = arith.truncf %21 : vector<256x128xf32> to vector<256x128xbf16>
    %c0_21 = arith.constant 0 : index
    %c0_22 = arith.constant 0 : index
    %23 = vector.load %arg7[%c0_21, %c0_22] : memref<128x128xbf16, #tpu.memory_space<vmem>>, vector<128x128xbf16>
    %cst_23 = arith.constant dense<0.000000e+00> : vector<256x128xf32>
    %24 = tpu.matmul %1, %23, %cst_23 {dimension_numbers = #tpu.dot_dimension_numbers<[1], [0], [0], [1], [0, 0, 1, 1], [], []>} : vector<256x128xbf16>, vector<128x128xbf16>, vector<256x128xf32> -> vector<256x128xf32>
    %c0_24 = arith.constant 0 : index
    %c0_25 = arith.constant 0 : index
    %25 = vector.load %arg8[%c0_24, %c0_25] : memref<128x128xbf16, #tpu.memory_space<vmem>>, vector<128x128xbf16>
    %cst_26 = arith.constant dense<0.000000e+00> : vector<256x128xf32>
    %26 = tpu.matmul %22, %25, %cst_26 {dimension_numbers = #tpu.dot_dimension_numbers<[1], [0], [0], [1], [0, 0, 1, 1], [], []>} : vector<256x128xbf16>, vector<128x128xbf16>, vector<256x128xf32> -> vector<256x128xf32>
    %27 = arith.addf %24, %26 : vector<256x128xf32>
    %28 = vector.broadcast %11 : vector<1x128xf32> to vector<256x128xf32>
    %29 = arith.addf %27, %28 : vector<256x128xf32>
    %cst_27 = arith.constant 0.000000e+00 : f32
    %30 = vector.broadcast %cst_27 : f32 to vector<256x128xf32>
    %31 = arith.maximumf %29, %30 : vector<256x128xf32>
    %32 = vector.broadcast %2 : vector<256x1xf32> to vector<256x128xf32>
    %33 = arith.mulf %31, %32 : vector<256x128xf32>
    %34 = arith.truncf %33 : vector<256x128xf32> to vector<256x128xbf16>
    %c0_28 = arith.constant 0 : index
    %c0_29 = arith.constant 0 : index
    %35 = vector.load %arg9[%c0_28, %c0_29] : memref<128x384xbf16, #tpu.memory_space<vmem>>, vector<128x384xbf16>
    %cst_30 = arith.constant dense<0.000000e+00> : vector<256x384xf32>
    %36 = tpu.matmul %22, %35, %cst_30 {dimension_numbers = #tpu.dot_dimension_numbers<[1], [0], [0], [1], [0, 0, 1, 1], [], []>} : vector<256x128xbf16>, vector<128x384xbf16>, vector<256x384xf32> -> vector<256x384xf32>
    %37 = vector.extract_strided_slice %36 {offsets = [0, 0], sizes = [256, 128], strides = [1, 1]} : vector<256x384xf32> to vector<256x128xf32>
    %c1_i32 = arith.constant 1 : i32
    %38 = tpu.dynamic_rotate %37 by %c1_i32 dim 0 : vector<256x128xf32>, i32 -> vector<256x128xf32>
    %39 = vector.broadcast %3 : vector<256x1xf32> to vector<256x128xf32>
    %40 = arith.mulf %39, %38 : vector<256x128xf32>
    %41 = vector.extract_strided_slice %36 {offsets = [0, 256], sizes = [256, 128], strides = [1, 1]} : vector<256x384xf32> to vector<256x128xf32>
    %c255_i32 = arith.constant 255 : i32
    %42 = tpu.dynamic_rotate %41 by %c255_i32 dim 0 : vector<256x128xf32>, i32 -> vector<256x128xf32>
    %43 = vector.broadcast %4 : vector<256x1xf32> to vector<256x128xf32>
    %44 = arith.mulf %43, %42 : vector<256x128xf32>
    %45 = vector.extract_strided_slice %36 {offsets = [0, 128], sizes = [256, 128], strides = [1, 1]} : vector<256x384xf32> to vector<256x128xf32>
    %46 = arith.addf %40, %45 : vector<256x128xf32>
    %47 = arith.addf %46, %44 : vector<256x128xf32>
    %48 = vector.broadcast %12 : vector<1x128xf32> to vector<256x128xf32>
    %49 = arith.addf %47, %48 : vector<256x128xf32>
    %cst_31 = arith.constant 0.000000e+00 : f32
    %50 = vector.broadcast %cst_31 : f32 to vector<256x128xf32>
    %51 = arith.maximumf %49, %50 : vector<256x128xf32>
    %52 = arith.truncf %51 : vector<256x128xf32> to vector<256x128xbf16>
    %c0_32 = arith.constant 0 : index
    %c0_33 = arith.constant 0 : index
    %53 = vector.load %arg10[%c0_32, %c0_33] : memref<128x384xbf16, #tpu.memory_space<vmem>>, vector<128x384xbf16>
    %cst_34 = arith.constant dense<0.000000e+00> : vector<256x384xf32>
    %54 = tpu.matmul %34, %53, %cst_34 {dimension_numbers = #tpu.dot_dimension_numbers<[1], [0], [0], [1], [0, 0, 1, 1], [], []>} : vector<256x128xbf16>, vector<128x384xbf16>, vector<256x384xf32> -> vector<256x384xf32>
    %55 = vector.extract_strided_slice %54 {offsets = [0, 0], sizes = [256, 128], strides = [1, 1]} : vector<256x384xf32> to vector<256x128xf32>
    %c1_i32_35 = arith.constant 1 : i32
    %56 = tpu.dynamic_rotate %55 by %c1_i32_35 dim 0 : vector<256x128xf32>, i32 -> vector<256x128xf32>
    %57 = vector.broadcast %3 : vector<256x1xf32> to vector<256x128xf32>
    %58 = arith.mulf %57, %56 : vector<256x128xf32>
    %59 = vector.extract_strided_slice %54 {offsets = [0, 256], sizes = [256, 128], strides = [1, 1]} : vector<256x384xf32> to vector<256x128xf32>
    %c255_i32_36 = arith.constant 255 : i32
    %60 = tpu.dynamic_rotate %59 by %c255_i32_36 dim 0 : vector<256x128xf32>, i32 -> vector<256x128xf32>
    %61 = vector.broadcast %4 : vector<256x1xf32> to vector<256x128xf32>
    %62 = arith.mulf %61, %60 : vector<256x128xf32>
    %63 = vector.extract_strided_slice %54 {offsets = [0, 128], sizes = [256, 128], strides = [1, 1]} : vector<256x384xf32> to vector<256x128xf32>
    %64 = arith.addf %58, %63 : vector<256x128xf32>
    %65 = arith.addf %64, %62 : vector<256x128xf32>
    %66 = vector.broadcast %13 : vector<1x128xf32> to vector<256x128xf32>
    %67 = arith.addf %65, %66 : vector<256x128xf32>
    %cst_37 = arith.constant 0.000000e+00 : f32
    %68 = vector.broadcast %cst_37 : f32 to vector<256x128xf32>
    %69 = arith.maximumf %67, %68 : vector<256x128xf32>
    %70 = arith.truncf %69 : vector<256x128xf32> to vector<256x128xbf16>
    %c0_38 = arith.constant 0 : index
    %c0_39 = arith.constant 0 : index
    %71 = vector.load %arg11[%c0_38, %c0_39] : memref<8x128xbf16, #tpu.memory_space<vmem>>, vector<8x128xbf16>
    %cst_40 = arith.constant dense<0.000000e+00> : vector<8x256xf32>
    %72 = tpu.matmul %71, %52, %cst_40 {dimension_numbers = #tpu.dot_dimension_numbers<[1], [1], [0], [0], [0, 0, 1, 0], [], []>} : vector<8x128xbf16>, vector<256x128xbf16>, vector<8x256xf32> -> vector<8x256xf32>
    %c0_41 = arith.constant 0 : index
    %c0_42 = arith.constant 0 : index
    %73 = vector.load %arg11[%c0_41, %c0_42] : memref<8x128xbf16, #tpu.memory_space<vmem>>, vector<8x128xbf16>
    %cst_43 = arith.constant dense<0.000000e+00> : vector<8x256xf32>
    %74 = tpu.matmul %73, %70, %cst_43 {dimension_numbers = #tpu.dot_dimension_numbers<[1], [1], [0], [0], [0, 0, 1, 0], [], []>} : vector<8x128xbf16>, vector<256x128xbf16>, vector<8x256xf32> -> vector<8x256xf32>
    %75 = vector.extract_strided_slice %72 {offsets = [0, 0], sizes = [1, 256], strides = [1, 1]} : vector<8x256xf32> to vector<1x256xf32>
    %c0_44 = arith.constant 0 : index
    %76 = memref.load %arg12[%c0_44] : memref<2xf32, #tpu.memory_space<smem>>
    %77 = vector.broadcast %76 : f32 to vector<1x256xf32>
    %78 = arith.addf %75, %77 : vector<1x256xf32>
    %79 = arith.addf %78, %9 : vector<1x256xf32>
    %c0_45 = arith.constant 0 : index
    %c0_46 = arith.constant 0 : index
    %80 = vector.load %arg13[%c0_45, %c0_46] : memref<2x256xf32, #tpu.memory_space<vmem>>, vector<1x256xf32>
    tpu.vector_store %arg13[%c0_45, %c0_46], %79 {strides = array<i32>} : memref<2x256xf32, #tpu.memory_space<vmem>>, vector<1x256xf32>,
    %81 = vector.extract_strided_slice %74 {offsets = [1, 0], sizes = [1, 256], strides = [1, 1]} : vector<8x256xf32> to vector<1x256xf32>
    %c1_47 = arith.constant 1 : index
    %82 = memref.load %arg12[%c1_47] : memref<2xf32, #tpu.memory_space<smem>>
    %83 = vector.broadcast %82 : f32 to vector<1x256xf32>
    %84 = arith.addf %81, %83 : vector<1x256xf32>
    %85 = arith.addf %84, %9 : vector<1x256xf32>
    %c1_48 = arith.constant 1 : index
    %c0_49 = arith.constant 0 : index
    %86 = vector.load %arg13[%c1_48, %c0_49] : memref<2x256xf32, #tpu.memory_space<vmem>>, vector<1x256xf32>
    tpu.vector_store %arg13[%c1_48, %c0_49], %85 {strides = array<i32>} : memref<2x256xf32, #tpu.memory_space<vmem>>, vector<1x256xf32>,
    return
  }
  func.func @transform_0(%arg0: i32) -> (i32, i32) {
    %c0_i32 = arith.constant 0 : i32
    %c0_i32_0 = arith.constant 0 : i32
    return %arg0, %c0_i32 : i32, i32
  }
  func.func @transform_1(%arg0: i32) -> (i32, i32) {
    %c0_i32 = arith.constant 0 : i32
    %c0_i32_0 = arith.constant 0 : i32
    return %arg0, %c0_i32 : i32, i32
  }
  func.func @transform_2(%arg0: i32) -> (i32, i32) {
    %c0_i32 = arith.constant 0 : i32
    %c0_i32_0 = arith.constant 0 : i32
    return %arg0, %c0_i32 : i32, i32
  }
  func.func @transform_3(%arg0: i32) -> (i32, i32) {
    %c0_i32 = arith.constant 0 : i32
    %c0_i32_0 = arith.constant 0 : i32
    return %c0_i32, %arg0 : i32, i32
  }
  func.func @transform_4(%arg0: i32) -> (i32, i32) {
    %c0_i32 = arith.constant 0 : i32
    %c0_i32_0 = arith.constant 0 : i32
    %c0_i32_1 = arith.constant 0 : i32
    return %c0_i32, %c0_i32_0 : i32, i32
  }
  func.func @transform_5(%arg0: i32) -> (i32, i32) {
    %c0_i32 = arith.constant 0 : i32
    %c0_i32_0 = arith.constant 0 : i32
    %c0_i32_1 = arith.constant 0 : i32
    return %c0_i32, %c0_i32_0 : i32, i32
  }
  func.func @transform_6(%arg0: i32) -> (i32, i32) {
    %c0_i32 = arith.constant 0 : i32
    %c0_i32_0 = arith.constant 0 : i32
    %c0_i32_1 = arith.constant 0 : i32
    return %c0_i32, %c0_i32_0 : i32, i32
  }
  func.func @transform_7(%arg0: i32) -> (i32, i32) {
    %c0_i32 = arith.constant 0 : i32
    %c0_i32_0 = arith.constant 0 : i32
    %c0_i32_1 = arith.constant 0 : i32
    return %c0_i32, %c0_i32_0 : i32, i32
  }
  func.func @transform_8(%arg0: i32) -> (i32, i32) {
    %c0_i32 = arith.constant 0 : i32
    %c0_i32_0 = arith.constant 0 : i32
    %c0_i32_1 = arith.constant 0 : i32
    return %c0_i32, %c0_i32_0 : i32, i32
  }
  func.func @transform_9(%arg0: i32) -> (i32, i32) {
    %c0_i32 = arith.constant 0 : i32
    %c0_i32_0 = arith.constant 0 : i32
    %c0_i32_1 = arith.constant 0 : i32
    return %c0_i32, %c0_i32_0 : i32, i32
  }
  func.func @transform_10(%arg0: i32) -> (i32, i32) {
    %c0_i32 = arith.constant 0 : i32
    %c0_i32_0 = arith.constant 0 : i32
    %c0_i32_1 = arith.constant 0 : i32
    return %c0_i32, %c0_i32_0 : i32, i32
  }
  func.func @transform_11(%arg0: i32) -> i32 {
    %c0_i32 = arith.constant 0 : i32
    %c0_i32_0 = arith.constant 0 : i32
    return %c0_i32 : i32
  }
  func.func @transform_12(%arg0: i32) -> (i32, i32) {
    %c0_i32 = arith.constant 0 : i32
    %c0_i32_0 = arith.constant 0 : i32
    return %c0_i32, %arg0 : i32, i32
  }
}

</mosaic_0001>

<llo_original>
// kernel: tpu_custom_call.1
$region0: #{tpu_custom_call.1}
  #allocation0 [shape = 'u32[]', space=smem, size = 0x4, offset = 0x4, fixed_abs, tag = 'smem constant byte address 0x4 - core index']
  #allocation1 [shape = 'u32[144,128]{1,0:T(1,128)}', space=vmem, size = 0x12000, scoped, tag = 'internal scratch']
  %s0 = inlined_call_operand.hbm [shape: bf16[512,512], index: 0, kind: input, shape index: {}]
  %s1 = inlined_call_operand.vmem [shape: bf16[512,128], index: 1, kind: input, shape index: {}]
  %s2 = inlined_call_operand.vmem [shape: f32[512,3], index: 2, kind: input, shape index: {}]
  %s3 = inlined_call_operand.vmem [shape: f32[1,512], index: 3, kind: input, shape index: {}]
  %s4 = inlined_call_operand.vmem [shape: bf16[512,128], index: 4, kind: input, shape index: {}]
  %s5 = inlined_call_operand.vmem [shape: f32[8,128], index: 5, kind: input, shape index: {}]
  %s6 = inlined_call_operand.hbm [shape: bf16[128,128], index: 6, kind: input, shape index: {}]
  %s7 = inlined_call_operand.hbm [shape: bf16[128,128], index: 7, kind: input, shape index: {}]
  %s8 = inlined_call_operand.hbm [shape: bf16[128,384], index: 8, kind: input, shape index: {}]
  %s9 = inlined_call_operand.hbm [shape: bf16[128,384], index: 9, kind: input, shape index: {}]
  %s10 = inlined_call_operand.vmem [shape: bf16[8,128], index: 10, kind: input, shape index: {}]
  %s11 = inlined_call_operand.vmem [shape: f32[2], index: 11, kind: input, shape index: {}]
  %s12 = inlined_call_operand.hbm [shape: f32[2,512], index: 12, kind: output, shape index: {}]
  %s13 = sld [smem:[#allocation0]]
  $region105: #{tpu_custom_call.1} parent=0
    _
  %s15 = ssub.s32 1, %s13
  %s16 = scalar_select 0, %s15, %s13
  $region1: #{tpu_custom_call.1} parent=0
    #allocation2 [shape = 'u8[524288]{0}', space=vmem, size = 0x80000, scoped, tag = 'input window, operand 0']
    #allocation3 [shape = 's32[2]{0}', space=sflag, size = 0x8, scoped, tag = 'scoped memory for tpu_custom_call.1']
    #allocation4 [shape = 's32[2]{0}', space=sflag, size = 0x8, scoped, tag = 'scoped memory for tpu_custom_call.1']
    #allocation5 [shape = 's32[2]{0}', space=sflag, size = 0x8, scoped, tag = 'scoped memory for tpu_custom_call.1']
    #allocation6 [shape = 'u8[32768]{0}', space=vmem, size = 0x8000, scoped, tag = 'input window, operand 6, single buffered']
    #allocation7 [shape = 's32[1]{0}', space=sflag, size = 0x4, scoped, tag = 'scoped memory for tpu_custom_call.1']
    #allocation8 [shape = 'u8[32768]{0}', space=vmem, size = 0x8000, scoped, tag = 'input window, operand 7, single buffered']
    #allocation9 [shape = 'u8[98304]{0}', space=vmem, size = 0x18000, scoped, tag = 'input window, operand 8, single buffered']
    #allocation10 [shape = 's32[1]{0}', space=sflag, size = 0x4, scoped, tag = 'scoped memory for tpu_custom_call.1']
    #allocation11 [shape = 'u8[98304]{0}', space=vmem, size = 0x18000, scoped, tag = 'input window, operand 9, single buffered']
    #allocation12 [shape = 'u8[512]{0}', space=smem, size = 0x200, scoped, tag = 'input window, operand 11, single buffered']
    #allocation13 [shape = 'u8[4096]{0}', space=vmem, size = 0x1000, scoped, tag = 'output window, operand 0']
    %17 = vsyncpa [#allocation3], 0
    %s18 = scalar_lea.sflag [#allocation3], 1
    %19 = vsyncpa %s18, 0
    %20 = vsyncpa [#allocation7], 0
    %21 = vsyncpa [#allocation10], 0
    %22 = vsyncpa [#allocation5], 0
    %23 = vsyncpa [#allocation4], 0
    %s24 = scalar_lea.sflag [#allocation4], 1
    %25 = vsyncpa %s24, 0
    loop: start=0, step=1, limit=4
    $region2: #{tpu_custom_call.1} parent=1 // loop_pre_header
      _
    $region3: #{tpu_custom_call.1} parent=1 // loop_header
      %s27 = sphi 0, %s31
      %p28 = scmp.ge.s32.totalorder %s27, 4
      %s37 = sphi 0, %s39
      %s40 = sphi 0, %s37
      %s41 = sphi 0, %s40
      %s57 = sphi 0, %s41
      %s63 = sphi 0, %s65
      %s66 = sphi 0, %s63
      %s67 = sphi 0, %s66
      %s83 = sphi 0, %s67
      %s89 = sphi 0, %s91
      %s92 = sphi 0, %s89
      %s93 = sphi 0, %s92
      %s109 = sphi 0, %s93
      %s115 = sphi 0, %s117
      %s118 = sphi 0, %s115
      %s119 = sphi 0, %s118
      %s135 = sphi 0, %s119
      %s139 = sphi 0, %s139
      %s141 = sphi 0, %s139
      %s142 = sphi 0, %s141
      %s156 = sphi 0, %s142
      %s160 = sphi 0, %s160
      %s162 = sphi 0, %s160
      %s163 = sphi 0, %s162
      %s177 = sphi 0, %s163
      %s181 = sphi 0, %s181
      %s183 = sphi 0, %s181
      %s184 = sphi 0, %s183
      %s198 = sphi 0, %s184
      %s202 = sphi 0, %s202
      %s204 = sphi 0, %s202
      %s205 = sphi 0, %s204
      %s219 = sphi 0, %s205
      %s223 = sphi 0, %s223
      %s225 = sphi 0, %s223
      %s226 = sphi 0, %s225
      %s240 = sphi 0, %s226
      %s244 = sphi 0, %s244
      %s246 = sphi 0, %s244
      %s247 = sphi 0, %s246
      %s261 = sphi 0, %s247
      %s265 = sphi 0, %s265
      %s267 = sphi 0, %s265
      %s268 = sphi 0, %s267
      %s282 = sphi 0, %s268
      %s286 = sphi 0, %s286
      %s288 = sphi 0, %s286
      %s289 = sphi 0, %s288
      %s303 = sphi 0, %s289
      %s309 = sphi 0, %s311
      %s312 = sphi 0, %s309
      %s313 = sphi 0, %s312
      %s329 = sphi 0, %s313
    $region4: #{tpu_custom_call.1} parent=1 // loop_header_branch
      %30 = sbr.rel (%p28) target = $region8
    $region5: #{tpu_custom_call.1} parent=1 // loop_body
      %s32 = ssub.s32 %s27, 1
      %s33 = ssub.s32 %s27, 2
      %s34 = sadd.s32 %s27, 1
      %s35 = ssub.s32 %s27, %s34
      %p36 = scmp.eq.s32.totalorder %s35, 0
      %s38 = sadd.s32 %s37, 1
      %s39 = scalar_select %p36, %s37, %s38
      %p42 = pneg %p36
      %p43 = scmp.eq.s32.totalorder %s27, 1
      %p44 = por %p42, %p43
      %p45 = scmp.ne.s32.totalorder %s37, %s40
      %p46 = scmp.eq.s32.totalorder %s27, 0
      %p47 = por %p45, %p46
      %p48 = scmp.ne.s32.totalorder %s37, %s40
      %p49 = scmp.eq.s32.totalorder %s32, 1
      %p50 = por %p48, %p49
      %p51 = scmp.ne.s32.totalorder %s40, %s41
      %p52 = scmp.eq.s32.totalorder %s32, 0
      %p53 = por %p51, %p52
      %p54 = scmp.ne.s32.totalorder %s40, %s41
      %p55 = scmp.eq.s32.totalorder %s33, 1
      %p56 = por %p54, %p55
      %p58 = scmp.ne.s32.totalorder %s41, %s57
      %p59 = scmp.eq.s32.totalorder %s33, 0
      %p60 = por %p58, %p59
      %s61 = ssub.s32 %s27, %s34
      %p62 = scmp.eq.s32.totalorder %s61, 0
      %s64 = sadd.s32 %s63, 1
      %s65 = scalar_select %p62, %s63, %s64
      %p68 = pneg %p62
      %p69 = scmp.eq.s32.totalorder %s27, 1
      %p70 = por %p68, %p69
      %p71 = scmp.ne.s32.totalorder %s63, %s66
      %p72 = scmp.eq.s32.totalorder %s27, 0
      %p73 = por %p71, %p72
      %p74 = scmp.ne.s32.totalorder %s63, %s66
      %p75 = scmp.eq.s32.totalorder %s32, 1
      %p76 = por %p74, %p75
      %p77 = scmp.ne.s32.totalorder %s66, %s67
      %p78 = scmp.eq.s32.totalorder %s32, 0
      %p79 = por %p77, %p78
      %p80 = scmp.ne.s32.totalorder %s66, %s67
      %p81 = scmp.eq.s32.totalorder %s33, 1
      %p82 = por %p80, %p81
      %p84 = scmp.ne.s32.totalorder %s67, %s83
      %p85 = scmp.eq.s32.totalorder %s33, 0
      %p86 = por %p84, %p85
      %s87 = ssub.s32 %s27, %s34
      %p88 = scmp.eq.s32.totalorder %s87, 0
      %s90 = sadd.s32 %s89, 1
      %s91 = scalar_select %p88, %s89, %s90
      %p94 = pneg %p88
      %p95 = scmp.eq.s32.totalorder %s27, 1
      %p96 = por %p94, %p95
      %p97 = scmp.ne.s32.totalorder %s89, %s92
      %p98 = scmp.eq.s32.totalorder %s27, 0
      %p99 = por %p97, %p98
      %p100 = scmp.ne.s32.totalorder %s89, %s92
      %p101 = scmp.eq.s32.totalorder %s32, 1
      %p102 = por %p100, %p101
      %p103 = scmp.ne.s32.totalorder %s92, %s93
      %p104 = scmp.eq.s32.totalorder %s32, 0
      %p105 = por %p103, %p104
      %p106 = scmp.ne.s32.totalorder %s92, %s93
      %p107 = scmp.eq.s32.totalorder %s33, 1
      %p108 = por %p106, %p107
      %p110 = scmp.ne.s32.totalorder %s93, %s109
      %p111 = scmp.eq.s32.totalorder %s33, 0
      %p112 = por %p110, %p111
      %s113 = ssub.s32 %s27, %s34
      %p114 = scmp.eq.s32.totalorder %s113, 0
      %s116 = sadd.s32 %s115, 1
      %s117 = scalar_select %p114, %s115, %s116
      %p120 = pneg %p114
      %p121 = scmp.eq.s32.totalorder %s27, 1
      %p122 = por %p120, %p121
      %p123 = scmp.ne.s32.totalorder %s115, %s118
      %p124 = scmp.eq.s32.totalorder %s27, 0
      %p125 = por %p123, %p124
      %p126 = scmp.ne.s32.totalorder %s115, %s118
      %p127 = scmp.eq.s32.totalorder %s32, 1
      %p128 = por %p126, %p127
      %p129 = scmp.ne.s32.totalorder %s118, %s119
      %p130 = scmp.eq.s32.totalorder %s32, 0
      %p131 = por %p129, %p130
      %p132 = scmp.ne.s32.totalorder %s118, %s119
      %p133 = scmp.eq.s32.totalorder %s33, 1
      %p134 = por %p132, %p133
      %p136 = scmp.ne.s32.totalorder %s119, %s135
      %p137 = scmp.eq.s32.totalorder %s33, 0
      %p138 = por %p136, %p137
      %s140 = sadd.s32 %s139, 1
      %p143 = scmp.eq.s32.totalorder %s27, 1
      %p144 = scmp.ne.s32.totalorder %s139, %s141
      %p145 = scmp.eq.s32.totalorder %s27, 0
      %p146 = por %p144, %p145
      %p147 = scmp.ne.s32.totalorder %s139, %s141
      %p148 = scmp.eq.s32.totalorder %s32, 1
      %p149 = por %p147, %p148
      %p150 = scmp.ne.s32.totalorder %s141, %s142
      %p151 = scmp.eq.s32.totalorder %s32, 0
      %p152 = por %p150, %p151
      %p153 = scmp.ne.s32.totalorder %s141, %s142
      %p154 = scmp.eq.s32.totalorder %s33, 1
      %p155 = por %p153, %p154
      %p157 = scmp.ne.s32.totalorder %s142, %s156
      %p158 = scmp.eq.s32.totalorder %s33, 0
      %p159 = por %p157, %p158
      %s161 = sadd.s32 %s160, 1
      %p164 = scmp.eq.s32.totalorder %s27, 1
      %p165 = scmp.ne.s32.totalorder %s160, %s162
      %p166 = scmp.eq.s32.totalorder %s27, 0
      %p167 = por %p165, %p166
      %p168 = scmp.ne.s32.totalorder %s160, %s162
      %p169 = scmp.eq.s32.totalorder %s32, 1
      %p170 = por %p168, %p169
      %p171 = scmp.ne.s32.totalorder %s162, %s163
      %p172 = scmp.eq.s32.totalorder %s32, 0
      %p173 = por %p171, %p172
      %p174 = scmp.ne.s32.totalorder %s162, %s163
      %p175 = scmp.eq.s32.totalorder %s33, 1
      %p176 = por %p174, %p175
      %p178 = scmp.ne.s32.totalorder %s163, %s177
      %p179 = scmp.eq.s32.totalorder %s33, 0
      %p180 = por %p178, %p179
      %s182 = sadd.s32 %s181, 1
      %p185 = scmp.eq.s32.totalorder %s27, 1
      %p186 = scmp.ne.s32.totalorder %s181, %s183
      %p187 = scmp.eq.s32.totalorder %s27, 0
      %p188 = por %p186, %p187
      %p189 = scmp.ne.s32.totalorder %s181, %s183
      %p190 = scmp.eq.s32.totalorder %s32, 1
      %p191 = por %p189, %p190
      %p192 = scmp.ne.s32.totalorder %s183, %s184
      %p193 = scmp.eq.s32.totalorder %s32, 0
      %p194 = por %p192, %p193
      %p195 = scmp.ne.s32.totalorder %s183, %s184
      %p196 = scmp.eq.s32.totalorder %s33, 1
      %p197 = por %p195, %p196
      %p199 = scmp.ne.s32.totalorder %s184, %s198
      %p200 = scmp.eq.s32.totalorder %s33, 0
      %p201 = por %p199, %p200
      %s203 = sadd.s32 %s202, 1
      %p206 = scmp.eq.s32.totalorder %s27, 1
      %p207 = scmp.ne.s32.totalorder %s202, %s204
      %p208 = scmp.eq.s32.totalorder %s27, 0
      %p209 = por %p207, %p208
      %p210 = scmp.ne.s32.totalorder %s202, %s204
      %p211 = scmp.eq.s32.totalorder %s32, 1
      %p212 = por %p210, %p211
      %p213 = scmp.ne.s32.totalorder %s204, %s205
      %p214 = scmp.eq.s32.totalorder %s32, 0
      %p215 = por %p213, %p214
      %p216 = scmp.ne.s32.totalorder %s204, %s205
      %p217 = scmp.eq.s32.totalorder %s33, 1
      %p218 = por %p216, %p217
      %p220 = scmp.ne.s32.totalorder %s205, %s219
      %p221 = scmp.eq.s32.totalorder %s33, 0
      %p222 = por %p220, %p221
      %s224 = sadd.s32 %s223, 1
      %p227 = scmp.eq.s32.totalorder %s27, 1
      %p228 = scmp.ne.s32.totalorder %s223, %s225
      %p229 = scmp.eq.s32.totalorder %s27, 0
      %p230 = por %p228, %p229
      %p231 = scmp.ne.s32.totalorder %s223, %s225
      %p232 = scmp.eq.s32.totalorder %s32, 1
      %p233 = por %p231, %p232
      %p234 = scmp.ne.s32.totalorder %s225, %s226
      %p235 = scmp.eq.s32.totalorder %s32, 0
      %p236 = por %p234, %p235
      %p237 = scmp.ne.s32.totalorder %s225, %s226
      %p238 = scmp.eq.s32.totalorder %s33, 1
      %p239 = por %p237, %p238
      %p241 = scmp.ne.s32.totalorder %s226, %s240
      %p242 = scmp.eq.s32.totalorder %s33, 0
      %p243 = por %p241, %p242
      %s245 = sadd.s32 %s244, 1
      %p248 = scmp.eq.s32.totalorder %s27, 1
      %p249 = scmp.ne.s32.totalorder %s244, %s246
      %p250 = scmp.eq.s32.totalorder %s27, 0
      %p251 = por %p249, %p250
      %p252 = scmp.ne.s32.totalorder %s244, %s246
      %p253 = scmp.eq.s32.totalorder %s32, 1
      %p254 = por %p252, %p253
      %p255 = scmp.ne.s32.totalorder %s246, %s247
      %p256 = scmp.eq.s32.totalorder %s32, 0
      %p257 = por %p255, %p256
      %p258 = scmp.ne.s32.totalorder %s246, %s247
      %p259 = scmp.eq.s32.totalorder %s33, 1
      %p260 = por %p258, %p259
      %p262 = scmp.ne.s32.totalorder %s247, %s261
      %p263 = scmp.eq.s32.totalorder %s33, 0
      %p264 = por %p262, %p263
      %s266 = sadd.s32 %s265, 1
      %p269 = scmp.eq.s32.totalorder %s27, 1
      %p270 = scmp.ne.s32.totalorder %s265, %s267
      %p271 = scmp.eq.s32.totalorder %s27, 0
      %p272 = por %p270, %p271
      %p273 = scmp.ne.s32.totalorder %s265, %s267
      %p274 = scmp.eq.s32.totalorder %s32, 1
      %p275 = por %p273, %p274
      %p276 = scmp.ne.s32.totalorder %s267, %s268
      %p277 = scmp.eq.s32.totalorder %s32, 0
      %p278 = por %p276, %p277
      %p279 = scmp.ne.s32.totalorder %s267, %s268
      %p280 = scmp.eq.s32.totalorder %s33, 1
      %p281 = por %p279, %p280
      %p283 = scmp.ne.s32.totalorder %s268, %s282
      %p284 = scmp.eq.s32.totalorder %s33, 0
      %p285 = por %p283, %p284
      %s287 = sadd.s32 %s286, 1
      %p290 = scmp.eq.s32.totalorder %s27, 1
      %p291 = scmp.ne.s32.totalorder %s286, %s288
      %p292 = scmp.eq.s32.totalorder %s27, 0
      %p293 = por %p291, %p292
      %p294 = scmp.ne.s32.totalorder %s286, %s288
      %p295 = scmp.eq.s32.totalorder %s32, 1
      %p296 = por %p294, %p295
      %p297 = scmp.ne.s32.totalorder %s288, %s289
      %p298 = scmp.eq.s32.totalorder %s32, 0
      %p299 = por %p297, %p298
      %p300 = scmp.ne.s32.totalorder %s288, %s289
      %p301 = scmp.eq.s32.totalorder %s33, 1
      %p302 = por %p300, %p301
      %p304 = scmp.ne.s32.totalorder %s289, %s303
      %p305 = scmp.eq.s32.totalorder %s33, 0
      %p306 = por %p304, %p305
      %s307 = ssub.s32 %s27, %s34
      %p308 = scmp.eq.s32.totalorder %s307, 0
      %s310 = sadd.s32 %s309, 1
      %s311 = scalar_select %p308, %s309, %s310
      %p314 = pneg %p308
      %p315 = scmp.eq.s32.totalorder %s27, 1
      %p316 = por %p314, %p315
      %p317 = scmp.ne.s32.totalorder %s309, %s312
      %p318 = scmp.eq.s32.totalorder %s27, 0
      %p319 = por %p317, %p318
      %p320 = scmp.ne.s32.totalorder %s309, %s312
      %p321 = scmp.eq.s32.totalorder %s32, 1
      %p322 = por %p320, %p321
      %p323 = scmp.ne.s32.totalorder %s312, %s313
      %p324 = scmp.eq.s32.totalorder %s32, 0
      %p325 = por %p323, %p324
      %p326 = scmp.ne.s32.totalorder %s312, %s313
      %p327 = scmp.eq.s32.totalorder %s33, 1
      %p328 = por %p326, %p327
      %p330 = scmp.ne.s32.totalorder %s313, %s329
      %p331 = scmp.eq.s32.totalorder %s33, 0
      %p332 = por %p330, %p331
      %p333 = scmp.le.s32.totalorder 1, %s27
      %p334 = scmp.lt.s32.totalorder %s27, 3
      %p335 = pnand %p333, %p334
      %p336 = pneg %p335
      // Predicated region
      $region9: #{tpu_custom_call.1} parent=5 // pred_check
        _
      $region10: #{tpu_custom_call.1} parent=5 // pred_check_branch
        %338 = sbr.rel (%p335) target = $region12
      $region11: #{tpu_custom_call.1} parent=5 // pred_region
        %s339 = ssub.s32 %s27, 1
        // Predicated region
        $region13: #{tpu_custom_call.1} parent=11 // pred_check
          %p340 = pneg %p152
        $region14: #{tpu_custom_call.1} parent=11 // pred_check_branch
          %342 = sbr.rel (%p340) target = $region16
        $region15: #{tpu_custom_call.1} parent=11 // pred_region
          _
        $region16: #{tpu_custom_call.1} parent=11 // pred_fallthru
          _
        // Predicated region
        $region17: #{tpu_custom_call.1} parent=11 // pred_check
          %p343 = pneg %p173
        $region18: #{tpu_custom_call.1} parent=11 // pred_check_branch
          %345 = sbr.rel (%p343) target = $region20
        $region19: #{tpu_custom_call.1} parent=11 // pred_region
          _
        $region20: #{tpu_custom_call.1} parent=11 // pred_fallthru
          _
        // Predicated region
        $region21: #{tpu_custom_call.1} parent=11 // pred_check
          %p346 = pneg %p194
        $region22: #{tpu_custom_call.1} parent=11 // pred_check_branch
          %348 = sbr.rel (%p346) target = $region24
        $region23: #{tpu_custom_call.1} parent=11 // pred_region
          %s350 = ssub.s32 1024, 1024
          %351 = vsyncadd [#allocation7], %s350
          %s352 = sshll.u32 [#allocation6], 4
          %s353 = int_to_ptr.vmem [resolvable:$true] %s352
          %358 = dma.hbm_to_vmem [thread:$0]  %s6, 1024, %s353, [#allocation7], 64, 64, 4
        $region24: #{tpu_custom_call.1} parent=11 // pred_fallthru
          _
        // Predicated region
        $region25: #{tpu_custom_call.1} parent=11 // pred_check
          %p359 = pneg %p215
        $region26: #{tpu_custom_call.1} parent=11 // pred_check_branch
          %361 = sbr.rel (%p359) target = $region28
        $region27: #{tpu_custom_call.1} parent=11 // pred_region
          %s363 = ssub.s32 1024, 1024
          %364 = vsyncadd [#allocation7], %s363
          %s365 = sshll.u32 [#allocation8], 4
          %s366 = int_to_ptr.vmem [resolvable:$true] %s365
          %371 = dma.hbm_to_vmem [thread:$0]  %s7, 1024, %s366, [#allocation7], 64, 64, 4
        $region28: #{tpu_custom_call.1} parent=11 // pred_fallthru
          _
        // Predicated region
        $region29: #{tpu_custom_call.1} parent=11 // pred_check
          %p372 = pneg %p236
        $region30: #{tpu_custom_call.1} parent=11 // pred_check_branch
          %374 = sbr.rel (%p372) target = $region32
        $region31: #{tpu_custom_call.1} parent=11 // pred_region
          %s376 = ssub.s32 3072, 3072
          %377 = vsyncadd [#allocation10], %s376
          %s378 = sshll.u32 [#allocation9], 4
          %s379 = int_to_ptr.vmem [resolvable:$true] %s378
          %384 = dma.hbm_to_vmem [thread:$0]  %s8, 3072, %s379, [#allocation10], 192, 192, 12
        $region32: #{tpu_custom_call.1} parent=11 // pred_fallthru
          _
        // Predicated region
        $region33: #{tpu_custom_call.1} parent=11 // pred_check
          %p385 = pneg %p257
        $region34: #{tpu_custom_call.1} parent=11 // pred_check_branch
          %387 = sbr.rel (%p385) target = $region36
        $region35: #{tpu_custom_call.1} parent=11 // pred_region
          %s389 = ssub.s32 3072, 3072
          %390 = vsyncadd [#allocation10], %s389
          %s391 = sshll.u32 [#allocation11], 4
          %s392 = int_to_ptr.vmem [resolvable:$true] %s391
          %397 = dma.hbm_to_vmem [thread:$0]  %s9, 3072, %s392, [#allocation10], 192, 192, 12
        $region36: #{tpu_custom_call.1} parent=11 // pred_fallthru
          _
        // Predicated region
        $region37: #{tpu_custom_call.1} parent=11 // pred_check
          %p398 = pneg %p278
        $region38: #{tpu_custom_call.1} parent=11 // pred_check_branch
          %400 = sbr.rel (%p398) target = $region40
        $region39: #{tpu_custom_call.1} parent=11 // pred_region
          _
        $region40: #{tpu_custom_call.1} parent=11 // pred_fallthru
          _
        // Predicated region
        $region41: #{tpu_custom_call.1} parent=11 // pred_check
          %p401 = pneg %p299
        $region42: #{tpu_custom_call.1} parent=11 // pred_check_branch
          %403 = sbr.rel (%p401) target = $region44
        $region43: #{tpu_custom_call.1} parent=11 // pred_region
          %s405 = ssub.s32 16, 16
          %406 = vsyncadd [#allocation5], %s405
          %s408 = sshll.u32 %s11, 4
          %s409 = int_to_ptr.vmem [resolvable:$true] %s408
          %411 = dma.vmem_to_smem %s409, 16, [#allocation12], [#allocation5]
        $region44: #{tpu_custom_call.1} parent=11 // pred_fallthru
          _
      $region12: #{tpu_custom_call.1} parent=5 // pred_fallthru
        _
      %p412 = scmp.lt.s32.totalorder %s27, 2
      // Predicated region
      $region45: #{tpu_custom_call.1} parent=5 // pred_check
        %p413 = pneg %p412
      $region46: #{tpu_custom_call.1} parent=5 // pred_check_branch
        %415 = sbr.rel (%p413) target = $region48
      $region47: #{tpu_custom_call.1} parent=5 // pred_region
        // Predicated region
        $region49: #{tpu_custom_call.1} parent=47 // pred_check
          %p416 = pneg %p47
        $region50: #{tpu_custom_call.1} parent=47 // pred_check_branch
          %418 = sbr.rel (%p416) target = $region52
        $region51: #{tpu_custom_call.1} parent=47 // pred_region
          %s419 = sand.u32 %s37, 1
          %s420 = scalar_lea.sflag [#allocation3], %s419
          %s421 = sand.u32 %s37, 1
          %s422 = smul.addr %s421, 512
          %s423 = scalar_lea.vmem [#allocation2], %s422
          %s424 = smul.u32 32, %s27
          %s426 = ssub.s32 8192, 8192
          %427 = vsyncadd %s420, %s426
          %s428 = smul.addr %s424, 4
          %s429 = smul.addr %s428, 64
          %s430 = scalar_lea.hbm %s0, %s429
          %s431 = sshll.u32 %s423, 4
          %s432 = int_to_ptr.vmem [resolvable:$true] %s431
          %437 = dma.hbm_to_vmem [thread:$0]  %s430, 8192, %s432, %s420, 256, 256, 16
        $region52: #{tpu_custom_call.1} parent=47 // pred_fallthru
          _
        // Predicated region
        $region53: #{tpu_custom_call.1} parent=47 // pred_check
          %p438 = pneg %p73
        $region54: #{tpu_custom_call.1} parent=47 // pred_check_branch
          %440 = sbr.rel (%p438) target = $region56
        $region55: #{tpu_custom_call.1} parent=47 // pred_region
          %s441 = smul.u32 32, %s27
          %p442 = scmp.lt.s32.totalorder %s441, 63
          %s443 = scalar_select %p442, %s441, 63
          %s444 = smul.addr %s443, 4
          %s445 = scalar_lea.vmem %s1, %s444
          %s446 = smul.u32 32, %s27
        $region56: #{tpu_custom_call.1} parent=47 // pred_fallthru
          _
        // Predicated region
        $region57: #{tpu_custom_call.1} parent=47 // pred_check
          %p447 = pneg %p99
        $region58: #{tpu_custom_call.1} parent=47 // pred_check_branch
          %449 = sbr.rel (%p447) target = $region60
        $region59: #{tpu_custom_call.1} parent=47 // pred_region
          %s450 = smul.u32 32, %s27
          %p451 = scmp.lt.s32.totalorder %s450, 63
          %s452 = scalar_select %p451, %s450, 63
          %s453 = smul.addr %s452, 8
          %s454 = scalar_lea.vmem %s2, %s453
          %s455 = smul.u32 32, %s27
        $region60: #{tpu_custom_call.1} parent=47 // pred_fallthru
          _
        // Predicated region
        $region61: #{tpu_custom_call.1} parent=47 // pred_check
          %p456 = pneg %p125
        $region62: #{tpu_custom_call.1} parent=47 // pred_check_branch
          %458 = sbr.rel (%p456) target = $region64
        $region63: #{tpu_custom_call.1} parent=47 // pred_region
          %s459 = smul.u32 2, %s27
          %p460 = scmp.lt.s32.totalorder %s459, 3
          %s461 = scalar_select %p460, %s459, 3
          %s462 = scalar_lea.vmem %s3, %s461
          %s463 = smul.u32 2, %s27
        $region64: #{tpu_custom_call.1} parent=47 // pred_fallthru
          _
      $region48: #{tpu_custom_call.1} parent=5 // pred_fallthru
        _
      %p464 = scmp.le.s32.totalorder 1, %s27
      %p465 = scmp.lt.s32.totalorder %s27, 3
      %p466 = pnand %p464, %p465
      %p467 = pneg %p466
      // Predicated region
      $region65: #{tpu_custom_call.1} parent=5 // pred_check
        _
      $region66: #{tpu_custom_call.1} parent=5 // pred_check_branch
        %469 = sbr.rel (%p466) target = $region68
      $region67: #{tpu_custom_call.1} parent=5 // pred_region
        %s470 = ssub.s32 %s27, 1
        %s471 = sand.u32 %s40, 1
        %s472 = scalar_lea.sflag [#allocation3], %s471
        %s473 = sand.u32 %s40, 1
        %s474 = smul.addr %s473, 512
        %s475 = scalar_lea.vmem [#allocation2], %s474
        // Predicated region
        $region69: #{tpu_custom_call.1} parent=67 // pred_check
          %p476 = pneg %p53
        $region70: #{tpu_custom_call.1} parent=67 // pred_check_branch
          %478 = sbr.rel (%p476) target = $region72
        $region71: #{tpu_custom_call.1} parent=67 // pred_region
          %479 = dma.done %s472, 8192
        $region72: #{tpu_custom_call.1} parent=67 // pred_fallthru
          _
        // Predicated region
        $region73: #{tpu_custom_call.1} parent=67 // pred_check
          %p480 = pneg %p194
        $region74: #{tpu_custom_call.1} parent=67 // pred_check_branch
          %482 = sbr.rel (%p480) target = $region76
        $region75: #{tpu_custom_call.1} parent=67 // pred_region
          %483 = dma.done [#allocation7], 1024
        $region76: #{tpu_custom_call.1} parent=67 // pred_fallthru
          _
        // Predicated region
        $region77: #{tpu_custom_call.1} parent=67 // pred_check
          %p484 = pneg %p215
        $region78: #{tpu_custom_call.1} parent=67 // pred_check_branch
          %486 = sbr.rel (%p484) target = $region80
        $region79: #{tpu_custom_call.1} parent=67 // pred_region
          %487 = dma.done [#allocation7], 1024
        $region80: #{tpu_custom_call.1} parent=67 // pred_fallthru
          _
        // Predicated region
        $region81: #{tpu_custom_call.1} parent=67 // pred_check
          %p488 = pneg %p236
        $region82: #{tpu_custom_call.1} parent=67 // pred_check_branch
          %490 = sbr.rel (%p488) target = $region84
        $region83: #{tpu_custom_call.1} parent=67 // pred_region
          %491 = dma.done [#allocation10], 3072
        $region84: #{tpu_custom_call.1} parent=67 // pred_fallthru
          _
        // Predicated region
        $region85: #{tpu_custom_call.1} parent=67 // pred_check
          %p492 = pneg %p257
        $region86: #{tpu_custom_call.1} parent=67 // pred_check_branch
          %494 = sbr.rel (%p492) target = $region88
        $region87: #{tpu_custom_call.1} parent=67 // pred_region
          %495 = dma.done [#allocation10], 3072
        $region88: #{tpu_custom_call.1} parent=67 // pred_fallthru
          _
        // Predicated region
        $region89: #{tpu_custom_call.1} parent=67 // pred_check
          %p496 = pneg %p299
        $region90: #{tpu_custom_call.1} parent=67 // pred_check_branch
          %498 = sbr.rel (%p496) target = $region92
        $region91: #{tpu_custom_call.1} parent=67 // pred_region
          %499 = dma.done [#allocation5], 16
        $region92: #{tpu_custom_call.1} parent=67 // pred_fallthru
          _
        %500 = sfence
        %s501 = sand.u32 %s40, 1
        %s502 = scalar_lea.sflag [#allocation3], %s501
        %s503 = sand.u32 %s40, 1
        %s504 = smul.addr %s503, 512
        %s505 = scalar_lea.vmem [#allocation2], %s504
        %p506 = pneg %p53
        %p507 = pneg %p50
        %s508 = smul.u32 32, %s32
        %p509 = scmp.lt.s32.totalorder %s508, 63
        %s510 = scalar_select %p509, %s508, 63
        %s511 = smul.addr %s510, 4
        %s512 = scalar_lea.vmem %s1, %s511
        %p513 = pneg %p79
        %p514 = pneg %p76
        %s515 = smul.u32 32, %s32
        %p516 = scmp.lt.s32.totalorder %s515, 63
        %s517 = scalar_select %p516, %s515, 63
        %s518 = smul.addr %s517, 8
        %s519 = scalar_lea.vmem %s2, %s518
        %p520 = pneg %p105
        %p521 = pneg %p102
        %s522 = smul.u32 2, %s32
        %p523 = scmp.lt.s32.totalorder %s522, 3
        %s524 = scalar_select %p523, %s522, 3
        %s525 = scalar_lea.vmem %s3, %s524
        %p526 = pneg %p131
        %p527 = pneg %p128
        %p528 = pneg %p152
        %p529 = pneg %p149
        %p530 = pneg %p173
        %p531 = pneg %p170
        %p532 = pneg %p194
        %p533 = pneg %p191
        %p534 = pneg %p215
        %p535 = pneg %p212
        %p536 = pneg %p236
        %p537 = pneg %p233
        %p538 = pneg %p257
        %p539 = pneg %p254
        %p540 = pneg %p278
        %p541 = pneg %p275
        %p542 = pneg %p299
        %p543 = pneg %p296
        %p544 = pneg %p325
        %p545 = pneg %p322
        %s546 = sand.u32 %s312, 1
        %s547 = scalar_lea.sflag [#allocation4], %s546
        %s548 = sand.u32 %s312, 1
        %s549 = smul.addr %s548, 4
        %s550 = scalar_lea.vmem [#allocation13], %s549
        %s551 = smul.u32 32, %s32
        %s552 = smul.u32 32, %s32
        %p553 = scmp.lt.s32.totalorder %s552, 63
        %s554 = scalar_select %p553, %s552, 63
        %s555 = smul.addr %s554, 4
        %s556 = scalar_lea.vmem %s1, %s555
        %s557 = smul.u32 32, %s32
        %s558 = smul.u32 32, %s32
        %p559 = scmp.lt.s32.totalorder %s558, 63
        %s560 = scalar_select %p559, %s558, 63
        %s561 = smul.addr %s560, 8
        %s562 = scalar_lea.vmem %s2, %s561
        %s563 = smul.u32 32, %s32
        %s564 = smul.u32 2, %s32
        %p565 = scmp.lt.s32.totalorder %s564, 3
        %s566 = scalar_select %p565, %s564, 3
        %s567 = scalar_lea.vmem %s3, %s566
        %s568 = smul.u32 2, %s32
        %s569 = smul.u32 2, %s32
        %v571 = vld [vmem:[%s475] sm:$0xff]
        %v572 = vld [vmem:[%s475 + $0x8] sm:$0xff]
        %v573 = vld [vmem:[%s475 + $0x10] sm:$0xff]
        %v574 = vld [vmem:[%s475 + $0x18] sm:$0xff]
        %v575 = vld [vmem:[%s475 + $0x20] sm:$0xff]
        %v576 = vld [vmem:[%s475 + $0x28] sm:$0xff]
        %v577 = vld [vmem:[%s475 + $0x30] sm:$0xff]
        %v578 = vld [vmem:[%s475 + $0x38] sm:$0xff]
        %v579 = vld [vmem:[%s475 + $0x40] sm:$0xff]
        %v580 = vld [vmem:[%s475 + $0x48] sm:$0xff]
        %v581 = vld [vmem:[%s475 + $0x50] sm:$0xff]
        %v582 = vld [vmem:[%s475 + $0x58] sm:$0xff]
        %v583 = vld [vmem:[%s475 + $0x60] sm:$0xff]
        %v584 = vld [vmem:[%s475 + $0x68] sm:$0xff]
        %v585 = vld [vmem:[%s475 + $0x70] sm:$0xff]
        %v586 = vld [vmem:[%s475 + $0x78] sm:$0xff]
        %v587 = vld [vmem:[%s475 + $0x80] sm:$0xff]
        %v588 = vld [vmem:[%s475 + $0x88] sm:$0xff]
        %v589 = vld [vmem:[%s475 + $0x90] sm:$0xff]
        %v590 = vld [vmem:[%s475 + $0x98] sm:$0xff]
        %v591 = vld [vmem:[%s475 + $0xa0] sm:$0xff]
        %v592 = vld [vmem:[%s475 + $0xa8] sm:$0xff]
        %v593 = vld [vmem:[%s475 + $0xb0] sm:$0xff]
        %v594 = vld [vmem:[%s475 + $0xb8] sm:$0xff]
        %v595 = vld [vmem:[%s475 + $0xc0] sm:$0xff]
        %v596 = vld [vmem:[%s475 + $0xc8] sm:$0xff]
        %v597 = vld [vmem:[%s475 + $0xd0] sm:$0xff]
        %v598 = vld [vmem:[%s475 + $0xd8] sm:$0xff]
        %v599 = vld [vmem:[%s475 + $0xe0] sm:$0xff]
        %v600 = vld [vmem:[%s475 + $0xe8] sm:$0xff]
        %v601 = vld [vmem:[%s475 + $0xf0] sm:$0xff]
        %v602 = vld [vmem:[%s475 + $0xf8] sm:$0xff]
        %v603 = vld [vmem:[%s475 + $0x100] sm:$0xff]
        %v604 = vld [vmem:[%s475 + $0x108] sm:$0xff]
        %v605 = vld [vmem:[%s475 + $0x110] sm:$0xff]
        %v606 = vld [vmem:[%s475 + $0x118] sm:$0xff]
        %v607 = vld [vmem:[%s475 + $0x120] sm:$0xff]
        %v608 = vld [vmem:[%s475 + $0x128] sm:$0xff]
        %v609 = vld [vmem:[%s475 + $0x130] sm:$0xff]
        %v610 = vld [vmem:[%s475 + $0x138] sm:$0xff]
        %v611 = vld [vmem:[%s475 + $0x140] sm:$0xff]
        %v612 = vld [vmem:[%s475 + $0x148] sm:$0xff]
        %v613 = vld [vmem:[%s475 + $0x150] sm:$0xff]
        %v614 = vld [vmem:[%s475 + $0x158] sm:$0xff]
        %v615 = vld [vmem:[%s475 + $0x160] sm:$0xff]
        %v616 = vld [vmem:[%s475 + $0x168] sm:$0xff]
        %v617 = vld [vmem:[%s475 + $0x170] sm:$0xff]
        %v618 = vld [vmem:[%s475 + $0x178] sm:$0xff]
        %v619 = vld [vmem:[%s475 + $0x180] sm:$0xff]
        %v620 = vld [vmem:[%s475 + $0x188] sm:$0xff]
        %v621 = vld [vmem:[%s475 + $0x190] sm:$0xff]
        %v622 = vld [vmem:[%s475 + $0x198] sm:$0xff]
        %v623 = vld [vmem:[%s475 + $0x1a0] sm:$0xff]
        %v624 = vld [vmem:[%s475 + $0x1a8] sm:$0xff]
        %v625 = vld [vmem:[%s475 + $0x1b0] sm:$0xff]
        %v626 = vld [vmem:[%s475 + $0x1b8] sm:$0xff]
        %v627 = vld [vmem:[%s475 + $0x1c0] sm:$0xff]
        %v628 = vld [vmem:[%s475 + $0x1c8] sm:$0xff]
        %v629 = vld [vmem:[%s475 + $0x1d0] sm:$0xff]
        %v630 = vld [vmem:[%s475 + $0x1d8] sm:$0xff]
        %v631 = vld [vmem:[%s475 + $0x1e0] sm:$0xff]
        %v632 = vld [vmem:[%s475 + $0x1e8] sm:$0xff]
        %v633 = vld [vmem:[%s475 + $0x1f0] sm:$0xff]
        %v634 = vld [vmem:[%s475 + $0x1f8] sm:$0xff]
        %v635 = vld [vmem:[%s556] sm:$0xf]
        %v636 = vld [vmem:[%s556 + $0x4] sm:$0xf]
        %v637 = vld [vmem:[%s556 + $0x8] sm:$0xf]
        %v638 = vld [vmem:[%s556 + $0xc] sm:$0xf]
        %v639 = vld [vmem:[%s556 + $0x10] sm:$0xf]
        %v640 = vld [vmem:[%s556 + $0x14] sm:$0xf]
        %v641 = vld [vmem:[%s556 + $0x18] sm:$0xf]
        %v642 = vld [vmem:[%s556 + $0x1c] sm:$0xf]
        %v643 = vld [vmem:[%s556 + $0x20] sm:$0xf]
        %v644 = vld [vmem:[%s556 + $0x24] sm:$0xf]
        %v645 = vld [vmem:[%s556 + $0x28] sm:$0xf]
        %v646 = vld [vmem:[%s556 + $0x2c] sm:$0xf]
        %v647 = vld [vmem:[%s556 + $0x30] sm:$0xf]
        %v648 = vld [vmem:[%s556 + $0x34] sm:$0xf]
        %v649 = vld [vmem:[%s556 + $0x38] sm:$0xf]
        %v650 = vld [vmem:[%s556 + $0x3c] sm:$0xf]
        %v651 = vld [vmem:[%s556 + $0x40] sm:$0xf]
        %v652 = vld [vmem:[%s556 + $0x44] sm:$0xf]
        %v653 = vld [vmem:[%s556 + $0x48] sm:$0xf]
        %v654 = vld [vmem:[%s556 + $0x4c] sm:$0xf]
        %v655 = vld [vmem:[%s556 + $0x50] sm:$0xf]
        %v656 = vld [vmem:[%s556 + $0x54] sm:$0xf]
        %v657 = vld [vmem:[%s556 + $0x58] sm:$0xf]
        %v658 = vld [vmem:[%s556 + $0x5c] sm:$0xf]
        %v659 = vld [vmem:[%s556 + $0x60] sm:$0xf]
        %v660 = vld [vmem:[%s556 + $0x64] sm:$0xf]
        %v661 = vld [vmem:[%s556 + $0x68] sm:$0xf]
        %v662 = vld [vmem:[%s556 + $0x6c] sm:$0xf]
        %v663 = vld [vmem:[%s556 + $0x70] sm:$0xf]
        %v664 = vld [vmem:[%s556 + $0x74] sm:$0xf]
        %v665 = vld [vmem:[%s556 + $0x78] sm:$0xf]
        %v666 = vld [vmem:[%s556 + $0x7c] sm:$0xf]
        %v667 = vld [vmem:[%s562] sm:$0xff]
        %v668 = vld [vmem:[%s562 + $0x8] sm:$0xff]
        %v669 = vld [vmem:[%s562 + $0x10] sm:$0xff]
        %v670 = vld [vmem:[%s562 + $0x18] sm:$0xff]
        %v671 = vld [vmem:[%s562 + $0x20] sm:$0xff]
        %v672 = vld [vmem:[%s562 + $0x28] sm:$0xff]
        %v673 = vld [vmem:[%s562 + $0x30] sm:$0xff]
        %v674 = vld [vmem:[%s562 + $0x38] sm:$0xff]
        %v675 = vld [vmem:[%s562 + $0x40] sm:$0xff]
        %v676 = vld [vmem:[%s562 + $0x48] sm:$0xff]
        %v677 = vld [vmem:[%s562 + $0x50] sm:$0xff]
        %v678 = vld [vmem:[%s562 + $0x58] sm:$0xff]
        %v679 = vld [vmem:[%s562 + $0x60] sm:$0xff]
        %v680 = vld [vmem:[%s562 + $0x68] sm:$0xff]
        %v681 = vld [vmem:[%s562 + $0x70] sm:$0xff]
        %v682 = vld [vmem:[%s562 + $0x78] sm:$0xff]
        %v683 = vld [vmem:[%s562 + $0x80] sm:$0xff]
        %v684 = vld [vmem:[%s562 + $0x88] sm:$0xff]
        %v685 = vld [vmem:[%s562 + $0x90] sm:$0xff]
        %v686 = vld [vmem:[%s562 + $0x98] sm:$0xff]
        %v687 = vld [vmem:[%s562 + $0xa0] sm:$0xff]
        %v688 = vld [vmem:[%s562 + $0xa8] sm:$0xff]
        %v689 = vld [vmem:[%s562 + $0xb0] sm:$0xff]
        %v690 = vld [vmem:[%s562 + $0xb8] sm:$0xff]
        %v691 = vld [vmem:[%s562 + $0xc0] sm:$0xff]
        %v692 = vld [vmem:[%s562 + $0xc8] sm:$0xff]
        %v693 = vld [vmem:[%s562 + $0xd0] sm:$0xff]
        %v694 = vld [vmem:[%s562 + $0xd8] sm:$0xff]
        %v695 = vld [vmem:[%s562 + $0xe0] sm:$0xff]
        %v696 = vld [vmem:[%s562 + $0xe8] sm:$0xff]
        %v697 = vld [vmem:[%s562 + $0xf0] sm:$0xff]
        %v698 = vld [vmem:[%s562 + $0xf8] sm:$0xff]
        %v699 = vld [vmem:[%s567] sm:$0x3]
        %v700 = vsub.f32 1.0, %v699
        %v701 = vmul.f32 %v700, -1e+30
        %v702 = vld [vmem:[%s5] sm:$0x1]
        %v703 = vld [vmem:[%s5 + $0x1] sm:$0x1]
        %v704 = vld [vmem:[%s5 + $0x2] sm:$0x1]
        %v705 = vld [vmem:[%s5 + $0x3] sm:$0x1]
        %v706 = vld [vmem:[%s4] sm:$0xf]
        %v707 = vld [vmem:[%s4 + $0x4] sm:$0xf]
        %v708 = vld [vmem:[%s4 + $0x8] sm:$0xf]
        %v709 = vld [vmem:[%s4 + $0xc] sm:$0xf]
        %v710 = vld [vmem:[%s4 + $0x10] sm:$0xf]
        %v711 = vld [vmem:[%s4 + $0x14] sm:$0xf]
        %v712 = vld [vmem:[%s4 + $0x18] sm:$0xf]
        %v713 = vld [vmem:[%s4 + $0x1c] sm:$0xf]
        %v714 = vld [vmem:[%s4 + $0x20] sm:$0xf]
        %v715 = vld [vmem:[%s4 + $0x24] sm:$0xf]
        %v716 = vld [vmem:[%s4 + $0x28] sm:$0xf]
        %v717 = vld [vmem:[%s4 + $0x2c] sm:$0xf]
        %v718 = vld [vmem:[%s4 + $0x30] sm:$0xf]
        %v719 = vld [vmem:[%s4 + $0x34] sm:$0xf]
        %v720 = vld [vmem:[%s4 + $0x38] sm:$0xf]
        %v721 = vld [vmem:[%s4 + $0x3c] sm:$0xf]
        %v722 = vld [vmem:[%s4 + $0x40] sm:$0xf]
        %v723 = vld [vmem:[%s4 + $0x44] sm:$0xf]
        %v724 = vld [vmem:[%s4 + $0x48] sm:$0xf]
        %v725 = vld [vmem:[%s4 + $0x4c] sm:$0xf]
        %v726 = vld [vmem:[%s4 + $0x50] sm:$0xf]
        %v727 = vld [vmem:[%s4 + $0x54] sm:$0xf]
        %v728 = vld [vmem:[%s4 + $0x58] sm:$0xf]
        %v729 = vld [vmem:[%s4 + $0x5c] sm:$0xf]
        %v730 = vld [vmem:[%s4 + $0x60] sm:$0xf]
        %v731 = vld [vmem:[%s4 + $0x64] sm:$0xf]
        %v732 = vld [vmem:[%s4 + $0x68] sm:$0xf]
        %v733 = vld [vmem:[%s4 + $0x6c] sm:$0xf]
        %v734 = vld [vmem:[%s4 + $0x70] sm:$0xf]
        %v735 = vld [vmem:[%s4 + $0x74] sm:$0xf]
        %v736 = vld [vmem:[%s4 + $0x78] sm:$0xf]
        %v737 = vld [vmem:[%s4 + $0x7c] sm:$0xf]
        %v738 = vld [vmem:[%s4 + $0x80] sm:$0xf]
        %v739 = vld [vmem:[%s4 + $0x84] sm:$0xf]
        %v740 = vld [vmem:[%s4 + $0x88] sm:$0xf]
        %v741 = vld [vmem:[%s4 + $0x8c] sm:$0xf]
        %v742 = vld [vmem:[%s4 + $0x90] sm:$0xf]
        %v743 = vld [vmem:[%s4 + $0x94] sm:$0xf]
        %v744 = vld [vmem:[%s4 + $0x98] sm:$0xf]
        %v745 = vld [vmem:[%s4 + $0x9c] sm:$0xf]
        %v746 = vld [vmem:[%s4 + $0xa0] sm:$0xf]
        %v747 = vld [vmem:[%s4 + $0xa4] sm:$0xf]
        %v748 = vld [vmem:[%s4 + $0xa8] sm:$0xf]
        %v749 = vld [vmem:[%s4 + $0xac] sm:$0xf]
        %v750 = vld [vmem:[%s4 + $0xb0] sm:$0xf]
        %v751 = vld [vmem:[%s4 + $0xb4] sm:$0xf]
        %v752 = vld [vmem:[%s4 + $0xb8] sm:$0xf]
        %v753 = vld [vmem:[%s4 + $0xbc] sm:$0xf]
        %v754 = vld [vmem:[%s4 + $0xc0] sm:$0xf]
        %v755 = vld [vmem:[%s4 + $0xc4] sm:$0xf]
        %v756 = vld [vmem:[%s4 + $0xc8] sm:$0xf]
        %v757 = vld [vmem:[%s4 + $0xcc] sm:$0xf]
        %v758 = vld [vmem:[%s4 + $0xd0] sm:$0xf]
        %v759 = vld [vmem:[%s4 + $0xd4] sm:$0xf]
        %v760 = vld [vmem:[%s4 + $0xd8] sm:$0xf]
        %v761 = vld [vmem:[%s4 + $0xdc] sm:$0xf]
        %v762 = vld [vmem:[%s4 + $0xe0] sm:$0xf]
        %v763 = vld [vmem:[%s4 + $0xe4] sm:$0xf]
        %v764 = vld [vmem:[%s4 + $0xe8] sm:$0xf]
        %v765 = vld [vmem:[%s4 + $0xec] sm:$0xf]
        %v766 = vld [vmem:[%s4 + $0xf0] sm:$0xf]
        %v767 = vld [vmem:[%s4 + $0xf4] sm:$0xf]
        %v768 = vld [vmem:[%s4 + $0xf8] sm:$0xf]
        %v769 = vld [vmem:[%s4 + $0xfc] sm:$0xf]
        %v770 = vlaneseq
        %v771 = vshrl.u32 %v770, 7
        %v772 = vsub.s32 0, %v771
        %v773 = vrot.slane %v702, %v772
        %v838 = vunpack.c.l.b16 %v571
        %v839 = vunpack.c.h.b16 %v571
        %v840 = vunpack.c.l.b16 %v572
        %v841 = vunpack.c.h.b16 %v572
        %v842 = vunpack.c.l.b16 %v573
        %v843 = vunpack.c.h.b16 %v573
        %v844 = vunpack.c.l.b16 %v574
        %v845 = vunpack.c.h.b16 %v574
        %v846 = vunpack.c.l.b16 %v575
        %v847 = vunpack.c.h.b16 %v575
        %v848 = vunpack.c.l.b16 %v576
        %v849 = vunpack.c.h.b16 %v576
        %v850 = vunpack.c.l.b16 %v577
        %v851 = vunpack.c.h.b16 %v577
        %v852 = vunpack.c.l.b16 %v578
        %v853 = vunpack.c.h.b16 %v578
        %v854 = vunpack.c.l.b16 %v579
        %v855 = vunpack.c.h.b16 %v579
        %v856 = vunpack.c.l.b16 %v580
        %v857 = vunpack.c.h.b16 %v580
        %v858 = vunpack.c.l.b16 %v581
        %v859 = vunpack.c.h.b16 %v581
        %v860 = vunpack.c.l.b16 %v582
        %v861 = vunpack.c.h.b16 %v582
        %v862 = vunpack.c.l.b16 %v583
        %v863 = vunpack.c.h.b16 %v583
        %v864 = vunpack.c.l.b16 %v584
        %v865 = vunpack.c.h.b16 %v584
        %v866 = vunpack.c.l.b16 %v585
        %v867 = vunpack.c.h.b16 %v585
        %v868 = vunpack.c.l.b16 %v586
        %v869 = vunpack.c.h.b16 %v586
        %v870 = vunpack.c.l.b16 %v587
        %v871 = vunpack.c.h.b16 %v587
        %v872 = vunpack.c.l.b16 %v588
        %v873 = vunpack.c.h.b16 %v588
        %v874 = vunpack.c.l.b16 %v589
        %v875 = vunpack.c.h.b16 %v589
        %v876 = vunpack.c.l.b16 %v590
        %v877 = vunpack.c.h.b16 %v590
        %v878 = vunpack.c.l.b16 %v591
        %v879 = vunpack.c.h.b16 %v591
        %v880 = vunpack.c.l.b16 %v592
        %v881 = vunpack.c.h.b16 %v592
        %v882 = vunpack.c.l.b16 %v593
        %v883 = vunpack.c.h.b16 %v593
        %v884 = vunpack.c.l.b16 %v594
        %v885 = vunpack.c.h.b16 %v594
        %v886 = vunpack.c.l.b16 %v595
        %v887 = vunpack.c.h.b16 %v595
        %v888 = vunpack.c.l.b16 %v596
        %v889 = vunpack.c.h.b16 %v596
        %v890 = vunpack.c.l.b16 %v597
        %v891 = vunpack.c.h.b16 %v597
        %v892 = vunpack.c.l.b16 %v598
        %v893 = vunpack.c.h.b16 %v598
        %v894 = vunpack.c.l.b16 %v599
        %v895 = vunpack.c.h.b16 %v599
        %v896 = vunpack.c.l.b16 %v600
        %v897 = vunpack.c.h.b16 %v600
        %v898 = vunpack.c.l.b16 %v601
        %v899 = vunpack.c.h.b16 %v601
        %v900 = vunpack.c.l.b16 %v602
        %v901 = vunpack.c.h.b16 %v602
        %v902 = vunpack.c.l.b16 %v603
        %v903 = vunpack.c.h.b16 %v603
        %v904 = vunpack.c.l.b16 %v604
        %v905 = vunpack.c.h.b16 %v604
        %v906 = vunpack.c.l.b16 %v605
        %v907 = vunpack.c.h.b16 %v605
        %v908 = vunpack.c.l.b16 %v606
        %v909 = vunpack.c.h.b16 %v606
        %v910 = vunpack.c.l.b16 %v607
        %v911 = vunpack.c.h.b16 %v607
        %v912 = vunpack.c.l.b16 %v608
        %v913 = vunpack.c.h.b16 %v608
        %v914 = vunpack.c.l.b16 %v609
        %v915 = vunpack.c.h.b16 %v609
        %v916 = vunpack.c.l.b16 %v610
        %v917 = vunpack.c.h.b16 %v610
        %v918 = vunpack.c.l.b16 %v611
        %v919 = vunpack.c.h.b16 %v611
        %v920 = vunpack.c.l.b16 %v612
        %v921 = vunpack.c.h.b16 %v612
        %v922 = vunpack.c.l.b16 %v613
        %v923 = vunpack.c.h.b16 %v613
        %v924 = vunpack.c.l.b16 %v614
        %v925 = vunpack.c.h.b16 %v614
        %v926 = vunpack.c.l.b16 %v615
        %v927 = vunpack.c.h.b16 %v615
        %v928 = vunpack.c.l.b16 %v616
        %v929 = vunpack.c.h.b16 %v616
        %v930 = vunpack.c.l.b16 %v617
        %v931 = vunpack.c.h.b16 %v617
        %v932 = vunpack.c.l.b16 %v618
        %v933 = vunpack.c.h.b16 %v618
        %v934 = vunpack.c.l.b16 %v619
        %v935 = vunpack.c.h.b16 %v619
        %v936 = vunpack.c.l.b16 %v620
        %v937 = vunpack.c.h.b16 %v620
        %v938 = vunpack.c.l.b16 %v621
        %v939 = vunpack.c.h.b16 %v621
        %v940 = vunpack.c.l.b16 %v622
        %v941 = vunpack.c.h.b16 %v622
        %v942 = vunpack.c.l.b16 %v623
        %v943 = vunpack.c.h.b16 %v623
        %v944 = vunpack.c.l.b16 %v624
        %v945 = vunpack.c.h.b16 %v624
        %v946 = vunpack.c.l.b16 %v625
        %v947 = vunpack.c.h.b16 %v625
        %v948 = vunpack.c.l.b16 %v626
        %v949 = vunpack.c.h.b16 %v626
        %v950 = vunpack.c.l.b16 %v627
        %v951 = vunpack.c.h.b16 %v627
        %v952 = vunpack.c.l.b16 %v628
        %v953 = vunpack.c.h.b16 %v628
        %v954 = vunpack.c.l.b16 %v629
        %v955 = vunpack.c.h.b16 %v629
        %v956 = vunpack.c.l.b16 %v630
        %v957 = vunpack.c.h.b16 %v630
        %v958 = vunpack.c.l.b16 %v631
        %v959 = vunpack.c.h.b16 %v631
        %v960 = vunpack.c.l.b16 %v632
        %v961 = vunpack.c.h.b16 %v632
        %v962 = vunpack.c.l.b16 %v633
        %v963 = vunpack.c.h.b16 %v633
        %v964 = vunpack.c.l.b16 %v634
        %v965 = vunpack.c.h.b16 %v634
        %v966 = vpack.c.b16 %v842, %v838
        %v967 = vpack.c.b16 %v843, %v839
        %v968 = vpack.c.b16 %v844, %v840
        %v969 = vpack.c.b16 %v845, %v841
        %v970 = vpack.c.b16 %v850, %v846
        %v971 = vpack.c.b16 %v851, %v847
        %v972 = vpack.c.b16 %v852, %v848
        %v973 = vpack.c.b16 %v853, %v849
        %v974 = vpack.c.b16 %v858, %v854
        %v975 = vpack.c.b16 %v859, %v855
        %v976 = vpack.c.b16 %v860, %v856
        %v977 = vpack.c.b16 %v861, %v857
        %v978 = vpack.c.b16 %v866, %v862
        %v979 = vpack.c.b16 %v867, %v863
        %v980 = vpack.c.b16 %v868, %v864
        %v981 = vpack.c.b16 %v869, %v865
        %v982 = vpack.c.b16 %v874, %v870
        %v983 = vpack.c.b16 %v875, %v871
        %v984 = vpack.c.b16 %v876, %v872
        %v985 = vpack.c.b16 %v877, %v873
        %v986 = vpack.c.b16 %v882, %v878
        %v987 = vpack.c.b16 %v883, %v879
        %v988 = vpack.c.b16 %v884, %v880
        %v989 = vpack.c.b16 %v885, %v881
        %v990 = vpack.c.b16 %v890, %v886
        %v991 = vpack.c.b16 %v891, %v887
        %v992 = vpack.c.b16 %v892, %v888
        %v993 = vpack.c.b16 %v893, %v889
        %v994 = vpack.c.b16 %v898, %v894
        %v995 = vpack.c.b16 %v899, %v895
        %v996 = vpack.c.b16 %v900, %v896
        %v997 = vpack.c.b16 %v901, %v897
        %v998 = vpack.c.b16 %v906, %v902
        %v999 = vpack.c.b16 %v907, %v903
        %v1000 = vpack.c.b16 %v908, %v904
        %v1001 = vpack.c.b16 %v909, %v905
        %v1002 = vpack.c.b16 %v914, %v910
        %v1003 = vpack.c.b16 %v915, %v911
        %v1004 = vpack.c.b16 %v916, %v912
        %v1005 = vpack.c.b16 %v917, %v913
        %v1006 = vpack.c.b16 %v922, %v918
        %v1007 = vpack.c.b16 %v923, %v919
        %v1008 = vpack.c.b16 %v924, %v920
        %v1009 = vpack.c.b16 %v925, %v921
        %v1010 = vpack.c.b16 %v930, %v926
        %v1011 = vpack.c.b16 %v931, %v927
        %v1012 = vpack.c.b16 %v932, %v928
        %v1013 = vpack.c.b16 %v933, %v929
        %v1014 = vpack.c.b16 %v938, %v934
        %v1015 = vpack.c.b16 %v939, %v935
        %v1016 = vpack.c.b16 %v940, %v936
        %v1017 = vpack.c.b16 %v941, %v937
        %v1018 = vpack.c.b16 %v946, %v942
        %v1019 = vpack.c.b16 %v947, %v943
        %v1020 = vpack.c.b16 %v948, %v944
        %v1021 = vpack.c.b16 %v949, %v945
        %v1022 = vpack.c.b16 %v954, %v950
        %v1023 = vpack.c.b16 %v955, %v951
        %v1024 = vpack.c.b16 %v956, %v952
        %v1025 = vpack.c.b16 %v957, %v953
        %v1026 = vpack.c.b16 %v962, %v958
        %v1027 = vpack.c.b16 %v963, %v959
        %v1028 = vpack.c.b16 %v964, %v960
        %v1029 = vpack.c.b16 %v965, %v961
        %v1158 = vunpack.c.l.b16 %v706
        %v1159 = vunpack.c.l.b16 %v707
        %v1160 = vunpack.c.l.b16 %v708
        %v1161 = vunpack.c.l.b16 %v709
        %v1162 = vunpack.c.l.b16 %v710
        %v1163 = vunpack.c.l.b16 %v711
        %v1164 = vunpack.c.l.b16 %v712
        %v1165 = vunpack.c.l.b16 %v713
        %v1166 = vunpack.c.l.b16 %v714
        %v1167 = vunpack.c.l.b16 %v715
        %v1168 = vunpack.c.l.b16 %v716
        %v1169 = vunpack.c.l.b16 %v717
        %v1170 = vunpack.c.l.b16 %v718
        %v1171 = vunpack.c.l.b16 %v719
        %v1172 = vunpack.c.l.b16 %v720
        %v1173 = vunpack.c.l.b16 %v721
        %v1174 = vunpack.c.l.b16 %v722
        %v1175 = vunpack.c.l.b16 %v723
        %v1176 = vunpack.c.l.b16 %v724
        %v1177 = vunpack.c.l.b16 %v725
        %v1178 = vunpack.c.l.b16 %v726
        %v1179 = vunpack.c.l.b16 %v727
        %v1180 = vunpack.c.l.b16 %v728
        %v1181 = vunpack.c.l.b16 %v729
        %v1182 = vunpack.c.l.b16 %v730
        %v1183 = vunpack.c.l.b16 %v731
        %v1184 = vunpack.c.l.b16 %v732
        %v1185 = vunpack.c.l.b16 %v733
        %v1186 = vunpack.c.l.b16 %v734
        %v1187 = vunpack.c.l.b16 %v735
        %v1188 = vunpack.c.l.b16 %v736
        %v1189 = vunpack.c.l.b16 %v737
        %v1190 = vunpack.c.l.b16 %v738
        %v1191 = vunpack.c.l.b16 %v739
        %v1192 = vunpack.c.l.b16 %v740
        %v1193 = vunpack.c.l.b16 %v741
        %v1194 = vunpack.c.l.b16 %v742
        %v1195 = vunpack.c.l.b16 %v743
        %v1196 = vunpack.c.l.b16 %v744
        %v1197 = vunpack.c.l.b16 %v745
        %v1198 = vunpack.c.l.b16 %v746
        %v1199 = vunpack.c.l.b16 %v747
        %v1200 = vunpack.c.l.b16 %v748
        %v1201 = vunpack.c.l.b16 %v749
        %v1202 = vunpack.c.l.b16 %v750
        %v1203 = vunpack.c.l.b16 %v751
        %v1204 = vunpack.c.l.b16 %v752
        %v1205 = vunpack.c.l.b16 %v753
        %v1206 = vunpack.c.l.b16 %v754
        %v1207 = vunpack.c.l.b16 %v755
        %v1208 = vunpack.c.l.b16 %v756
        %v1209 = vunpack.c.l.b16 %v757
        %v1210 = vunpack.c.l.b16 %v758
        %v1211 = vunpack.c.l.b16 %v759
        %v1212 = vunpack.c.l.b16 %v760
        %v1213 = vunpack.c.l.b16 %v761
        %v1214 = vunpack.c.l.b16 %v762
        %v1215 = vunpack.c.l.b16 %v763
        %v1216 = vunpack.c.l.b16 %v764
        %v1217 = vunpack.c.l.b16 %v765
        %v1218 = vunpack.c.l.b16 %v766
        %v1219 = vunpack.c.l.b16 %v767
        %v1220 = vunpack.c.l.b16 %v768
        %v1221 = vunpack.c.l.b16 %v769
        %v1222 = vpack.c.b16 %v1159, %v1158
        %v1223 = vpack.c.b16 %v1161, %v1160
        %v1224 = vpack.c.b16 %v1163, %v1162
        %v1225 = vpack.c.b16 %v1165, %v1164
        %v1226 = vpack.c.b16 %v1167, %v1166
        %v1227 = vpack.c.b16 %v1169, %v1168
        %v1228 = vpack.c.b16 %v1171, %v1170
        %v1229 = vpack.c.b16 %v1173, %v1172
        %v1230 = vpack.c.b16 %v1175, %v1174
        %v1231 = vpack.c.b16 %v1177, %v1176
        %v1232 = vpack.c.b16 %v1179, %v1178
        %v1233 = vpack.c.b16 %v1181, %v1180
        %v1234 = vpack.c.b16 %v1183, %v1182
        %v1235 = vpack.c.b16 %v1185, %v1184
        %v1236 = vpack.c.b16 %v1187, %v1186
        %v1237 = vpack.c.b16 %v1189, %v1188
        %v1238 = vpack.c.b16 %v1191, %v1190
        %v1239 = vpack.c.b16 %v1193, %v1192
        %v1240 = vpack.c.b16 %v1195, %v1194
        %v1241 = vpack.c.b16 %v1197, %v1196
        %v1242 = vpack.c.b16 %v1199, %v1198
        %v1243 = vpack.c.b16 %v1201, %v1200
        %v1244 = vpack.c.b16 %v1203, %v1202
        %v1245 = vpack.c.b16 %v1205, %v1204
        %v1246 = vpack.c.b16 %v1207, %v1206
        %v1247 = vpack.c.b16 %v1209, %v1208
        %v1248 = vpack.c.b16 %v1211, %v1210
        %v1249 = vpack.c.b16 %v1213, %v1212
        %v1250 = vpack.c.b16 %v1215, %v1214
        %v1251 = vpack.c.b16 %v1217, %v1216
        %v1252 = vpack.c.b16 %v1219, %v1218
        %v1253 = vpack.c.b16 %v1221, %v1220
        %1286 = vmatprep.subr.bf16.mxu0 0
        %1287 = vmatpush1.bf16.msra.mxu0 %v1229
        %1288 = vmatprep.subr.bf16.mxu0 0
        %1289 = vmatpush1.bf16.msra.mxu0 %v1228
        %1290 = vmatprep.subr.bf16.mxu0 0
        %1291 = vmatpush1.bf16.msra.mxu0 %v1227
        %1292 = vmatprep.subr.bf16.mxu0 0
        %1293 = vmatpush1.bf16.msra.mxu0 %v1226
        %1294 = vmatprep.subr.bf16.mxu0 0
        %1295 = vmatpush1.bf16.msra.mxu0 %v1225
        %1296 = vmatprep.subr.bf16.mxu0 0
        %1297 = vmatpush1.bf16.msra.mxu0 %v1224
        %1298 = vmatprep.subr.bf16.mxu0 0
        %1299 = vmatpush1.bf16.msra.mxu0 %v1223
        %1300 = vmatprep.subr.bf16.mxu0 0
        %1301 = vmatpush1.bf16.msra.mxu0 %v1222
        %1302 = vmatprep.subr.bf16.mxu0 0
        %1303 = vmatpush2.bf16.msra.mxu0 %v1237
        %1304 = vmatprep.subr.bf16.mxu0 0
        %1305 = vmatpush2.bf16.msra.mxu0 %v1236
        %1306 = vmatprep.subr.bf16.mxu0 0
        %1307 = vmatpush2.bf16.msra.mxu0 %v1235
        %1308 = vmatprep.subr.bf16.mxu0 0
        %1309 = vmatpush2.bf16.msra.mxu0 %v1234
        %1310 = vmatprep.subr.bf16.mxu0 0
        %1311 = vmatpush2.bf16.msra.mxu0 %v1233
        %1312 = vmatprep.subr.bf16.mxu0 0
        %1313 = vmatpush2.bf16.msra.mxu0 %v1232
        %1314 = vmatprep.subr.bf16.mxu0 0
        %1315 = vmatpush2.bf16.msra.mxu0 %v1231
        %1316 = vmatprep.subr.bf16.mxu0 0
        %1317 = vmatpush2.bf16.msra.mxu0 %v1230
        %1318 = vmatprep.mubr.bf16.mxu0 %v967
        %1319 = vmatmul.mubr.bf16.gmra.mxu0 %v966
        %v1320 = vpop.f32.mrf.mxu0
        %v1321 = vadd.f32 %v773, %v1320
        %v1322 = vpop.f32.mrf.mxu0
        %v1323 = vpop.f32.mrf.mxu0
        %v1324 = vadd.f32 %v773, %v1323
        %v1325 = vpop.f32.mrf.mxu0
        %1326 = vmatprep.mubr.bf16.mxu0 %v971
        %1327 = vmatmul.mubr.bf16.gmra.mxu0 %v970
        %v1328 = vpop.f32.mrf.mxu0
        %v1329 = vadd.f32 %v773, %v1328
        %v1330 = vpop.f32.mrf.mxu0
        %v1331 = vpop.f32.mrf.mxu0
        %v1332 = vadd.f32 %v773, %v1331
        %v1333 = vpop.f32.mrf.mxu0
        %1334 = vmatprep.mubr.bf16.mxu0 %v975
        %1335 = vmatmul.mubr.bf16.gmra.mxu0 %v974
        %v1336 = vpop.f32.mrf.mxu0
        %v1337 = vadd.f32 %v773, %v1336
        %v1338 = vpop.f32.mrf.mxu0
        %v1339 = vpop.f32.mrf.mxu0
        %v1340 = vadd.f32 %v773, %v1339
        %v1341 = vpop.f32.mrf.mxu0
        %1342 = vmatprep.mubr.bf16.mxu0 %v979
        %1343 = vmatmul.mubr.bf16.gmra.mxu0 %v978
        %v1344 = vpop.f32.mrf.mxu0
        %v1345 = vadd.f32 %v773, %v1344
        %v1346 = vpop.f32.mrf.mxu0
        %v1347 = vpop.f32.mrf.mxu0
        %v1348 = vadd.f32 %v773, %v1347
        %v1349 = vpop.f32.mrf.mxu0
        %1350 = vmatprep.mubr.bf16.mxu0 %v983
        %1351 = vmatmul.mubr.bf16.gmra.mxu0 %v982
        %v1352 = vpop.f32.mrf.mxu0
        %v1353 = vadd.f32 %v773, %v1352
        %v1354 = vpop.f32.mrf.mxu0
        %v1355 = vpop.f32.mrf.mxu0
        %v1356 = vadd.f32 %v773, %v1355
        %v1357 = vpop.f32.mrf.mxu0
        %1358 = vmatprep.mubr.bf16.mxu0 %v987
        %1359 = vmatmul.mubr.bf16.gmra.mxu0 %v986
        %v1360 = vpop.f32.mrf.mxu0
        %v1361 = vadd.f32 %v773, %v1360
        %v1362 = vpop.f32.mrf.mxu0
        %v1363 = vpop.f32.mrf.mxu0
        %v1364 = vadd.f32 %v773, %v1363
        %v1365 = vpop.f32.mrf.mxu0
        %1366 = vmatprep.mubr.bf16.mxu0 %v991
        %1367 = vmatmul.mubr.bf16.gmra.mxu0 %v990
        %v1368 = vpop.f32.mrf.mxu0
        %v1369 = vadd.f32 %v773, %v1368
        %v1370 = vpop.f32.mrf.mxu0
        %v1371 = vpop.f32.mrf.mxu0
        %v1372 = vadd.f32 %v773, %v1371
        %v1373 = vpop.f32.mrf.mxu0
        %1374 = vmatprep.mubr.bf16.mxu0 %v995
        %1375 = vmatmul.mubr.bf16.gmra.mxu0 %v994
        %v1376 = vpop.f32.mrf.mxu0
        %v1377 = vadd.f32 %v773, %v1376
        %v1378 = vpop.f32.mrf.mxu0
        %v1379 = vpop.f32.mrf.mxu0
        %v1380 = vadd.f32 %v773, %v1379
        %v1381 = vpop.f32.mrf.mxu0
        %1382 = vmatprep.mubr.bf16.mxu0 %v999
        %1383 = vmatmul.mubr.bf16.gmra.mxu0 %v998
        %v1384 = vpop.f32.mrf.mxu0
        %v1385 = vadd.f32 %v773, %v1384
        %v1386 = vpop.f32.mrf.mxu0
        %v1387 = vpop.f32.mrf.mxu0
        %v1388 = vadd.f32 %v773, %v1387
        %v1389 = vpop.f32.mrf.mxu0
        %1390 = vmatprep.mubr.bf16.mxu0 %v1003
        %1391 = vmatmul.mubr.bf16.gmra.mxu0 %v1002
        %v1392 = vpop.f32.mrf.mxu0
        %v1393 = vadd.f32 %v773, %v1392
        %v1394 = vpop.f32.mrf.mxu0
        %v1395 = vpop.f32.mrf.mxu0
        %v1396 = vadd.f32 %v773, %v1395
        %v1397 = vpop.f32.mrf.mxu0
        %1398 = vmatprep.mubr.bf16.mxu0 %v1007
        %1399 = vmatmul.mubr.bf16.gmra.mxu0 %v1006
        %v1400 = vpop.f32.mrf.mxu0
        %v1401 = vadd.f32 %v773, %v1400
        %v1402 = vpop.f32.mrf.mxu0
        %v1403 = vpop.f32.mrf.mxu0
        %v1404 = vadd.f32 %v773, %v1403
        %v1405 = vpop.f32.mrf.mxu0
        %1406 = vmatprep.mubr.bf16.mxu0 %v1011
        %1407 = vmatmul.mubr.bf16.gmra.mxu0 %v1010
        %v1408 = vpop.f32.mrf.mxu0
        %v1409 = vadd.f32 %v773, %v1408
        %v1410 = vpop.f32.mrf.mxu0
        %v1411 = vpop.f32.mrf.mxu0
        %v1412 = vadd.f32 %v773, %v1411
        %v1413 = vpop.f32.mrf.mxu0
        %1414 = vmatprep.mubr.bf16.mxu0 %v1015
        %1415 = vmatmul.mubr.bf16.gmra.mxu0 %v1014
        %v1416 = vpop.f32.mrf.mxu0
        %v1417 = vadd.f32 %v773, %v1416
        %v1418 = vpop.f32.mrf.mxu0
        %v1419 = vpop.f32.mrf.mxu0
        %v1420 = vadd.f32 %v773, %v1419
        %v1421 = vpop.f32.mrf.mxu0
        %1422 = vmatprep.mubr.bf16.mxu0 %v1019
        %1423 = vmatmul.mubr.bf16.gmra.mxu0 %v1018
        %v1424 = vpop.f32.mrf.mxu0
        %v1425 = vadd.f32 %v773, %v1424
        %v1426 = vpop.f32.mrf.mxu0
        %v1427 = vpop.f32.mrf.mxu0
        %v1428 = vadd.f32 %v773, %v1427
        %v1429 = vpop.f32.mrf.mxu0
        %1430 = vmatprep.mubr.bf16.mxu0 %v1023
        %1431 = vmatmul.mubr.bf16.gmra.mxu0 %v1022
        %v1432 = vpop.f32.mrf.mxu0
        %v1433 = vadd.f32 %v773, %v1432
        %v1434 = vpop.f32.mrf.mxu0
        %v1435 = vpop.f32.mrf.mxu0
        %v1436 = vadd.f32 %v773, %v1435
        %v1437 = vpop.f32.mrf.mxu0
        %1438 = vmatprep.mubr.bf16.mxu0 %v1027
        %1439 = vmatmul.mubr.bf16.gmra.mxu0 %v1026
        %v1440 = vpop.f32.mrf.mxu0
        %v1441 = vadd.f32 %v773, %v1440
        %v1442 = vpop.f32.mrf.mxu0
        %v1443 = vpop.f32.mrf.mxu0
        %v1444 = vadd.f32 %v773, %v1443
        %v1445 = vpop.f32.mrf.mxu0
        %1446 = vdwg.mxu0
        %1447 = vmatprep.subr.bf16.mxu0 0
        %1448 = vmatpush1.bf16.msra.mxu0 %v1245
        %1449 = vmatprep.subr.bf16.mxu0 0
        %1450 = vmatpush1.bf16.msra.mxu0 %v1244
        %1451 = vmatprep.subr.bf16.mxu0 0
        %1452 = vmatpush1.bf16.msra.mxu0 %v1243
        %1453 = vmatprep.subr.bf16.mxu0 0
        %1454 = vmatpush1.bf16.msra.mxu0 %v1242
        %1455 = vmatprep.subr.bf16.mxu0 0
        %1456 = vmatpush1.bf16.msra.mxu0 %v1241
        %1457 = vmatprep.subr.bf16.mxu0 0
        %1458 = vmatpush1.bf16.msra.mxu0 %v1240
        %1459 = vmatprep.subr.bf16.mxu0 0
        %1460 = vmatpush1.bf16.msra.mxu0 %v1239
        %1461 = vmatprep.subr.bf16.mxu0 0
        %1462 = vmatpush1.bf16.msra.mxu0 %v1238
        %1463 = vmatprep.subr.bf16.mxu0 0
        %1464 = vmatpush2.bf16.msra.mxu0 %v1253
        %1465 = vmatprep.subr.bf16.mxu0 0
        %1466 = vmatpush2.bf16.msra.mxu0 %v1252
        %1467 = vmatprep.subr.bf16.mxu0 0
        %1468 = vmatpush2.bf16.msra.mxu0 %v1251
        %1469 = vmatprep.subr.bf16.mxu0 0
        %1470 = vmatpush2.bf16.msra.mxu0 %v1250
        %1471 = vmatprep.subr.bf16.mxu0 0
        %1472 = vmatpush2.bf16.msra.mxu0 %v1249
        %1473 = vmatprep.subr.bf16.mxu0 0
        %1474 = vmatpush2.bf16.msra.mxu0 %v1248
        %1475 = vmatprep.subr.bf16.mxu0 0
        %1476 = vmatpush2.bf16.msra.mxu0 %v1247
        %1477 = vmatprep.subr.bf16.mxu0 0
        %1478 = vmatpush2.bf16.msra.mxu0 %v1246
        %1479 = vmatprep.mubr.bf16.mxu0 %v969
        %1480 = vmatmul.mubr.bf16.gmra.mxu0 %v968
        %v1481 = vpop.f32.mrf.mxu0
        %v1482 = vadd.f32 %v1321, %v1481
        %v1483 = vpop.f32.mrf.mxu0
        %v1484 = vpop.f32.mrf.mxu0
        %v1485 = vadd.f32 %v1324, %v1484
        %v1486 = vpop.f32.mrf.mxu0
        %1487 = vmatprep.mubr.bf16.mxu0 %v973
        %1488 = vmatmul.mubr.bf16.gmra.mxu0 %v972
        %v1489 = vpop.f32.mrf.mxu0
        %v1490 = vadd.f32 %v1329, %v1489
        %v1491 = vpop.f32.mrf.mxu0
        %v1492 = vpop.f32.mrf.mxu0
        %v1493 = vadd.f32 %v1332, %v1492
        %v1494 = vpop.f32.mrf.mxu0
        %1495 = vmatprep.mubr.bf16.mxu0 %v977
        %1496 = vmatmul.mubr.bf16.gmra.mxu0 %v976
        %v1497 = vpop.f32.mrf.mxu0
        %v1498 = vadd.f32 %v1337, %v1497
        %v1499 = vpop.f32.mrf.mxu0
        %v1500 = vpop.f32.mrf.mxu0
        %v1501 = vadd.f32 %v1340, %v1500
        %v1502 = vpop.f32.mrf.mxu0
        %1503 = vmatprep.mubr.bf16.mxu0 %v981
        %1504 = vmatmul.mubr.bf16.gmra.mxu0 %v980
        %v1505 = vpop.f32.mrf.mxu0
        %v1506 = vadd.f32 %v1345, %v1505
        %v1507 = vpop.f32.mrf.mxu0
        %v1508 = vpop.f32.mrf.mxu0
        %v1509 = vadd.f32 %v1348, %v1508
        %v1510 = vpop.f32.mrf.mxu0
        %1511 = vmatprep.mubr.bf16.mxu0 %v985
        %1512 = vmatmul.mubr.bf16.gmra.mxu0 %v984
        %v1513 = vpop.f32.mrf.mxu0
        %v1514 = vadd.f32 %v1353, %v1513
        %v1515 = vpop.f32.mrf.mxu0
        %v1516 = vpop.f32.mrf.mxu0
        %v1517 = vadd.f32 %v1356, %v1516
        %v1518 = vpop.f32.mrf.mxu0
        %1519 = vmatprep.mubr.bf16.mxu0 %v989
        %1520 = vmatmul.mubr.bf16.gmra.mxu0 %v988
        %v1521 = vpop.f32.mrf.mxu0
        %v1522 = vadd.f32 %v1361, %v1521
        %v1523 = vpop.f32.mrf.mxu0
        %v1524 = vpop.f32.mrf.mxu0
        %v1525 = vadd.f32 %v1364, %v1524
        %v1526 = vpop.f32.mrf.mxu0
        %1527 = vmatprep.mubr.bf16.mxu0 %v993
        %1528 = vmatmul.mubr.bf16.gmra.mxu0 %v992
        %v1529 = vpop.f32.mrf.mxu0
        %v1530 = vadd.f32 %v1369, %v1529
        %v1531 = vpop.f32.mrf.mxu0
        %v1532 = vpop.f32.mrf.mxu0
        %v1533 = vadd.f32 %v1372, %v1532
        %v1534 = vpop.f32.mrf.mxu0
        %1535 = vmatprep.mubr.bf16.mxu0 %v997
        %1536 = vmatmul.mubr.bf16.gmra.mxu0 %v996
        %v1537 = vpop.f32.mrf.mxu0
        %v1538 = vadd.f32 %v1377, %v1537
        %v1539 = vpop.f32.mrf.mxu0
        %v1540 = vpop.f32.mrf.mxu0
        %v1541 = vadd.f32 %v1380, %v1540
        %v1542 = vpop.f32.mrf.mxu0
        %1543 = vmatprep.mubr.bf16.mxu0 %v1001
        %1544 = vmatmul.mubr.bf16.gmra.mxu0 %v1000
        %v1545 = vpop.f32.mrf.mxu0
        %v1546 = vadd.f32 %v1385, %v1545
        %v1547 = vpop.f32.mrf.mxu0
        %v1548 = vpop.f32.mrf.mxu0
        %v1549 = vadd.f32 %v1388, %v1548
        %v1550 = vpop.f32.mrf.mxu0
        %1551 = vmatprep.mubr.bf16.mxu0 %v1005
        %1552 = vmatmul.mubr.bf16.gmra.mxu0 %v1004
        %v1553 = vpop.f32.mrf.mxu0
        %v1554 = vadd.f32 %v1393, %v1553
        %v1555 = vpop.f32.mrf.mxu0
        %v1556 = vpop.f32.mrf.mxu0
        %v1557 = vadd.f32 %v1396, %v1556
        %v1558 = vpop.f32.mrf.mxu0
        %1559 = vmatprep.mubr.bf16.mxu0 %v1009
        %1560 = vmatmul.mubr.bf16.gmra.mxu0 %v1008
        %v1561 = vpop.f32.mrf.mxu0
        %v1562 = vadd.f32 %v1401, %v1561
        %v1563 = vpop.f32.mrf.mxu0
        %v1564 = vpop.f32.mrf.mxu0
        %v1565 = vadd.f32 %v1404, %v1564
        %v1566 = vpop.f32.mrf.mxu0
        %1567 = vmatprep.mubr.bf16.mxu0 %v1013
        %1568 = vmatmul.mubr.bf16.gmra.mxu0 %v1012
        %v1569 = vpop.f32.mrf.mxu0
        %v1570 = vadd.f32 %v1409, %v1569
        %v1571 = vpop.f32.mrf.mxu0
        %v1572 = vpop.f32.mrf.mxu0
        %v1573 = vadd.f32 %v1412, %v1572
        %v1574 = vpop.f32.mrf.mxu0
        %1575 = vmatprep.mubr.bf16.mxu0 %v1017
        %1576 = vmatmul.mubr.bf16.gmra.mxu0 %v1016
        %v1577 = vpop.f32.mrf.mxu0
        %v1578 = vadd.f32 %v1417, %v1577
        %v1579 = vpop.f32.mrf.mxu0
        %v1580 = vpop.f32.mrf.mxu0
        %v1581 = vadd.f32 %v1420, %v1580
        %v1582 = vpop.f32.mrf.mxu0
        %1583 = vmatprep.mubr.bf16.mxu0 %v1021
        %1584 = vmatmul.mubr.bf16.gmra.mxu0 %v1020
        %v1585 = vpop.f32.mrf.mxu0
        %v1586 = vadd.f32 %v1425, %v1585
        %v1587 = vpop.f32.mrf.mxu0
        %v1588 = vpop.f32.mrf.mxu0
        %v1589 = vadd.f32 %v1428, %v1588
        %v1590 = vpop.f32.mrf.mxu0
        %1591 = vmatprep.mubr.bf16.mxu0 %v1025
        %1592 = vmatmul.mubr.bf16.gmra.mxu0 %v1024
        %v1593 = vpop.f32.mrf.mxu0
        %v1594 = vadd.f32 %v1433, %v1593
        %v1595 = vpop.f32.mrf.mxu0
        %v1596 = vpop.f32.mrf.mxu0
        %v1597 = vadd.f32 %v1436, %v1596
        %v1598 = vpop.f32.mrf.mxu0
        %1599 = vmatprep.mubr.bf16.mxu0 %v1029
        %1600 = vmatmul.mubr.bf16.gmra.mxu0 %v1028
        %v1601 = vpop.f32.mrf.mxu0
        %v1602 = vadd.f32 %v1441, %v1601
        %v1603 = vpop.f32.mrf.mxu0
        %v1604 = vpop.f32.mrf.mxu0
        %v1605 = vadd.f32 %v1444, %v1604
        %v1606 = vpop.f32.mrf.mxu0
        %1607 = vdwg.mxu0
        %v1608 = vmax.f32 %v1482, 0.0
        %v1609 = vmax.f32 %v1485, 0.0
        %v1610 = vmax.f32 %v1490, 0.0
        %v1611 = vmax.f32 %v1493, 0.0
        %v1612 = vmax.f32 %v1498, 0.0
        %v1613 = vmax.f32 %v1501, 0.0
        %v1614 = vmax.f32 %v1506, 0.0
        %v1615 = vmax.f32 %v1509, 0.0
        %v1616 = vmax.f32 %v1514, 0.0
        %v1617 = vmax.f32 %v1517, 0.0
        %v1618 = vmax.f32 %v1522, 0.0
        %v1619 = vmax.f32 %v1525, 0.0
        %v1620 = vmax.f32 %v1530, 0.0
        %v1621 = vmax.f32 %v1533, 0.0
        %v1622 = vmax.f32 %v1538, 0.0
        %v1623 = vmax.f32 %v1541, 0.0
        %v1624 = vmax.f32 %v1546, 0.0
        %v1625 = vmax.f32 %v1549, 0.0
        %v1626 = vmax.f32 %v1554, 0.0
        %v1627 = vmax.f32 %v1557, 0.0
        %v1628 = vmax.f32 %v1562, 0.0
        %v1629 = vmax.f32 %v1565, 0.0
        %v1630 = vmax.f32 %v1570, 0.0
        %v1631 = vmax.f32 %v1573, 0.0
        %v1632 = vmax.f32 %v1578, 0.0
        %v1633 = vmax.f32 %v1581, 0.0
        %v1634 = vmax.f32 %v1586, 0.0
        %v1635 = vmax.f32 %v1589, 0.0
        %v1636 = vmax.f32 %v1594, 0.0
        %v1637 = vmax.f32 %v1597, 0.0
        %v1638 = vmax.f32 %v1602, 0.0
        %v1639 = vmax.f32 %v1605, 0.0
        %1641 = vset.pattern.permute.xlu0 0
        %1642 = vperm.xlu0 %1641, %v667
        %v1643 = vpop.permute.xlu0 %1642
        %1646 = vset.pattern.permute.xlu0 0
        %1647 = vperm.xlu0 %1646, %v668
        %v1648 = vpop.permute.xlu0 %1647
        %1651 = vset.pattern.permute.xlu0 0
        %1652 = vperm.xlu0 %1651, %v669
        %v1653 = vpop.permute.xlu0 %1652
        %1656 = vset.pattern.permute.xlu0 0
        %1657 = vperm.xlu0 %1656, %v670
        %v1658 = vpop.permute.xlu0 %1657
        %1661 = vset.pattern.permute.xlu0 0
        %1662 = vperm.xlu0 %1661, %v671
        %v1663 = vpop.permute.xlu0 %1662
        %1666 = vset.pattern.permute.xlu0 0
        %1667 = vperm.xlu0 %1666, %v672
        %v1668 = vpop.permute.xlu0 %1667
        %1671 = vset.pattern.permute.xlu0 0
        %1672 = vperm.xlu0 %1671, %v673
        %v1673 = vpop.permute.xlu0 %1672
        %1676 = vset.pattern.permute.xlu0 0
        %1677 = vperm.xlu0 %1676, %v674
        %v1678 = vpop.permute.xlu0 %1677
        %1681 = vset.pattern.permute.xlu0 0
        %1682 = vperm.xlu0 %1681, %v675
        %v1683 = vpop.permute.xlu0 %1682
        %1686 = vset.pattern.permute.xlu0 0
        %1687 = vperm.xlu0 %1686, %v676
        %v1688 = vpop.permute.xlu0 %1687
        %1691 = vset.pattern.permute.xlu0 0
        %1692 = vperm.xlu0 %1691, %v677
        %v1693 = vpop.permute.xlu0 %1692
        %1696 = vset.pattern.permute.xlu0 0
        %1697 = vperm.xlu0 %1696, %v678
        %v1698 = vpop.permute.xlu0 %1697
        %1701 = vset.pattern.permute.xlu0 0
        %1702 = vperm.xlu0 %1701, %v679
        %v1703 = vpop.permute.xlu0 %1702
        %1706 = vset.pattern.permute.xlu0 0
        %1707 = vperm.xlu0 %1706, %v680
        %v1708 = vpop.permute.xlu0 %1707
        %1711 = vset.pattern.permute.xlu0 0
        %1712 = vperm.xlu0 %1711, %v681
        %v1713 = vpop.permute.xlu0 %1712
        %1716 = vset.pattern.permute.xlu0 0
        %1717 = vperm.xlu0 %1716, %v682
        %v1718 = vpop.permute.xlu0 %1717
        %1721 = vset.pattern.permute.xlu0 0
        %1722 = vperm.xlu0 %1721, %v683
        %v1723 = vpop.permute.xlu0 %1722
        %1726 = vset.pattern.permute.xlu0 0
        %1727 = vperm.xlu0 %1726, %v684
        %v1728 = vpop.permute.xlu0 %1727
        %1731 = vset.pattern.permute.xlu0 0
        %1732 = vperm.xlu0 %1731, %v685
        %v1733 = vpop.permute.xlu0 %1732
        %1736 = vset.pattern.permute.xlu0 0
        %1737 = vperm.xlu0 %1736, %v686
        %v1738 = vpop.permute.xlu0 %1737
        %1741 = vset.pattern.permute.xlu0 0
        %1742 = vperm.xlu0 %1741, %v687
        %v1743 = vpop.permute.xlu0 %1742
        %1746 = vset.pattern.permute.xlu0 0
        %1747 = vperm.xlu0 %1746, %v688
        %v1748 = vpop.permute.xlu0 %1747
        %1751 = vset.pattern.permute.xlu0 0
        %1752 = vperm.xlu0 %1751, %v689
        %v1753 = vpop.permute.xlu0 %1752
        %1756 = vset.pattern.permute.xlu0 0
        %1757 = vperm.xlu0 %1756, %v690
        %v1758 = vpop.permute.xlu0 %1757
        %1761 = vset.pattern.permute.xlu0 0
        %1762 = vperm.xlu0 %1761, %v691
        %v1763 = vpop.permute.xlu0 %1762
        %1766 = vset.pattern.permute.xlu0 0
        %1767 = vperm.xlu0 %1766, %v692
        %v1768 = vpop.permute.xlu0 %1767
        %1771 = vset.pattern.permute.xlu0 0
        %1772 = vperm.xlu0 %1771, %v693
        %v1773 = vpop.permute.xlu0 %1772
        %1776 = vset.pattern.permute.xlu0 0
        %1777 = vperm.xlu0 %1776, %v694
        %v1778 = vpop.permute.xlu0 %1777
        %1781 = vset.pattern.permute.xlu0 0
        %1782 = vperm.xlu0 %1781, %v695
        %v1783 = vpop.permute.xlu0 %1782
        %1786 = vset.pattern.permute.xlu0 0
        %1787 = vperm.xlu0 %1786, %v696
        %v1788 = vpop.permute.xlu0 %1787
        %1791 = vset.pattern.permute.xlu0 0
        %1792 = vperm.xlu0 %1791, %v697
        %v1793 = vpop.permute.xlu0 %1792
        %1796 = vset.pattern.permute.xlu0 0
        %1797 = vperm.xlu0 %1796, %v698
        %v1798 = vpop.permute.xlu0 %1797
        %v1800 = vmul.f32 %v1608, %v1643
        %v1801 = vmul.f32 %v1609, %v1648
        %v1802 = vmul.f32 %v1610, %v1653
        %v1803 = vmul.f32 %v1611, %v1658
        %v1804 = vmul.f32 %v1612, %v1663
        %v1805 = vmul.f32 %v1613, %v1668
        %v1806 = vmul.f32 %v1614, %v1673
        %v1807 = vmul.f32 %v1615, %v1678
        %v1808 = vmul.f32 %v1616, %v1683
        %v1809 = vmul.f32 %v1617, %v1688
        %v1810 = vmul.f32 %v1618, %v1693
        %v1811 = vmul.f32 %v1619, %v1698
        %v1812 = vmul.f32 %v1620, %v1703
        %v1813 = vmul.f32 %v1621, %v1708
        %v1814 = vmul.f32 %v1622, %v1713
        %v1815 = vmul.f32 %v1623, %v1718
        %v1816 = vmul.f32 %v1624, %v1723
        %v1817 = vmul.f32 %v1625, %v1728
        %v1818 = vmul.f32 %v1626, %v1733
        %v1819 = vmul.f32 %v1627, %v1738
        %v1820 = vmul.f32 %v1628, %v1743
        %v1821 = vmul.f32 %v1629, %v1748
        %v1822 = vmul.f32 %v1630, %v1753
        %v1823 = vmul.f32 %v1631, %v1758
        %v1824 = vmul.f32 %v1632, %v1763
        %v1825 = vmul.f32 %v1633, %v1768
        %v1826 = vmul.f32 %v1634, %v1773
        %v1827 = vmul.f32 %v1635, %v1778
        %v1828 = vmul.f32 %v1636, %v1783
        %v1829 = vmul.f32 %v1637, %v1788
        %v1830 = vmul.f32 %v1638, %v1793
        %v1831 = vmul.f32 %v1639, %v1798
        %v1832 = vpack.c.bf16 %v1801, %v1800
        %v1833 = vpack.c.bf16 %v1803, %v1802
        %v1834 = vpack.c.bf16 %v1805, %v1804
        %v1835 = vpack.c.bf16 %v1807, %v1806
        %v1836 = vpack.c.bf16 %v1809, %v1808
        %v1837 = vpack.c.bf16 %v1811, %v1810
        %v1838 = vpack.c.bf16 %v1813, %v1812
        %v1839 = vpack.c.bf16 %v1815, %v1814
        %v1840 = vpack.c.bf16 %v1817, %v1816
        %v1841 = vpack.c.bf16 %v1819, %v1818
        %v1842 = vpack.c.bf16 %v1821, %v1820
        %v1843 = vpack.c.bf16 %v1823, %v1822
        %v1844 = vpack.c.bf16 %v1825, %v1824
        %v1845 = vpack.c.bf16 %v1827, %v1826
        %v1846 = vpack.c.bf16 %v1829, %v1828
        %v1847 = vpack.c.bf16 %v1831, %v1830
        %v1848 = vld [vmem:[#allocation6] sm:$0xf]
        %v1849 = vld [vmem:[#allocation6 + $0x4] sm:$0xf]
        %v1850 = vld [vmem:[#allocation6 + $0x8] sm:$0xf]
        %v1851 = vld [vmem:[#allocation6 + $0xc] sm:$0xf]
        %v1852 = vld [vmem:[#allocation6 + $0x10] sm:$0xf]
        %v1853 = vld [vmem:[#allocation6 + $0x14] sm:$0xf]
        %v1854 = vld [vmem:[#allocation6 + $0x18] sm:$0xf]
        %v1855 = vld [vmem:[#allocation6 + $0x1c] sm:$0xf]
        %v1856 = vld [vmem:[#allocation6 + $0x20] sm:$0xf]
        %v1857 = vld [vmem:[#allocation6 + $0x24] sm:$0xf]
        %v1858 = vld [vmem:[#allocation6 + $0x28] sm:$0xf]
        %v1859 = vld [vmem:[#allocation6 + $0x2c] sm:$0xf]
        %v1860 = vld [vmem:[#allocation6 + $0x30] sm:$0xf]
        %v1861 = vld [vmem:[#allocation6 + $0x34] sm:$0xf]
        %v1862 = vld [vmem:[#allocation6 + $0x38] sm:$0xf]
        %v1863 = vld [vmem:[#allocation6 + $0x3c] sm:$0xf]
        %v1864 = vld [vmem:[#allocation8] sm:$0xf]
        %v1865 = vld [vmem:[#allocation8 + $0x4] sm:$0xf]
        %v1866 = vld [vmem:[#allocation8 + $0x8] sm:$0xf]
        %v1867 = vld [vmem:[#allocation8 + $0xc] sm:$0xf]
        %v1868 = vld [vmem:[#allocation8 + $0x10] sm:$0xf]
        %v1869 = vld [vmem:[#allocation8 + $0x14] sm:$0xf]
        %v1870 = vld [vmem:[#allocation8 + $0x18] sm:$0xf]
        %v1871 = vld [vmem:[#allocation8 + $0x1c] sm:$0xf]
        %v1872 = vld [vmem:[#allocation8 + $0x20] sm:$0xf]
        %v1873 = vld [vmem:[#allocation8 + $0x24] sm:$0xf]
        %v1874 = vld [vmem:[#allocation8 + $0x28] sm:$0xf]
        %v1875 = vld [vmem:[#allocation8 + $0x2c] sm:$0xf]
        %v1876 = vld [vmem:[#allocation8 + $0x30] sm:$0xf]
        %v1877 = vld [vmem:[#allocation8 + $0x34] sm:$0xf]
        %v1878 = vld [vmem:[#allocation8 + $0x38] sm:$0xf]
        %v1879 = vld [vmem:[#allocation8 + $0x3c] sm:$0xf]
        %v1896 = vunpack.c.l.b16 %v1864
        %v1897 = vunpack.c.l.b16 %v1865
        %v1898 = vunpack.c.l.b16 %v1866
        %v1899 = vunpack.c.l.b16 %v1867
        %v1900 = vunpack.c.l.b16 %v1868
        %v1901 = vunpack.c.l.b16 %v1869
        %v1902 = vunpack.c.l.b16 %v1870
        %v1903 = vunpack.c.l.b16 %v1871
        %v1904 = vunpack.c.l.b16 %v1872
        %v1905 = vunpack.c.l.b16 %v1873
        %v1906 = vunpack.c.l.b16 %v1874
        %v1907 = vunpack.c.l.b16 %v1875
        %v1908 = vunpack.c.l.b16 %v1876
        %v1909 = vunpack.c.l.b16 %v1877
        %v1910 = vunpack.c.l.b16 %v1878
        %v1911 = vunpack.c.l.b16 %v1879
        %v1912 = vpack.c.b16 %v1897, %v1896
        %v1913 = vpack.c.b16 %v1899, %v1898
        %v1914 = vpack.c.b16 %v1901, %v1900
        %v1915 = vpack.c.b16 %v1903, %v1902
        %v1916 = vpack.c.b16 %v1905, %v1904
        %v1917 = vpack.c.b16 %v1907, %v1906
        %v1918 = vpack.c.b16 %v1909, %v1908
        %v1919 = vpack.c.b16 %v1911, %v1910
        %1928 = vmatprep.subr.bf16.mxu0 0
        %1929 = vmatpush1.bf16.msra.mxu0 %v1919
        %1930 = vmatprep.subr.bf16.mxu0 0
        %1931 = vmatpush1.bf16.msra.mxu0 %v1918
        %1932 = vmatprep.subr.bf16.mxu0 0
        %1933 = vmatpush1.bf16.msra.mxu0 %v1917
        %1934 = vmatprep.subr.bf16.mxu0 0
        %1935 = vmatpush1.bf16.msra.mxu0 %v1916
        %1936 = vmatprep.subr.bf16.mxu0 0
        %1937 = vmatpush1.bf16.msra.mxu0 %v1915
        %1938 = vmatprep.subr.bf16.mxu0 0
        %1939 = vmatpush1.bf16.msra.mxu0 %v1914
        %1940 = vmatprep.subr.bf16.mxu0 0
        %1941 = vmatpush1.bf16.msra.mxu0 %v1913
        %1942 = vmatprep.subr.bf16.mxu0 0
        %1943 = vmatpush1.bf16.msra.mxu0 %v1912
        %1944 = vmatprep.subr.bf16.mxu0 0
        %1945 = vmatpush2.bf16.msra.mxu0 0
        %1946 = vmatprep.subr.bf16.mxu0 0
        %1947 = vmatpush2.bf16.msra.mxu0 0
        %1948 = vmatprep.subr.bf16.mxu0 0
        %1949 = vmatpush2.bf16.msra.mxu0 0
        %1950 = vmatprep.subr.bf16.mxu0 0
        %1951 = vmatpush2.bf16.msra.mxu0 0
        %1952 = vmatprep.subr.bf16.mxu0 0
        %1953 = vmatpush2.bf16.msra.mxu0 0
        %1954 = vmatprep.subr.bf16.mxu0 0
        %1955 = vmatpush2.bf16.msra.mxu0 0
        %1956 = vmatprep.subr.bf16.mxu0 0
        %1957 = vmatpush2.bf16.msra.mxu0 0
        %1958 = vmatprep.subr.bf16.mxu0 0
        %1959 = vmatpush2.bf16.msra.mxu0 0
        %1960 = vmatprep.mubr.bf16.mxu0 0
        %1961 = vmatmul.mubr.bf16.gmra.mxu0 %v1832
        %v1962 = vpop.f32.mrf.mxu0
        %v1963 = vadd.f32 0.0, %v1962
        %v1964 = vpop.f32.mrf.mxu0
        %v1965 = vpop.f32.mrf.mxu0
        %v1966 = vadd.f32 0.0, %v1965
        %v1967 = vpop.f32.mrf.mxu0
        %1968 = vmatprep.mubr.bf16.mxu0 0
        %1969 = vmatmul.mubr.bf16.gmra.mxu0 %v1833
        %v1970 = vpop.f32.mrf.mxu0
        %v1971 = vadd.f32 0.0, %v1970
        %v1972 = vpop.f32.mrf.mxu0
        %v1973 = vpop.f32.mrf.mxu0
        %v1974 = vadd.f32 0.0, %v1973
        %v1975 = vpop.f32.mrf.mxu0
        %1976 = vmatprep.mubr.bf16.mxu0 0
        %1977 = vmatmul.mubr.bf16.gmra.mxu0 %v1834
        %v1978 = vpop.f32.mrf.mxu0
        %v1979 = vadd.f32 0.0, %v1978
        %v1980 = vpop.f32.mrf.mxu0
        %v1981 = vpop.f32.mrf.mxu0
        %v1982 = vadd.f32 0.0, %v1981
        %v1983 = vpop.f32.mrf.mxu0
        %1984 = vmatprep.mubr.bf16.mxu0 0
        %1985 = vmatmul.mubr.bf16.gmra.mxu0 %v1835
        %v1986 = vpop.f32.mrf.mxu0
        %v1987 = vadd.f32 0.0, %v1986
        %v1988 = vpop.f32.mrf.mxu0
        %v1989 = vpop.f32.mrf.mxu0
        %v1990 = vadd.f32 0.0, %v1989
        %v1991 = vpop.f32.mrf.mxu0
        %1992 = vmatprep.mubr.bf16.mxu0 0
        %1993 = vmatmul.mubr.bf16.gmra.mxu0 %v1836
        %v1994 = vpop.f32.mrf.mxu0
        %v1995 = vadd.f32 0.0, %v1994
        %v1996 = vpop.f32.mrf.mxu0
        %v1997 = vpop.f32.mrf.mxu0
        %v1998 = vadd.f32 0.0, %v1997
        %v1999 = vpop.f32.mrf.mxu0
        %2000 = vmatprep.mubr.bf16.mxu0 0
        %2001 = vmatmul.mubr.bf16.gmra.mxu0 %v1837
        %v2002 = vpop.f32.mrf.mxu0
        %v2003 = vadd.f32 0.0, %v2002
        %v2004 = vpop.f32.mrf.mxu0
        %v2005 = vpop.f32.mrf.mxu0
        %v2006 = vadd.f32 0.0, %v2005
        %v2007 = vpop.f32.mrf.mxu0
        %2008 = vmatprep.mubr.bf16.mxu0 0
        %2009 = vmatmul.mubr.bf16.gmra.mxu0 %v1838
        %v2010 = vpop.f32.mrf.mxu0
        %v2011 = vadd.f32 0.0, %v2010
        %v2012 = vpop.f32.mrf.mxu0
        %v2013 = vpop.f32.mrf.mxu0
        %v2014 = vadd.f32 0.0, %v2013
        %v2015 = vpop.f32.mrf.mxu0
        %2016 = vmatprep.mubr.bf16.mxu0 0
        %2017 = vmatmul.mubr.bf16.gmra.mxu0 %v1839
        %v2018 = vpop.f32.mrf.mxu0
        %v2019 = vadd.f32 0.0, %v2018
        %v2020 = vpop.f32.mrf.mxu0
        %v2021 = vpop.f32.mrf.mxu0
        %v2022 = vadd.f32 0.0, %v2021
        %v2023 = vpop.f32.mrf.mxu0
        %2024 = vmatprep.mubr.bf16.mxu0 0
        %2025 = vmatmul.mubr.bf16.gmra.mxu0 %v1840
        %v2026 = vpop.f32.mrf.mxu0
        %v2027 = vadd.f32 0.0, %v2026
        %v2028 = vpop.f32.mrf.mxu0
        %v2029 = vpop.f32.mrf.mxu0
        %v2030 = vadd.f32 0.0, %v2029
        %v2031 = vpop.f32.mrf.mxu0
        %2032 = vmatprep.mubr.bf16.mxu0 0
        %2033 = vmatmul.mubr.bf16.gmra.mxu0 %v1841
        %v2034 = vpop.f32.mrf.mxu0
        %v2035 = vadd.f32 0.0, %v2034
        %v2036 = vpop.f32.mrf.mxu0
        %v2037 = vpop.f32.mrf.mxu0
        %v2038 = vadd.f32 0.0, %v2037
        %v2039 = vpop.f32.mrf.mxu0
        %2040 = vmatprep.mubr.bf16.mxu0 0
        %2041 = vmatmul.mubr.bf16.gmra.mxu0 %v1842
        %v2042 = vpop.f32.mrf.mxu0
        %v2043 = vadd.f32 0.0, %v2042
        %v2044 = vpop.f32.mrf.mxu0
        %v2045 = vpop.f32.mrf.mxu0
        %v2046 = vadd.f32 0.0, %v2045
        %v2047 = vpop.f32.mrf.mxu0
        %2048 = vmatprep.mubr.bf16.mxu0 0
        %2049 = vmatmul.mubr.bf16.gmra.mxu0 %v1843
        %v2050 = vpop.f32.mrf.mxu0
        %v2051 = vadd.f32 0.0, %v2050
        %v2052 = vpop.f32.mrf.mxu0
        %v2053 = vpop.f32.mrf.mxu0
        %v2054 = vadd.f32 0.0, %v2053
        %v2055 = vpop.f32.mrf.mxu0
        %2056 = vmatprep.mubr.bf16.mxu0 0
        %2057 = vmatmul.mubr.bf16.gmra.mxu0 %v1844
        %v2058 = vpop.f32.mrf.mxu0
        %v2059 = vadd.f32 0.0, %v2058
        %v2060 = vpop.f32.mrf.mxu0
        %v2061 = vpop.f32.mrf.mxu0
        %v2062 = vadd.f32 0.0, %v2061
        %v2063 = vpop.f32.mrf.mxu0
        %2064 = vmatprep.mubr.bf16.mxu0 0
        %2065 = vmatmul.mubr.bf16.gmra.mxu0 %v1845
        %v2066 = vpop.f32.mrf.mxu0
        %v2067 = vadd.f32 0.0, %v2066
        %v2068 = vpop.f32.mrf.mxu0
        %v2069 = vpop.f32.mrf.mxu0
        %v2070 = vadd.f32 0.0, %v2069
        %v2071 = vpop.f32.mrf.mxu0
        %2072 = vmatprep.mubr.bf16.mxu0 0
        %2073 = vmatmul.mubr.bf16.gmra.mxu0 %v1846
        %v2074 = vpop.f32.mrf.mxu0
        %v2075 = vadd.f32 0.0, %v2074
        %v2076 = vpop.f32.mrf.mxu0
        %v2077 = vpop.f32.mrf.mxu0
        %v2078 = vadd.f32 0.0, %v2077
        %v2079 = vpop.f32.mrf.mxu0
        %2080 = vmatprep.mubr.bf16.mxu0 0
        %2081 = vmatmul.mubr.bf16.gmra.mxu0 %v1847
        %v2082 = vpop.f32.mrf.mxu0
        %v2083 = vadd.f32 0.0, %v2082
        %v2084 = vpop.f32.mrf.mxu0
        %v2085 = vpop.f32.mrf.mxu0
        %v2086 = vadd.f32 0.0, %v2085
        %v2087 = vpop.f32.mrf.mxu0
        %2088 = vdwg.mxu0
        %v2121 = vunpack.c.l.b16 %v635
        %v2122 = vunpack.c.l.b16 %v636
        %v2123 = vunpack.c.l.b16 %v637
        %v2124 = vunpack.c.l.b16 %v638
        %v2125 = vunpack.c.l.b16 %v639
        %v2126 = vunpack.c.l.b16 %v640
        %v2127 = vunpack.c.l.b16 %v641
        %v2128 = vunpack.c.l.b16 %v642
        %v2129 = vunpack.c.l.b16 %v643
        %v2130 = vunpack.c.l.b16 %v644
        %v2131 = vunpack.c.l.b16 %v645
        %v2132 = vunpack.c.l.b16 %v646
        %v2133 = vunpack.c.l.b16 %v647
        %v2134 = vunpack.c.l.b16 %v648
        %v2135 = vunpack.c.l.b16 %v649
        %v2136 = vunpack.c.l.b16 %v650
        %v2137 = vunpack.c.l.b16 %v651
        %v2138 = vunpack.c.l.b16 %v652
        %v2139 = vunpack.c.l.b16 %v653
        %v2140 = vunpack.c.l.b16 %v654
        %v2141 = vunpack.c.l.b16 %v655
        %v2142 = vunpack.c.l.b16 %v656
        %v2143 = vunpack.c.l.b16 %v657
        %v2144 = vunpack.c.l.b16 %v658
        %v2145 = vunpack.c.l.b16 %v659
        %v2146 = vunpack.c.l.b16 %v660
        %v2147 = vunpack.c.l.b16 %v661
        %v2148 = vunpack.c.l.b16 %v662
        %v2149 = vunpack.c.l.b16 %v663
        %v2150 = vunpack.c.l.b16 %v664
        %v2151 = vunpack.c.l.b16 %v665
        %v2152 = vunpack.c.l.b16 %v666
        %v2153 = vpack.c.b16 %v2122, %v2121
        %v2154 = vpack.c.b16 %v2124, %v2123
        %v2155 = vpack.c.b16 %v2126, %v2125
        %v2156 = vpack.c.b16 %v2128, %v2127
        %v2157 = vpack.c.b16 %v2130, %v2129
        %v2158 = vpack.c.b16 %v2132, %v2131
        %v2159 = vpack.c.b16 %v2134, %v2133
        %v2160 = vpack.c.b16 %v2136, %v2135
        %v2161 = vpack.c.b16 %v2138, %v2137
        %v2162 = vpack.c.b16 %v2140, %v2139
        %v2163 = vpack.c.b16 %v2142, %v2141
        %v2164 = vpack.c.b16 %v2144, %v2143
        %v2165 = vpack.c.b16 %v2146, %v2145
        %v2166 = vpack.c.b16 %v2148, %v2147
        %v2167 = vpack.c.b16 %v2150, %v2149
        %v2168 = vpack.c.b16 %v2152, %v2151
        %v2201 = vunpack.c.l.b16 %v1848
        %v2202 = vunpack.c.l.b16 %v1849
        %v2203 = vunpack.c.l.b16 %v1850
        %v2204 = vunpack.c.l.b16 %v1851
        %v2205 = vunpack.c.l.b16 %v1852
        %v2206 = vunpack.c.l.b16 %v1853
        %v2207 = vunpack.c.l.b16 %v1854
        %v2208 = vunpack.c.l.b16 %v1855
        %v2209 = vunpack.c.l.b16 %v1856
        %v2210 = vunpack.c.l.b16 %v1857
        %v2211 = vunpack.c.l.b16 %v1858
        %v2212 = vunpack.c.l.b16 %v1859
        %v2213 = vunpack.c.l.b16 %v1860
        %v2214 = vunpack.c.l.b16 %v1861
        %v2215 = vunpack.c.l.b16 %v1862
        %v2216 = vunpack.c.l.b16 %v1863
        %v2217 = vpack.c.b16 %v2202, %v2201
        %v2218 = vpack.c.b16 %v2204, %v2203
        %v2219 = vpack.c.b16 %v2206, %v2205
        %v2220 = vpack.c.b16 %v2208, %v2207
        %v2221 = vpack.c.b16 %v2210, %v2209
        %v2222 = vpack.c.b16 %v2212, %v2211
        %v2223 = vpack.c.b16 %v2214, %v2213
        %v2224 = vpack.c.b16 %v2216, %v2215
        %2233 = vmatprep.subr.bf16.mxu0 0
        %2234 = vmatpush1.bf16.msra.mxu0 %v2224
        %2235 = vmatprep.subr.bf16.mxu0 0
        %2236 = vmatpush1.bf16.msra.mxu0 %v2223
        %2237 = vmatprep.subr.bf16.mxu0 0
        %2238 = vmatpush1.bf16.msra.mxu0 %v2222
        %2239 = vmatprep.subr.bf16.mxu0 0
        %2240 = vmatpush1.bf16.msra.mxu0 %v2221
        %2241 = vmatprep.subr.bf16.mxu0 0
        %2242 = vmatpush1.bf16.msra.mxu0 %v2220
        %2243 = vmatprep.subr.bf16.mxu0 0
        %2244 = vmatpush1.bf16.msra.mxu0 %v2219
        %2245 = vmatprep.subr.bf16.mxu0 0
        %2246 = vmatpush1.bf16.msra.mxu0 %v2218
        %2247 = vmatprep.subr.bf16.mxu0 0
        %2248 = vmatpush1.bf16.msra.mxu0 %v2217
        %2249 = vmatprep.subr.bf16.mxu0 0
        %2250 = vmatpush2.bf16.msra.mxu0 0
        %2251 = vmatprep.subr.bf16.mxu0 0
        %2252 = vmatpush2.bf16.msra.mxu0 0
        %2253 = vmatprep.subr.bf16.mxu0 0
        %2254 = vmatpush2.bf16.msra.mxu0 0
        %2255 = vmatprep.subr.bf16.mxu0 0
        %2256 = vmatpush2.bf16.msra.mxu0 0
        %2257 = vmatprep.subr.bf16.mxu0 0
        %2258 = vmatpush2.bf16.msra.mxu0 0
        %2259 = vmatprep.subr.bf16.mxu0 0
        %2260 = vmatpush2.bf16.msra.mxu0 0
        %2261 = vmatprep.subr.bf16.mxu0 0
        %2262 = vmatpush2.bf16.msra.mxu0 0
        %2263 = vmatprep.subr.bf16.mxu0 0
        %2264 = vmatpush2.bf16.msra.mxu0 0
        %2265 = vmatprep.mubr.bf16.mxu0 0
        %2266 = vmatmul.mubr.bf16.gmra.mxu0 %v2153
        %v2267 = vpop.f32.mrf.mxu0
        %v2268 = vadd.f32 %v1963, %v2267
        %v2269 = vpop.f32.mrf.mxu0
        %v2270 = vpop.f32.mrf.mxu0
        %v2271 = vadd.f32 %v1966, %v2270
        %v2272 = vpop.f32.mrf.mxu0
        %2273 = vmatprep.mubr.bf16.mxu0 0
        %2274 = vmatmul.mubr.bf16.gmra.mxu0 %v2154
        %v2275 = vpop.f32.mrf.mxu0
        %v2276 = vadd.f32 %v1971, %v2275
        %v2277 = vpop.f32.mrf.mxu0
        %v2278 = vpop.f32.mrf.mxu0
        %v2279 = vadd.f32 %v1974, %v2278
        %v2280 = vpop.f32.mrf.mxu0
        %2281 = vmatprep.mubr.bf16.mxu0 0
        %2282 = vmatmul.mubr.bf16.gmra.mxu0 %v2155
        %v2283 = vpop.f32.mrf.mxu0
        %v2284 = vadd.f32 %v1979, %v2283
        %v2285 = vpop.f32.mrf.mxu0
        %v2286 = vpop.f32.mrf.mxu0
        %v2287 = vadd.f32 %v1982, %v2286
        %v2288 = vpop.f32.mrf.mxu0
        %2289 = vmatprep.mubr.bf16.mxu0 0
        %2290 = vmatmul.mubr.bf16.gmra.mxu0 %v2156
        %v2291 = vpop.f32.mrf.mxu0
        %v2292 = vadd.f32 %v1987, %v2291
        %v2293 = vpop.f32.mrf.mxu0
        %v2294 = vpop.f32.mrf.mxu0
        %v2295 = vadd.f32 %v1990, %v2294
        %v2296 = vpop.f32.mrf.mxu0
        %2297 = vmatprep.mubr.bf16.mxu0 0
        %2298 = vmatmul.mubr.bf16.gmra.mxu0 %v2157
        %v2299 = vpop.f32.mrf.mxu0
        %v2300 = vadd.f32 %v1995, %v2299
        %v2301 = vpop.f32.mrf.mxu0
        %v2302 = vpop.f32.mrf.mxu0
        %v2303 = vadd.f32 %v1998, %v2302
        %v2304 = vpop.f32.mrf.mxu0
        %2305 = vmatprep.mubr.bf16.mxu0 0
        %2306 = vmatmul.mubr.bf16.gmra.mxu0 %v2158
        %v2307 = vpop.f32.mrf.mxu0
        %v2308 = vadd.f32 %v2003, %v2307
        %v2309 = vpop.f32.mrf.mxu0
        %v2310 = vpop.f32.mrf.mxu0
        %v2311 = vadd.f32 %v2006, %v2310
        %v2312 = vpop.f32.mrf.mxu0
        %2313 = vmatprep.mubr.bf16.mxu0 0
        %2314 = vmatmul.mubr.bf16.gmra.mxu0 %v2159
        %v2315 = vpop.f32.mrf.mxu0
        %v2316 = vadd.f32 %v2011, %v2315
        %v2317 = vpop.f32.mrf.mxu0
        %v2318 = vpop.f32.mrf.mxu0
        %v2319 = vadd.f32 %v2014, %v2318
        %v2320 = vpop.f32.mrf.mxu0
        %2321 = vmatprep.mubr.bf16.mxu0 0
        %2322 = vmatmul.mubr.bf16.gmra.mxu0 %v2160
        %v2323 = vpop.f32.mrf.mxu0
        %v2324 = vadd.f32 %v2019, %v2323
        %v2325 = vpop.f32.mrf.mxu0
        %v2326 = vpop.f32.mrf.mxu0
        %v2327 = vadd.f32 %v2022, %v2326
        %v2328 = vpop.f32.mrf.mxu0
        %2329 = vmatprep.mubr.bf16.mxu0 0
        %2330 = vmatmul.mubr.bf16.gmra.mxu0 %v2161
        %v2331 = vpop.f32.mrf.mxu0
        %v2332 = vadd.f32 %v2027, %v2331
        %v2333 = vpop.f32.mrf.mxu0
        %v2334 = vpop.f32.mrf.mxu0
        %v2335 = vadd.f32 %v2030, %v2334
        %v2336 = vpop.f32.mrf.mxu0
        %2337 = vmatprep.mubr.bf16.mxu0 0
        %2338 = vmatmul.mubr.bf16.gmra.mxu0 %v2162
        %v2339 = vpop.f32.mrf.mxu0
        %v2340 = vadd.f32 %v2035, %v2339
        %v2341 = vpop.f32.mrf.mxu0
        %v2342 = vpop.f32.mrf.mxu0
        %v2343 = vadd.f32 %v2038, %v2342
        %v2344 = vpop.f32.mrf.mxu0
        %2345 = vmatprep.mubr.bf16.mxu0 0
        %2346 = vmatmul.mubr.bf16.gmra.mxu0 %v2163
        %v2347 = vpop.f32.mrf.mxu0
        %v2348 = vadd.f32 %v2043, %v2347
        %v2349 = vpop.f32.mrf.mxu0
        %v2350 = vpop.f32.mrf.mxu0
        %v2351 = vadd.f32 %v2046, %v2350
        %v2352 = vpop.f32.mrf.mxu0
        %2353 = vmatprep.mubr.bf16.mxu0 0
        %2354 = vmatmul.mubr.bf16.gmra.mxu0 %v2164
        %v2355 = vpop.f32.mrf.mxu0
        %v2356 = vadd.f32 %v2051, %v2355
        %v2357 = vpop.f32.mrf.mxu0
        %v2358 = vpop.f32.mrf.mxu0
        %v2359 = vadd.f32 %v2054, %v2358
        %v2360 = vpop.f32.mrf.mxu0
        %2361 = vmatprep.mubr.bf16.mxu0 0
        %2362 = vmatmul.mubr.bf16.gmra.mxu0 %v2165
        %v2363 = vpop.f32.mrf.mxu0
        %v2364 = vadd.f32 %v2059, %v2363
        %v2365 = vpop.f32.mrf.mxu0
        %v2366 = vpop.f32.mrf.mxu0
        %v2367 = vadd.f32 %v2062, %v2366
        %v2368 = vpop.f32.mrf.mxu0
        %2369 = vmatprep.mubr.bf16.mxu0 0
        %2370 = vmatmul.mubr.bf16.gmra.mxu0 %v2166
        %v2371 = vpop.f32.mrf.mxu0
        %v2372 = vadd.f32 %v2067, %v2371
        %v2373 = vpop.f32.mrf.mxu0
        %v2374 = vpop.f32.mrf.mxu0
        %v2375 = vadd.f32 %v2070, %v2374
        %v2376 = vpop.f32.mrf.mxu0
        %2377 = vmatprep.mubr.bf16.mxu0 0
        %2378 = vmatmul.mubr.bf16.gmra.mxu0 %v2167
        %v2379 = vpop.f32.mrf.mxu0
        %v2380 = vadd.f32 %v2075, %v2379
        %v2381 = vpop.f32.mrf.mxu0
        %v2382 = vpop.f32.mrf.mxu0
        %v2383 = vadd.f32 %v2078, %v2382
        %v2384 = vpop.f32.mrf.mxu0
        %2385 = vmatprep.mubr.bf16.mxu0 0
        %2386 = vmatmul.mubr.bf16.gmra.mxu0 %v2168
        %v2387 = vpop.f32.mrf.mxu0
        %v2388 = vadd.f32 %v2083, %v2387
        %v2389 = vpop.f32.mrf.mxu0
        %v2390 = vpop.f32.mrf.mxu0
        %v2391 = vadd.f32 %v2086, %v2390
        %v2392 = vpop.f32.mrf.mxu0
        %2393 = vdwg.mxu0
        %v2394 = vlaneseq
        %v2395 = vshrl.u32 %v2394, 7
        %v2396 = vsub.s32 0, %v2395
        %v2397 = vrot.slane %v703, %v2396
        %v2398 = vadd.f32 %v2268, %v2397
        %v2399 = vadd.f32 %v2271, %v2397
        %v2400 = vadd.f32 %v2276, %v2397
        %v2401 = vadd.f32 %v2279, %v2397
        %v2402 = vadd.f32 %v2284, %v2397
        %v2403 = vadd.f32 %v2287, %v2397
        %v2404 = vadd.f32 %v2292, %v2397
        %v2405 = vadd.f32 %v2295, %v2397
        %v2406 = vadd.f32 %v2300, %v2397
        %v2407 = vadd.f32 %v2303, %v2397
        %v2408 = vadd.f32 %v2308, %v2397
        %v2409 = vadd.f32 %v2311, %v2397
        %v2410 = vadd.f32 %v2316, %v2397
        %v2411 = vadd.f32 %v2319, %v2397
        %v2412 = vadd.f32 %v2324, %v2397
        %v2413 = vadd.f32 %v2327, %v2397
        %v2414 = vadd.f32 %v2332, %v2397
        %v2415 = vadd.f32 %v2335, %v2397
        %v2416 = vadd.f32 %v2340, %v2397
        %v2417 = vadd.f32 %v2343, %v2397
        %v2418 = vadd.f32 %v2348, %v2397
        %v2419 = vadd.f32 %v2351, %v2397
        %v2420 = vadd.f32 %v2356, %v2397
        %v2421 = vadd.f32 %v2359, %v2397
        %v2422 = vadd.f32 %v2364, %v2397
        %v2423 = vadd.f32 %v2367, %v2397
        %v2424 = vadd.f32 %v2372, %v2397
        %v2425 = vadd.f32 %v2375, %v2397
        %v2426 = vadd.f32 %v2380, %v2397
        %v2427 = vadd.f32 %v2383, %v2397
        %v2428 = vadd.f32 %v2388, %v2397
        %v2429 = vadd.f32 %v2391, %v2397
        %v2430 = vmax.f32 %v2398, 0.0
        %v2431 = vmax.f32 %v2399, 0.0
        %v2432 = vmax.f32 %v2400, 0.0
        %v2433 = vmax.f32 %v2401, 0.0
        %v2434 = vmax.f32 %v2402, 0.0
        %v2435 = vmax.f32 %v2403, 0.0
        %v2436 = vmax.f32 %v2404, 0.0
        %v2437 = vmax.f32 %v2405, 0.0
        %v2438 = vmax.f32 %v2406, 0.0
        %v2439 = vmax.f32 %v2407, 0.0
        %v2440 = vmax.f32 %v2408, 0.0
        %v2441 = vmax.f32 %v2409, 0.0
        %v2442 = vmax.f32 %v2410, 0.0
        %v2443 = vmax.f32 %v2411, 0.0
        %v2444 = vmax.f32 %v2412, 0.0
        %v2445 = vmax.f32 %v2413, 0.0
        %v2446 = vmax.f32 %v2414, 0.0
        %v2447 = vmax.f32 %v2415, 0.0
        %v2448 = vmax.f32 %v2416, 0.0
        %v2449 = vmax.f32 %v2417, 0.0
        %v2450 = vmax.f32 %v2418, 0.0
        %v2451 = vmax.f32 %v2419, 0.0
        %v2452 = vmax.f32 %v2420, 0.0
        %v2453 = vmax.f32 %v2421, 0.0
        %v2454 = vmax.f32 %v2422, 0.0
        %v2455 = vmax.f32 %v2423, 0.0
        %v2456 = vmax.f32 %v2424, 0.0
        %v2457 = vmax.f32 %v2425, 0.0
        %v2458 = vmax.f32 %v2426, 0.0
        %v2459 = vmax.f32 %v2427, 0.0
        %v2460 = vmax.f32 %v2428, 0.0
        %v2461 = vmax.f32 %v2429, 0.0
        %v2462 = vmul.f32 %v2430, %v1643
        %v2463 = vmul.f32 %v2431, %v1648
        %v2464 = vmul.f32 %v2432, %v1653
        %v2465 = vmul.f32 %v2433, %v1658
        %v2466 = vmul.f32 %v2434, %v1663
        %v2467 = vmul.f32 %v2435, %v1668
        %v2468 = vmul.f32 %v2436, %v1673
        %v2469 = vmul.f32 %v2437, %v1678
        %v2470 = vmul.f32 %v2438, %v1683
        %v2471 = vmul.f32 %v2439, %v1688
        %v2472 = vmul.f32 %v2440, %v1693
        %v2473 = vmul.f32 %v2441, %v1698
        %v2474 = vmul.f32 %v2442, %v1703
        %v2475 = vmul.f32 %v2443, %v1708
        %v2476 = vmul.f32 %v2444, %v1713
        %v2477 = vmul.f32 %v2445, %v1718
        %v2478 = vmul.f32 %v2446, %v1723
        %v2479 = vmul.f32 %v2447, %v1728
        %v2480 = vmul.f32 %v2448, %v1733
        %v2481 = vmul.f32 %v2449, %v1738
        %v2482 = vmul.f32 %v2450, %v1743
        %v2483 = vmul.f32 %v2451, %v1748
        %v2484 = vmul.f32 %v2452, %v1753
        %v2485 = vmul.f32 %v2453, %v1758
        %v2486 = vmul.f32 %v2454, %v1763
        %v2487 = vmul.f32 %v2455, %v1768
        %v2488 = vmul.f32 %v2456, %v1773
        %v2489 = vmul.f32 %v2457, %v1778
        %v2490 = vmul.f32 %v2458, %v1783
        %v2491 = vmul.f32 %v2459, %v1788
        %v2492 = vmul.f32 %v2460, %v1793
        %v2493 = vmul.f32 %v2461, %v1798
        %v2494 = vpack.c.bf16 %v2463, %v2462
        %v2495 = vpack.c.bf16 %v2465, %v2464
        %v2496 = vpack.c.bf16 %v2467, %v2466
        %v2497 = vpack.c.bf16 %v2469, %v2468
        %v2498 = vpack.c.bf16 %v2471, %v2470
        %v2499 = vpack.c.bf16 %v2473, %v2472
        %v2500 = vpack.c.bf16 %v2475, %v2474
        %v2501 = vpack.c.bf16 %v2477, %v2476
        %v2502 = vpack.c.bf16 %v2479, %v2478
        %v2503 = vpack.c.bf16 %v2481, %v2480
        %v2504 = vpack.c.bf16 %v2483, %v2482
        %v2505 = vpack.c.bf16 %v2485, %v2484
        %v2506 = vpack.c.bf16 %v2487, %v2486
        %v2507 = vpack.c.bf16 %v2489, %v2488
        %v2508 = vpack.c.bf16 %v2491, %v2490
        %v2509 = vpack.c.bf16 %v2493, %v2492
        %v2510 = vld [vmem:[#allocation9] sm:$0xff]
        %v2511 = vld [vmem:[#allocation9 + $0x8] sm:$0xf]
        %v2512 = vld [vmem:[#allocation9 + $0xc] sm:$0xff]
        %v2513 = vld [vmem:[#allocation9 + $0x14] sm:$0xf]
        %v2514 = vld [vmem:[#allocation9 + $0x18] sm:$0xff]
        %v2515 = vld [vmem:[#allocation9 + $0x20] sm:$0xf]
        %v2516 = vld [vmem:[#allocation9 + $0x24] sm:$0xff]
        %v2517 = vld [vmem:[#allocation9 + $0x2c] sm:$0xf]
        %v2518 = vld [vmem:[#allocation9 + $0x30] sm:$0xff]
        %v2519 = vld [vmem:[#allocation9 + $0x38] sm:$0xf]
        %v2520 = vld [vmem:[#allocation9 + $0x3c] sm:$0xff]
        %v2521 = vld [vmem:[#allocation9 + $0x44] sm:$0xf]
        %v2522 = vld [vmem:[#allocation9 + $0x48] sm:$0xff]
        %v2523 = vld [vmem:[#allocation9 + $0x50] sm:$0xf]
        %v2524 = vld [vmem:[#allocation9 + $0x54] sm:$0xff]
        %v2525 = vld [vmem:[#allocation9 + $0x5c] sm:$0xf]
        %v2526 = vld [vmem:[#allocation9 + $0x60] sm:$0xff]
        %v2527 = vld [vmem:[#allocation9 + $0x68] sm:$0xf]
        %v2528 = vld [vmem:[#allocation9 + $0x6c] sm:$0xff]
        %v2529 = vld [vmem:[#allocation9 + $0x74] sm:$0xf]
        %v2530 = vld [vmem:[#allocation9 + $0x78] sm:$0xff]
        %v2531 = vld [vmem:[#allocation9 + $0x80] sm:$0xf]
        %v2532 = vld [vmem:[#allocation9 + $0x84] sm:$0xff]
        %v2533 = vld [vmem:[#allocation9 + $0x8c] sm:$0xf]
        %v2534 = vld [vmem:[#allocation9 + $0x90] sm:$0xff]
        %v2535 = vld [vmem:[#allocation9 + $0x98] sm:$0xf]
        %v2536 = vld [vmem:[#allocation9 + $0x9c] sm:$0xff]
        %v2537 = vld [vmem:[#allocation9 + $0xa4] sm:$0xf]
        %v2538 = vld [vmem:[#allocation9 + $0xa8] sm:$0xff]
        %v2539 = vld [vmem:[#allocation9 + $0xb0] sm:$0xf]
        %v2540 = vld [vmem:[#allocation9 + $0xb4] sm:$0xff]
        %v2541 = vld [vmem:[#allocation9 + $0xbc] sm:$0xf]
        %v2574 = vunpack.c.l.b16 %v2510
        %v2575 = vunpack.c.h.b16 %v2510
        %v2576 = vunpack.c.l.b16 %v2511
        %v2577 = vunpack.c.l.b16 %v2512
        %v2578 = vunpack.c.h.b16 %v2512
        %v2579 = vunpack.c.l.b16 %v2513
        %v2580 = vunpack.c.l.b16 %v2514
        %v2581 = vunpack.c.h.b16 %v2514
        %v2582 = vunpack.c.l.b16 %v2515
        %v2583 = vunpack.c.l.b16 %v2516
        %v2584 = vunpack.c.h.b16 %v2516
        %v2585 = vunpack.c.l.b16 %v2517
        %v2586 = vunpack.c.l.b16 %v2518
        %v2587 = vunpack.c.h.b16 %v2518
        %v2588 = vunpack.c.l.b16 %v2519
        %v2589 = vunpack.c.l.b16 %v2520
        %v2590 = vunpack.c.h.b16 %v2520
        %v2591 = vunpack.c.l.b16 %v2521
        %v2592 = vunpack.c.l.b16 %v2522
        %v2593 = vunpack.c.h.b16 %v2522
        %v2594 = vunpack.c.l.b16 %v2523
        %v2595 = vunpack.c.l.b16 %v2524
        %v2596 = vunpack.c.h.b16 %v2524
        %v2597 = vunpack.c.l.b16 %v2525
        %v2598 = vunpack.c.l.b16 %v2526
        %v2599 = vunpack.c.h.b16 %v2526
        %v2600 = vunpack.c.l.b16 %v2527
        %v2601 = vunpack.c.l.b16 %v2528
        %v2602 = vunpack.c.h.b16 %v2528
        %v2603 = vunpack.c.l.b16 %v2529
        %v2604 = vunpack.c.l.b16 %v2530
        %v2605 = vunpack.c.h.b16 %v2530
        %v2606 = vunpack.c.l.b16 %v2531
        %v2607 = vunpack.c.l.b16 %v2532
        %v2608 = vunpack.c.h.b16 %v2532
        %v2609 = vunpack.c.l.b16 %v2533
        %v2610 = vunpack.c.l.b16 %v2534
        %v2611 = vunpack.c.h.b16 %v2534
        %v2612 = vunpack.c.l.b16 %v2535
        %v2613 = vunpack.c.l.b16 %v2536
        %v2614 = vunpack.c.h.b16 %v2536
        %v2615 = vunpack.c.l.b16 %v2537
        %v2616 = vunpack.c.l.b16 %v2538
        %v2617 = vunpack.c.h.b16 %v2538
        %v2618 = vunpack.c.l.b16 %v2539
        %v2619 = vunpack.c.l.b16 %v2540
        %v2620 = vunpack.c.h.b16 %v2540
        %v2621 = vunpack.c.l.b16 %v2541
        %v2622 = vpack.c.b16 %v2577, %v2574
        %v2623 = vpack.c.b16 %v2578, %v2575
        %v2624 = vpack.c.b16 %v2579, %v2576
        %v2625 = vpack.c.b16 %v2583, %v2580
        %v2626 = vpack.c.b16 %v2584, %v2581
        %v2627 = vpack.c.b16 %v2585, %v2582
        %v2628 = vpack.c.b16 %v2589, %v2586
        %v2629 = vpack.c.b16 %v2590, %v2587
        %v2630 = vpack.c.b16 %v2591, %v2588
        %v2631 = vpack.c.b16 %v2595, %v2592
        %v2632 = vpack.c.b16 %v2596, %v2593
        %v2633 = vpack.c.b16 %v2597, %v2594
        %v2634 = vpack.c.b16 %v2601, %v2598
        %v2635 = vpack.c.b16 %v2602, %v2599
        %v2636 = vpack.c.b16 %v2603, %v2600
        %v2637 = vpack.c.b16 %v2607, %v2604
        %v2638 = vpack.c.b16 %v2608, %v2605
        %v2639 = vpack.c.b16 %v2609, %v2606
        %v2640 = vpack.c.b16 %v2613, %v2610
        %v2641 = vpack.c.b16 %v2614, %v2611
        %v2642 = vpack.c.b16 %v2615, %v2612
        %v2643 = vpack.c.b16 %v2619, %v2616
        %v2644 = vpack.c.b16 %v2620, %v2617
        %v2645 = vpack.c.b16 %v2621, %v2618
        %2670 = vmatprep.subr.bf16.mxu0 %v2644
        %2671 = vmatpush1.bf16.msra.mxu0 %v2643
        %2672 = vmatprep.subr.bf16.mxu0 %v2641
        %2673 = vmatpush1.bf16.msra.mxu0 %v2640
        %2674 = vmatprep.subr.bf16.mxu0 %v2638
        %2675 = vmatpush1.bf16.msra.mxu0 %v2637
        %2676 = vmatprep.subr.bf16.mxu0 %v2635
        %2677 = vmatpush1.bf16.msra.mxu0 %v2634
        %2678 = vmatprep.subr.bf16.mxu0 %v2632
        %2679 = vmatpush1.bf16.msra.mxu0 %v2631
        %2680 = vmatprep.subr.bf16.mxu0 %v2629
        %2681 = vmatpush1.bf16.msra.mxu0 %v2628
        %2682 = vmatprep.subr.bf16.mxu0 %v2626
        %2683 = vmatpush1.bf16.msra.mxu0 %v2625
        %2684 = vmatprep.subr.bf16.mxu0 %v2623
        %2685 = vmatpush1.bf16.msra.mxu0 %v2622
        %2686 = vmatprep.subr.bf16.mxu0 0
        %2687 = vmatpush2.bf16.msra.mxu0 0
        %2688 = vmatprep.subr.bf16.mxu0 0
        %2689 = vmatpush2.bf16.msra.mxu0 0
        %2690 = vmatprep.subr.bf16.mxu0 0
        %2691 = vmatpush2.bf16.msra.mxu0 0
        %2692 = vmatprep.subr.bf16.mxu0 0
        %2693 = vmatpush2.bf16.msra.mxu0 0
        %2694 = vmatprep.subr.bf16.mxu0 0
        %2695 = vmatpush2.bf16.msra.mxu0 0
        %2696 = vmatprep.subr.bf16.mxu0 0
        %2697 = vmatpush2.bf16.msra.mxu0 0
        %2698 = vmatprep.subr.bf16.mxu0 0
        %2699 = vmatpush2.bf16.msra.mxu0 0
        %2700 = vmatprep.subr.bf16.mxu0 0
        %2701 = vmatpush2.bf16.msra.mxu0 0
        %2702 = vmatprep.mubr.bf16.mxu0 0
        %2703 = vmatmul.mubr.bf16.gmra.mxu0 %v1832
        %v2704 = vpop.f32.mrf.mxu0
        %v2705 = vadd.f32 0.0, %v2704
        %v2706 = vpop.f32.mrf.mxu0
        %v2707 = vadd.f32 0.0, %v2706
        %v2708 = vpop.f32.mrf.mxu0
        %v2709 = vadd.f32 0.0, %v2708
        %v2710 = vpop.f32.mrf.mxu0
        %v2711 = vadd.f32 0.0, %v2710
        %2712 = vmatprep.mubr.bf16.mxu0 0
        %2713 = vmatmul.mubr.bf16.gmra.mxu0 %v1833
        %v2714 = vpop.f32.mrf.mxu0
        %v2715 = vadd.f32 0.0, %v2714
        %v2716 = vpop.f32.mrf.mxu0
        %v2717 = vadd.f32 0.0, %v2716
        %v2718 = vpop.f32.mrf.mxu0
        %v2719 = vadd.f32 0.0, %v2718
        %v2720 = vpop.f32.mrf.mxu0
        %v2721 = vadd.f32 0.0, %v2720
        %2722 = vmatprep.mubr.bf16.mxu0 0
        %2723 = vmatmul.mubr.bf16.gmra.mxu0 %v1834
        %v2724 = vpop.f32.mrf.mxu0
        %v2725 = vadd.f32 0.0, %v2724
        %v2726 = vpop.f32.mrf.mxu0
        %v2727 = vadd.f32 0.0, %v2726
        %v2728 = vpop.f32.mrf.mxu0
        %v2729 = vadd.f32 0.0, %v2728
        %v2730 = vpop.f32.mrf.mxu0
        %v2731 = vadd.f32 0.0, %v2730
        %2732 = vmatprep.mubr.bf16.mxu0 0
        %2733 = vmatmul.mubr.bf16.gmra.mxu0 %v1835
        %v2734 = vpop.f32.mrf.mxu0
        %v2735 = vadd.f32 0.0, %v2734
        %v2736 = vpop.f32.mrf.mxu0
        %v2737 = vadd.f32 0.0, %v2736
        %v2738 = vpop.f32.mrf.mxu0
        %v2739 = vadd.f32 0.0, %v2738
        %v2740 = vpop.f32.mrf.mxu0
        %v2741 = vadd.f32 0.0, %v2740
        %2742 = vmatprep.mubr.bf16.mxu0 0
        %2743 = vmatmul.mubr.bf16.gmra.mxu0 %v1836
        %v2744 = vpop.f32.mrf.mxu0
        %v2745 = vadd.f32 0.0, %v2744
        %v2746 = vpop.f32.mrf.mxu0
        %v2747 = vadd.f32 0.0, %v2746
        %v2748 = vpop.f32.mrf.mxu0
        %v2749 = vadd.f32 0.0, %v2748
        %v2750 = vpop.f32.mrf.mxu0
        %v2751 = vadd.f32 0.0, %v2750
        %2752 = vmatprep.mubr.bf16.mxu0 0
        %2753 = vmatmul.mubr.bf16.gmra.mxu0 %v1837
        %v2754 = vpop.f32.mrf.mxu0
        %v2755 = vadd.f32 0.0, %v2754
        %v2756 = vpop.f32.mrf.mxu0
        %v2757 = vadd.f32 0.0, %v2756
        %v2758 = vpop.f32.mrf.mxu0
        %v2759 = vadd.f32 0.0, %v2758
        %v2760 = vpop.f32.mrf.mxu0
        %v2761 = vadd.f32 0.0, %v2760
        %2762 = vmatprep.mubr.bf16.mxu0 0
        %2763 = vmatmul.mubr.bf16.gmra.mxu0 %v1838
        %v2764 = vpop.f32.mrf.mxu0
        %v2765 = vadd.f32 0.0, %v2764
        %v2766 = vpop.f32.mrf.mxu0
        %v2767 = vadd.f32 0.0, %v2766
        %v2768 = vpop.f32.mrf.mxu0
        %v2769 = vadd.f32 0.0, %v2768
        %v2770 = vpop.f32.mrf.mxu0
        %v2771 = vadd.f32 0.0, %v2770
        %2772 = vmatprep.mubr.bf16.mxu0 0
        %2773 = vmatmul.mubr.bf16.gmra.mxu0 %v1839
        %v2774 = vpop.f32.mrf.mxu0
        %v2775 = vadd.f32 0.0, %v2774
        %v2776 = vpop.f32.mrf.mxu0
        %v2777 = vadd.f32 0.0, %v2776
        %v2778 = vpop.f32.mrf.mxu0
        %v2779 = vadd.f32 0.0, %v2778
        %v2780 = vpop.f32.mrf.mxu0
        %v2781 = vadd.f32 0.0, %v2780
        %2782 = vmatprep.mubr.bf16.mxu0 0
        %2783 = vmatmul.mubr.bf16.gmra.mxu0 %v1840
        %v2784 = vpop.f32.mrf.mxu0
        %v2785 = vadd.f32 0.0, %v2784
        %v2786 = vpop.f32.mrf.mxu0
        %v2787 = vadd.f32 0.0, %v2786
        %v2788 = vpop.f32.mrf.mxu0
        %v2789 = vadd.f32 0.0, %v2788
        %v2790 = vpop.f32.mrf.mxu0
        %v2791 = vadd.f32 0.0, %v2790
        %2792 = vmatprep.mubr.bf16.mxu0 0
        %2793 = vmatmul.mubr.bf16.gmra.mxu0 %v1841
        %v2794 = vpop.f32.mrf.mxu0
        %v2795 = vadd.f32 0.0, %v2794
        %v2796 = vpop.f32.mrf.mxu0
        %v2797 = vadd.f32 0.0, %v2796
        %v2798 = vpop.f32.mrf.mxu0
        %v2799 = vadd.f32 0.0, %v2798
        %v2800 = vpop.f32.mrf.mxu0
        %v2801 = vadd.f32 0.0, %v2800
        %2802 = vmatprep.mubr.bf16.mxu0 0
        %2803 = vmatmul.mubr.bf16.gmra.mxu0 %v1842
        %v2804 = vpop.f32.mrf.mxu0
        %v2805 = vadd.f32 0.0, %v2804
        %v2806 = vpop.f32.mrf.mxu0
        %v2807 = vadd.f32 0.0, %v2806
        %v2808 = vpop.f32.mrf.mxu0
        %v2809 = vadd.f32 0.0, %v2808
        %v2810 = vpop.f32.mrf.mxu0
        %v2811 = vadd.f32 0.0, %v2810
        %2812 = vmatprep.mubr.bf16.mxu0 0
        %2813 = vmatmul.mubr.bf16.gmra.mxu0 %v1843
        %v2814 = vpop.f32.mrf.mxu0
        %v2815 = vadd.f32 0.0, %v2814
        %v2816 = vpop.f32.mrf.mxu0
        %v2817 = vadd.f32 0.0, %v2816
        %v2818 = vpop.f32.mrf.mxu0
        %v2819 = vadd.f32 0.0, %v2818
        %v2820 = vpop.f32.mrf.mxu0
        %v2821 = vadd.f32 0.0, %v2820
        %2822 = vmatprep.mubr.bf16.mxu0 0
        %2823 = vmatmul.mubr.bf16.gmra.mxu0 %v1844
        %v2824 = vpop.f32.mrf.mxu0
        %v2825 = vadd.f32 0.0, %v2824
        %v2826 = vpop.f32.mrf.mxu0
        %v2827 = vadd.f32 0.0, %v2826
        %v2828 = vpop.f32.mrf.mxu0
        %v2829 = vadd.f32 0.0, %v2828
        %v2830 = vpop.f32.mrf.mxu0
        %v2831 = vadd.f32 0.0, %v2830
        %2832 = vmatprep.mubr.bf16.mxu0 0
        %2833 = vmatmul.mubr.bf16.gmra.mxu0 %v1845
        %v2834 = vpop.f32.mrf.mxu0
        %v2835 = vadd.f32 0.0, %v2834
        %v2836 = vpop.f32.mrf.mxu0
        %v2837 = vadd.f32 0.0, %v2836
        %v2838 = vpop.f32.mrf.mxu0
        %v2839 = vadd.f32 0.0, %v2838
        %v2840 = vpop.f32.mrf.mxu0
        %v2841 = vadd.f32 0.0, %v2840
        %2842 = vmatprep.mubr.bf16.mxu0 0
        %2843 = vmatmul.mubr.bf16.gmra.mxu0 %v1846
        %v2844 = vpop.f32.mrf.mxu0
        %v2845 = vadd.f32 0.0, %v2844
        %v2846 = vpop.f32.mrf.mxu0
        %v2847 = vadd.f32 0.0, %v2846
        %v2848 = vpop.f32.mrf.mxu0
        %v2849 = vadd.f32 0.0, %v2848
        %v2850 = vpop.f32.mrf.mxu0
        %v2851 = vadd.f32 0.0, %v2850
        %2852 = vmatprep.mubr.bf16.mxu0 0
        %2853 = vmatmul.mubr.bf16.gmra.mxu0 %v1847
        %v2854 = vpop.f32.mrf.mxu0
        %v2855 = vadd.f32 0.0, %v2854
        %v2856 = vpop.f32.mrf.mxu0
        %v2857 = vadd.f32 0.0, %v2856
        %v2858 = vpop.f32.mrf.mxu0
        %v2859 = vadd.f32 0.0, %v2858
        %v2860 = vpop.f32.mrf.mxu0
        %v2861 = vadd.f32 0.0, %v2860
        %2862 = vdwg.mxu0
        %2863 = vmatprep.subr.bf16.mxu0 0
        %2864 = vmatpush1.bf16.msra.mxu0 %v2645
        %2865 = vmatprep.subr.bf16.mxu0 0
        %2866 = vmatpush1.bf16.msra.mxu0 %v2642
        %2867 = vmatprep.subr.bf16.mxu0 0
        %2868 = vmatpush1.bf16.msra.mxu0 %v2639
        %2869 = vmatprep.subr.bf16.mxu0 0
        %2870 = vmatpush1.bf16.msra.mxu0 %v2636
        %2871 = vmatprep.subr.bf16.mxu0 0
        %2872 = vmatpush1.bf16.msra.mxu0 %v2633
        %2873 = vmatprep.subr.bf16.mxu0 0
        %2874 = vmatpush1.bf16.msra.mxu0 %v2630
        %2875 = vmatprep.subr.bf16.mxu0 0
        %2876 = vmatpush1.bf16.msra.mxu0 %v2627
        %2877 = vmatprep.subr.bf16.mxu0 0
        %2878 = vmatpush1.bf16.msra.mxu0 %v2624
        %2879 = vmatprep.subr.bf16.mxu0 0
        %2880 = vmatpush2.bf16.msra.mxu0 0
        %2881 = vmatprep.subr.bf16.mxu0 0
        %2882 = vmatpush2.bf16.msra.mxu0 0
        %2883 = vmatprep.subr.bf16.mxu0 0
        %2884 = vmatpush2.bf16.msra.mxu0 0
        %2885 = vmatprep.subr.bf16.mxu0 0
        %2886 = vmatpush2.bf16.msra.mxu0 0
        %2887 = vmatprep.subr.bf16.mxu0 0
        %2888 = vmatpush2.bf16.msra.mxu0 0
        %2889 = vmatprep.subr.bf16.mxu0 0
        %2890 = vmatpush2.bf16.msra.mxu0 0
        %2891 = vmatprep.subr.bf16.mxu0 0
        %2892 = vmatpush2.bf16.msra.mxu0 0
        %2893 = vmatprep.subr.bf16.mxu0 0
        %2894 = vmatpush2.bf16.msra.mxu0 0
        %2895 = vmatprep.mubr.bf16.mxu0 0
        %2896 = vmatmul.mubr.bf16.gmra.mxu0 %v1832
        %v2897 = vpop.f32.mrf.mxu0
        %v2898 = vadd.f32 0.0, %v2897
        %v2899 = vpop.f32.mrf.mxu0
        %v2900 = vpop.f32.mrf.mxu0
        %v2901 = vadd.f32 0.0, %v2900
        %v2902 = vpop.f32.mrf.mxu0
        %2903 = vmatprep.mubr.bf16.mxu0 0
        %2904 = vmatmul.mubr.bf16.gmra.mxu0 %v1833
        %v2905 = vpop.f32.mrf.mxu0
        %v2906 = vadd.f32 0.0, %v2905
        %v2907 = vpop.f32.mrf.mxu0
        %v2908 = vpop.f32.mrf.mxu0
        %v2909 = vadd.f32 0.0, %v2908
        %v2910 = vpop.f32.mrf.mxu0
        %2911 = vmatprep.mubr.bf16.mxu0 0
        %2912 = vmatmul.mubr.bf16.gmra.mxu0 %v1834
        %v2913 = vpop.f32.mrf.mxu0
        %v2914 = vadd.f32 0.0, %v2913
        %v2915 = vpop.f32.mrf.mxu0
        %v2916 = vpop.f32.mrf.mxu0
        %v2917 = vadd.f32 0.0, %v2916
        %v2918 = vpop.f32.mrf.mxu0
        %2919 = vmatprep.mubr.bf16.mxu0 0
        %2920 = vmatmul.mubr.bf16.gmra.mxu0 %v1835
        %v2921 = vpop.f32.mrf.mxu0
        %v2922 = vadd.f32 0.0, %v2921
        %v2923 = vpop.f32.mrf.mxu0
        %v2924 = vpop.f32.mrf.mxu0
        %v2925 = vadd.f32 0.0, %v2924
        %v2926 = vpop.f32.mrf.mxu0
        %2927 = vmatprep.mubr.bf16.mxu0 0
        %2928 = vmatmul.mubr.bf16.gmra.mxu0 %v1836
        %v2929 = vpop.f32.mrf.mxu0
        %v2930 = vadd.f32 0.0, %v2929
        %v2931 = vpop.f32.mrf.mxu0
        %v2932 = vpop.f32.mrf.mxu0
        %v2933 = vadd.f32 0.0, %v2932
        %v2934 = vpop.f32.mrf.mxu0
        %2935 = vmatprep.mubr.bf16.mxu0 0
        %2936 = vmatmul.mubr.bf16.gmra.mxu0 %v1837
        %v2937 = vpop.f32.mrf.mxu0
        %v2938 = vadd.f32 0.0, %v2937
        %v2939 = vpop.f32.mrf.mxu0
        %v2940 = vpop.f32.mrf.mxu0
        %v2941 = vadd.f32 0.0, %v2940
        %v2942 = vpop.f32.mrf.mxu0
        %2943 = vmatprep.mubr.bf16.mxu0 0
        %2944 = vmatmul.mubr.bf16.gmra.mxu0 %v1838
        %v2945 = vpop.f32.mrf.mxu0
        %v2946 = vadd.f32 0.0, %v2945
        %v2947 = vpop.f32.mrf.mxu0
        %v2948 = vpop.f32.mrf.mxu0
        %v2949 = vadd.f32 0.0, %v2948
        %v2950 = vpop.f32.mrf.mxu0
        %2951 = vmatprep.mubr.bf16.mxu0 0
        %2952 = vmatmul.mubr.bf16.gmra.mxu0 %v1839
        %v2953 = vpop.f32.mrf.mxu0
        %v2954 = vadd.f32 0.0, %v2953
        %v2955 = vpop.f32.mrf.mxu0
        %v2956 = vpop.f32.mrf.mxu0
        %v2957 = vadd.f32 0.0, %v2956
        %v2958 = vpop.f32.mrf.mxu0
        %2959 = vmatprep.mubr.bf16.mxu0 0
        %2960 = vmatmul.mubr.bf16.gmra.mxu0 %v1840
        %v2961 = vpop.f32.mrf.mxu0
        %v2962 = vadd.f32 0.0, %v2961
        %v2963 = vpop.f32.mrf.mxu0
        %v2964 = vpop.f32.mrf.mxu0
        %v2965 = vadd.f32 0.0, %v2964
        %v2966 = vpop.f32.mrf.mxu0
        %2967 = vmatprep.mubr.bf16.mxu0 0
        %2968 = vmatmul.mubr.bf16.gmra.mxu0 %v1841
        %v2969 = vpop.f32.mrf.mxu0
        %v2970 = vadd.f32 0.0, %v2969
        %v2971 = vpop.f32.mrf.mxu0
        %v2972 = vpop.f32.mrf.mxu0
        %v2973 = vadd.f32 0.0, %v2972
        %v2974 = vpop.f32.mrf.mxu0
        %2975 = vmatprep.mubr.bf16.mxu0 0
        %2976 = vmatmul.mubr.bf16.gmra.mxu0 %v1842
        %v2977 = vpop.f32.mrf.mxu0
        %v2978 = vadd.f32 0.0, %v2977
        %v2979 = vpop.f32.mrf.mxu0
        %v2980 = vpop.f32.mrf.mxu0
        %v2981 = vadd.f32 0.0, %v2980
        %v2982 = vpop.f32.mrf.mxu0
        %2983 = vmatprep.mubr.bf16.mxu0 0
        %2984 = vmatmul.mubr.bf16.gmra.mxu0 %v1843
        %v2985 = vpop.f32.mrf.mxu0
        %v2986 = vadd.f32 0.0, %v2985
        %v2987 = vpop.f32.mrf.mxu0
        %v2988 = vpop.f32.mrf.mxu0
        %v2989 = vadd.f32 0.0, %v2988
        %v2990 = vpop.f32.mrf.mxu0
        %2991 = vmatprep.mubr.bf16.mxu0 0
        %2992 = vmatmul.mubr.bf16.gmra.mxu0 %v1844
        %v2993 = vpop.f32.mrf.mxu0
        %v2994 = vadd.f32 0.0, %v2993
        %v2995 = vpop.f32.mrf.mxu0
        %v2996 = vpop.f32.mrf.mxu0
        %v2997 = vadd.f32 0.0, %v2996
        %v2998 = vpop.f32.mrf.mxu0
        %2999 = vmatprep.mubr.bf16.mxu0 0
        %3000 = vmatmul.mubr.bf16.gmra.mxu0 %v1845
        %v3001 = vpop.f32.mrf.mxu0
        %v3002 = vadd.f32 0.0, %v3001
        %v3003 = vpop.f32.mrf.mxu0
        %v3004 = vpop.f32.mrf.mxu0
        %v3005 = vadd.f32 0.0, %v3004
        %v3006 = vpop.f32.mrf.mxu0
        %3007 = vmatprep.mubr.bf16.mxu0 0
        %3008 = vmatmul.mubr.bf16.gmra.mxu0 %v1846
        %v3009 = vpop.f32.mrf.mxu0
        %v3010 = vadd.f32 0.0, %v3009
        %v3011 = vpop.f32.mrf.mxu0
        %v3012 = vpop.f32.mrf.mxu0
        %v3013 = vadd.f32 0.0, %v3012
        %v3014 = vpop.f32.mrf.mxu0
        %3015 = vmatprep.mubr.bf16.mxu0 0
        %3016 = vmatmul.mubr.bf16.gmra.mxu0 %v1847
        %v3017 = vpop.f32.mrf.mxu0
        %v3018 = vadd.f32 0.0, %v3017
        %v3019 = vpop.f32.mrf.mxu0
        %v3020 = vpop.f32.mrf.mxu0
        %v3021 = vadd.f32 0.0, %v3020
        %v3022 = vpop.f32.mrf.mxu0
        %3023 = vdwg.mxu0
        %v3024 = vrot.slane %v2705, 7
        %v3025 = vrot.slane %v2709, 7
        %v3026 = vrot.slane %v2715, 7
        %v3027 = vrot.slane %v2719, 7
        %v3028 = vrot.slane %v2725, 7
        %v3029 = vrot.slane %v2729, 7
        %v3030 = vrot.slane %v2735, 7
        %v3031 = vrot.slane %v2739, 7
        %v3032 = vrot.slane %v2745, 7
        %v3033 = vrot.slane %v2749, 7
        %v3034 = vrot.slane %v2755, 7
        %v3035 = vrot.slane %v2759, 7
        %v3036 = vrot.slane %v2765, 7
        %v3037 = vrot.slane %v2769, 7
        %v3038 = vrot.slane %v2775, 7
        %v3039 = vrot.slane %v2779, 7
        %v3040 = vrot.slane %v2785, 7
        %v3041 = vrot.slane %v2789, 7
        %v3042 = vrot.slane %v2795, 7
        %v3043 = vrot.slane %v2799, 7
        %v3044 = vrot.slane %v2805, 7
        %v3045 = vrot.slane %v2809, 7
        %v3046 = vrot.slane %v2815, 7
        %v3047 = vrot.slane %v2819, 7
        %v3048 = vrot.slane %v2825, 7
        %v3049 = vrot.slane %v2829, 7
        %v3050 = vrot.slane %v2835, 7
        %v3051 = vrot.slane %v2839, 7
        %v3052 = vrot.slane %v2845, 7
        %v3053 = vrot.slane %v2849, 7
        %v3054 = vrot.slane %v2855, 7
        %v3055 = vrot.slane %v2859, 7
        %v3056 = vlaneseq
        %v3057 = vshrl.u32 %v3056, 7
        %vm3058 = vcmp.lt.s32.totalorder %v3057, 1
        %v3059 = vsel %vm3058, %v3054, %v3055
        %v3060 = vsel %vm3058, %v3053, %v3054
        %v3061 = vsel %vm3058, %v3052, %v3053
        %v3062 = vsel %vm3058, %v3051, %v3052
        %v3063 = vsel %vm3058, %v3050, %v3051
        %v3064 = vsel %vm3058, %v3049, %v3050
        %v3065 = vsel %vm3058, %v3048, %v3049
        %v3066 = vsel %vm3058, %v3047, %v3048
        %v3067 = vsel %vm3058, %v3046, %v3047
        %v3068 = vsel %vm3058, %v3045, %v3046
        %v3069 = vsel %vm3058, %v3044, %v3045
        %v3070 = vsel %vm3058, %v3043, %v3044
        %v3071 = vsel %vm3058, %v3042, %v3043
        %v3072 = vsel %vm3058, %v3041, %v3042
        %v3073 = vsel %vm3058, %v3040, %v3041
        %v3074 = vsel %vm3058, %v3039, %v3040
        %v3075 = vsel %vm3058, %v3038, %v3039
        %v3076 = vsel %vm3058, %v3037, %v3038
        %v3077 = vsel %vm3058, %v3036, %v3037
        %v3078 = vsel %vm3058, %v3035, %v3036
        %v3079 = vsel %vm3058, %v3034, %v3035
        %v3080 = vsel %vm3058, %v3033, %v3034
        %v3081 = vsel %vm3058, %v3032, %v3033
        %v3082 = vsel %vm3058, %v3031, %v3032
        %v3083 = vsel %vm3058, %v3030, %v3031
        %v3084 = vsel %vm3058, %v3029, %v3030
        %v3085 = vsel %vm3058, %v3028, %v3029
        %v3086 = vsel %vm3058, %v3027, %v3028
        %v3087 = vsel %vm3058, %v3026, %v3027
        %v3088 = vsel %vm3058, %v3025, %v3026
        %v3089 = vsel %vm3058, %v3024, %v3025
        %v3090 = vsel %vm3058, %v3055, %v3024
        %3091 = vset.pattern.permute.xlu0 1
        %3092 = vperm.xlu0 %3091, %v667
        %v3093 = vpop.permute.xlu0 %3092
        %3095 = vset.pattern.permute.xlu0 1
        %3096 = vperm.xlu0 %3095, %v668
        %v3097 = vpop.permute.xlu0 %3096
        %3099 = vset.pattern.permute.xlu0 1
        %3100 = vperm.xlu0 %3099, %v669
        %v3101 = vpop.permute.xlu0 %3100
        %3103 = vset.pattern.permute.xlu0 1
        %3104 = vperm.xlu0 %3103, %v670
        %v3105 = vpop.permute.xlu0 %3104
        %3107 = vset.pattern.permute.xlu0 1
        %3108 = vperm.xlu0 %3107, %v671
        %v3109 = vpop.permute.xlu0 %3108
        %3111 = vset.pattern.permute.xlu0 1
        %3112 = vperm.xlu0 %3111, %v672
        %v3113 = vpop.permute.xlu0 %3112
        %3115 = vset.pattern.permute.xlu0 1
        %3116 = vperm.xlu0 %3115, %v673
        %v3117 = vpop.permute.xlu0 %3116
        %3119 = vset.pattern.permute.xlu0 1
        %3120 = vperm.xlu0 %3119, %v674
        %v3121 = vpop.permute.xlu0 %3120
        %3123 = vset.pattern.permute.xlu0 1
        %3124 = vperm.xlu0 %3123, %v675
        %v3125 = vpop.permute.xlu0 %3124
        %3127 = vset.pattern.permute.xlu0 1
        %3128 = vperm.xlu0 %3127, %v676
        %v3129 = vpop.permute.xlu0 %3128
        %3131 = vset.pattern.permute.xlu0 1
        %3132 = vperm.xlu0 %3131, %v677
        %v3133 = vpop.permute.xlu0 %3132
        %3135 = vset.pattern.permute.xlu0 1
        %3136 = vperm.xlu0 %3135, %v678
        %v3137 = vpop.permute.xlu0 %3136
        %3139 = vset.pattern.permute.xlu0 1
        %3140 = vperm.xlu0 %3139, %v679
        %v3141 = vpop.permute.xlu0 %3140
        %3143 = vset.pattern.permute.xlu0 1
        %3144 = vperm.xlu0 %3143, %v680
        %v3145 = vpop.permute.xlu0 %3144
        %3147 = vset.pattern.permute.xlu0 1
        %3148 = vperm.xlu0 %3147, %v681
        %v3149 = vpop.permute.xlu0 %3148
        %3151 = vset.pattern.permute.xlu0 1
        %3152 = vperm.xlu0 %3151, %v682
        %v3153 = vpop.permute.xlu0 %3152
        %3155 = vset.pattern.permute.xlu0 1
        %3156 = vperm.xlu0 %3155, %v683
        %v3157 = vpop.permute.xlu0 %3156
        %3159 = vset.pattern.permute.xlu0 1
        %3160 = vperm.xlu0 %3159, %v684
        %v3161 = vpop.permute.xlu0 %3160
        %3163 = vset.pattern.permute.xlu0 1
        %3164 = vperm.xlu0 %3163, %v685
        %v3165 = vpop.permute.xlu0 %3164
        %3167 = vset.pattern.permute.xlu0 1
        %3168 = vperm.xlu0 %3167, %v686
        %v3169 = vpop.permute.xlu0 %3168
        %3171 = vset.pattern.permute.xlu0 1
        %3172 = vperm.xlu0 %3171, %v687
        %v3173 = vpop.permute.xlu0 %3172
        %3175 = vset.pattern.permute.xlu0 1
        %3176 = vperm.xlu0 %3175, %v688
        %v3177 = vpop.permute.xlu0 %3176
        %3179 = vset.pattern.permute.xlu0 1
        %3180 = vperm.xlu0 %3179, %v689
        %v3181 = vpop.permute.xlu0 %3180
        %3183 = vset.pattern.permute.xlu0 1
        %3184 = vperm.xlu0 %3183, %v690
        %v3185 = vpop.permute.xlu0 %3184
        %3187 = vset.pattern.permute.xlu0 1
        %3188 = vperm.xlu0 %3187, %v691
        %v3189 = vpop.permute.xlu0 %3188
        %3191 = vset.pattern.permute.xlu0 1
        %3192 = vperm.xlu0 %3191, %v692
        %v3193 = vpop.permute.xlu0 %3192
        %3195 = vset.pattern.permute.xlu0 1
        %3196 = vperm.xlu0 %3195, %v693
        %v3197 = vpop.permute.xlu0 %3196
        %3199 = vset.pattern.permute.xlu0 1
        %3200 = vperm.xlu0 %3199, %v694
        %v3201 = vpop.permute.xlu0 %3200
        %3203 = vset.pattern.permute.xlu0 1
        %3204 = vperm.xlu0 %3203, %v695
        %v3205 = vpop.permute.xlu0 %3204
        %3207 = vset.pattern.permute.xlu0 1
        %3208 = vperm.xlu0 %3207, %v696
        %v3209 = vpop.permute.xlu0 %3208
        %3211 = vset.pattern.permute.xlu0 1
        %3212 = vperm.xlu0 %3211, %v697
        %v3213 = vpop.permute.xlu0 %3212
        %3215 = vset.pattern.permute.xlu0 1
        %3216 = vperm.xlu0 %3215, %v698
        %v3217 = vpop.permute.xlu0 %3216
        %v3219 = vmul.f32 %v3093, %v3090
        %v3220 = vmul.f32 %v3097, %v3089
        %v3221 = vmul.f32 %v3101, %v3088
        %v3222 = vmul.f32 %v3105, %v3087
        %v3223 = vmul.f32 %v3109, %v3086
        %v3224 = vmul.f32 %v3113, %v3085
        %v3225 = vmul.f32 %v3117, %v3084
        %v3226 = vmul.f32 %v3121, %v3083
        %v3227 = vmul.f32 %v3125, %v3082
        %v3228 = vmul.f32 %v3129, %v3081
        %v3229 = vmul.f32 %v3133, %v3080
        %v3230 = vmul.f32 %v3137, %v3079
        %v3231 = vmul.f32 %v3141, %v3078
        %v3232 = vmul.f32 %v3145, %v3077
        %v3233 = vmul.f32 %v3149, %v3076
        %v3234 = vmul.f32 %v3153, %v3075
        %v3235 = vmul.f32 %v3157, %v3074
        %v3236 = vmul.f32 %v3161, %v3073
        %v3237 = vmul.f32 %v3165, %v3072
        %v3238 = vmul.f32 %v3169, %v3071
        %v3239 = vmul.f32 %v3173, %v3070
        %v3240 = vmul.f32 %v3177, %v3069
        %v3241 = vmul.f32 %v3181, %v3068
        %v3242 = vmul.f32 %v3185, %v3067
        %v3243 = vmul.f32 %v3189, %v3066
        %v3244 = vmul.f32 %v3193, %v3065
        %v3245 = vmul.f32 %v3197, %v3064
        %v3246 = vmul.f32 %v3201, %v3063
        %v3247 = vmul.f32 %v3205, %v3062
        %v3248 = vmul.f32 %v3209, %v3061
        %v3249 = vmul.f32 %v3213, %v3060
        %v3250 = vmul.f32 %v3217, %v3059
        %v3251 = vrot.slane %v2898, 1
        %v3252 = vrot.slane %v2901, 1
        %v3253 = vrot.slane %v2906, 1
        %v3254 = vrot.slane %v2909, 1
        %v3255 = vrot.slane %v2914, 1
        %v3256 = vrot.slane %v2917, 1
        %v3257 = vrot.slane %v2922, 1
        %v3258 = vrot.slane %v2925, 1
        %v3259 = vrot.slane %v2930, 1
        %v3260 = vrot.slane %v2933, 1
        %v3261 = vrot.slane %v2938, 1
        %v3262 = vrot.slane %v2941, 1
        %v3263 = vrot.slane %v2946, 1
        %v3264 = vrot.slane %v2949, 1
        %v3265 = vrot.slane %v2954, 1
        %v3266 = vrot.slane %v2957, 1
        %v3267 = vrot.slane %v2962, 1
        %v3268 = vrot.slane %v2965, 1
        %v3269 = vrot.slane %v2970, 1
        %v3270 = vrot.slane %v2973, 1
        %v3271 = vrot.slane %v2978, 1
        %v3272 = vrot.slane %v2981, 1
        %v3273 = vrot.slane %v2986, 1
        %v3274 = vrot.slane %v2989, 1
        %v3275 = vrot.slane %v2994, 1
        %v3276 = vrot.slane %v2997, 1
        %v3277 = vrot.slane %v3002, 1
        %v3278 = vrot.slane %v3005, 1
        %v3279 = vrot.slane %v3010, 1
        %v3280 = vrot.slane %v3013, 1
        %v3281 = vrot.slane %v3018, 1
        %v3282 = vrot.slane %v3021, 1
        %vm3283 = vcmp.lt.s32.totalorder %v3057, 7
        %v3284 = vsel %vm3283, %v3281, %v3282
        %v3285 = vsel %vm3283, %v3280, %v3281
        %v3286 = vsel %vm3283, %v3279, %v3280
        %v3287 = vsel %vm3283, %v3278, %v3279
        %v3288 = vsel %vm3283, %v3277, %v3278
        %v3289 = vsel %vm3283, %v3276, %v3277
        %v3290 = vsel %vm3283, %v3275, %v3276
        %v3291 = vsel %vm3283, %v3274, %v3275
        %v3292 = vsel %vm3283, %v3273, %v3274
        %v3293 = vsel %vm3283, %v3272, %v3273
        %v3294 = vsel %vm3283, %v3271, %v3272
        %v3295 = vsel %vm3283, %v3270, %v3271
        %v3296 = vsel %vm3283, %v3269, %v3270
        %v3297 = vsel %vm3283, %v3268, %v3269
        %v3298 = vsel %vm3283, %v3267, %v3268
        %v3299 = vsel %vm3283, %v3266, %v3267
        %v3300 = vsel %vm3283, %v3265, %v3266
        %v3301 = vsel %vm3283, %v3264, %v3265
        %v3302 = vsel %vm3283, %v3263, %v3264
        %v3303 = vsel %vm3283, %v3262, %v3263
        %v3304 = vsel %vm3283, %v3261, %v3262
        %v3305 = vsel %vm3283, %v3260, %v3261
        %v3306 = vsel %vm3283, %v3259, %v3260
        %v3307 = vsel %vm3283, %v3258, %v3259
        %v3308 = vsel %vm3283, %v3257, %v3258
        %v3309 = vsel %vm3283, %v3256, %v3257
        %v3310 = vsel %vm3283, %v3255, %v3256
        %v3311 = vsel %vm3283, %v3254, %v3255
        %v3312 = vsel %vm3283, %v3253, %v3254
        %v3313 = vsel %vm3283, %v3252, %v3253
        %v3314 = vsel %vm3283, %v3251, %v3252
        %v3315 = vsel %vm3283, %v3282, %v3251
        %3316 = vset.pattern.permute.xlu0 2
        %3317 = vperm.xlu0 %3316, %v667
        %v3318 = vpop.permute.xlu0 %3317
        %3320 = vset.pattern.permute.xlu0 2
        %3321 = vperm.xlu0 %3320, %v668
        %v3322 = vpop.permute.xlu0 %3321
        %3324 = vset.pattern.permute.xlu0 2
        %3325 = vperm.xlu0 %3324, %v669
        %v3326 = vpop.permute.xlu0 %3325
        %3328 = vset.pattern.permute.xlu0 2
        %3329 = vperm.xlu0 %3328, %v670
        %v3330 = vpop.permute.xlu0 %3329
        %3332 = vset.pattern.permute.xlu0 2
        %3333 = vperm.xlu0 %3332, %v671
        %v3334 = vpop.permute.xlu0 %3333
        %3336 = vset.pattern.permute.xlu0 2
        %3337 = vperm.xlu0 %3336, %v672
        %v3338 = vpop.permute.xlu0 %3337
        %3340 = vset.pattern.permute.xlu0 2
        %3341 = vperm.xlu0 %3340, %v673
        %v3342 = vpop.permute.xlu0 %3341
        %3344 = vset.pattern.permute.xlu0 2
        %3345 = vperm.xlu0 %3344, %v674
        %v3346 = vpop.permute.xlu0 %3345
        %3348 = vset.pattern.permute.xlu0 2
        %3349 = vperm.xlu0 %3348, %v675
        %v3350 = vpop.permute.xlu0 %3349
        %3352 = vset.pattern.permute.xlu0 2
        %3353 = vperm.xlu0 %3352, %v676
        %v3354 = vpop.permute.xlu0 %3353
        %3356 = vset.pattern.permute.xlu0 2
        %3357 = vperm.xlu0 %3356, %v677
        %v3358 = vpop.permute.xlu0 %3357
        %3360 = vset.pattern.permute.xlu0 2
        %3361 = vperm.xlu0 %3360, %v678
        %v3362 = vpop.permute.xlu0 %3361
        %3364 = vset.pattern.permute.xlu0 2
        %3365 = vperm.xlu0 %3364, %v679
        %v3366 = vpop.permute.xlu0 %3365
        %3368 = vset.pattern.permute.xlu0 2
        %3369 = vperm.xlu0 %3368, %v680
        %v3370 = vpop.permute.xlu0 %3369
        %3372 = vset.pattern.permute.xlu0 2
        %3373 = vperm.xlu0 %3372, %v681
        %v3374 = vpop.permute.xlu0 %3373
        %3376 = vset.pattern.permute.xlu0 2
        %3377 = vperm.xlu0 %3376, %v682
        %v3378 = vpop.permute.xlu0 %3377
        %3380 = vset.pattern.permute.xlu0 2
        %3381 = vperm.xlu0 %3380, %v683
        %v3382 = vpop.permute.xlu0 %3381
        %3384 = vset.pattern.permute.xlu0 2
        %3385 = vperm.xlu0 %3384, %v684
        %v3386 = vpop.permute.xlu0 %3385
        %3388 = vset.pattern.permute.xlu0 2
        %3389 = vperm.xlu0 %3388, %v685
        %v3390 = vpop.permute.xlu0 %3389
        %3392 = vset.pattern.permute.xlu0 2
        %3393 = vperm.xlu0 %3392, %v686
        %v3394 = vpop.permute.xlu0 %3393
        %3396 = vset.pattern.permute.xlu0 2
        %3397 = vperm.xlu0 %3396, %v687
        %v3398 = vpop.permute.xlu0 %3397
        %3400 = vset.pattern.permute.xlu0 2
        %3401 = vperm.xlu0 %3400, %v688
        %v3402 = vpop.permute.xlu0 %3401
        %3404 = vset.pattern.permute.xlu0 2
        %3405 = vperm.xlu0 %3404, %v689
        %v3406 = vpop.permute.xlu0 %3405
        %3408 = vset.pattern.permute.xlu0 2
        %3409 = vperm.xlu0 %3408, %v690
        %v3410 = vpop.permute.xlu0 %3409
        %3412 = vset.pattern.permute.xlu0 2
        %3413 = vperm.xlu0 %3412, %v691
        %v3414 = vpop.permute.xlu0 %3413
        %3416 = vset.pattern.permute.xlu0 2
        %3417 = vperm.xlu0 %3416, %v692
        %v3418 = vpop.permute.xlu0 %3417
        %3420 = vset.pattern.permute.xlu0 2
        %3421 = vperm.xlu0 %3420, %v693
        %v3422 = vpop.permute.xlu0 %3421
        %3424 = vset.pattern.permute.xlu0 2
        %3425 = vperm.xlu0 %3424, %v694
        %v3426 = vpop.permute.xlu0 %3425
        %3428 = vset.pattern.permute.xlu0 2
        %3429 = vperm.xlu0 %3428, %v695
        %v3430 = vpop.permute.xlu0 %3429
        %3432 = vset.pattern.permute.xlu0 2
        %3433 = vperm.xlu0 %3432, %v696
        %v3434 = vpop.permute.xlu0 %3433
        %3436 = vset.pattern.permute.xlu0 2
        %3437 = vperm.xlu0 %3436, %v697
        %v3438 = vpop.permute.xlu0 %3437
        %3440 = vset.pattern.permute.xlu0 2
        %3441 = vperm.xlu0 %3440, %v698
        %v3442 = vpop.permute.xlu0 %3441
        %v3444 = vmul.f32 %v3318, %v3314
        %v3445 = vmul.f32 %v3322, %v3313
        %v3446 = vmul.f32 %v3326, %v3312
        %v3447 = vmul.f32 %v3330, %v3311
        %v3448 = vmul.f32 %v3334, %v3310
        %v3449 = vmul.f32 %v3338, %v3309
        %v3450 = vmul.f32 %v3342, %v3308
        %v3451 = vmul.f32 %v3346, %v3307
        %v3452 = vmul.f32 %v3350, %v3306
        %v3453 = vmul.f32 %v3354, %v3305
        %v3454 = vmul.f32 %v3358, %v3304
        %v3455 = vmul.f32 %v3362, %v3303
        %v3456 = vmul.f32 %v3366, %v3302
        %v3457 = vmul.f32 %v3370, %v3301
        %v3458 = vmul.f32 %v3374, %v3300
        %v3459 = vmul.f32 %v3378, %v3299
        %v3460 = vmul.f32 %v3382, %v3298
        %v3461 = vmul.f32 %v3386, %v3297
        %v3462 = vmul.f32 %v3390, %v3296
        %v3463 = vmul.f32 %v3394, %v3295
        %v3464 = vmul.f32 %v3398, %v3294
        %v3465 = vmul.f32 %v3402, %v3293
        %v3466 = vmul.f32 %v3406, %v3292
        %v3467 = vmul.f32 %v3410, %v3291
        %v3468 = vmul.f32 %v3414, %v3290
        %v3469 = vmul.f32 %v3418, %v3289
        %v3470 = vmul.f32 %v3422, %v3288
        %v3471 = vmul.f32 %v3426, %v3287
        %v3472 = vmul.f32 %v3430, %v3286
        %v3473 = vmul.f32 %v3434, %v3285
        %v3474 = vmul.f32 %v3438, %v3284
        %v3475 = vmul.f32 %v3442, %v3315
        %v3476 = vadd.f32 %v3219, %v2707
        %v3477 = vadd.f32 %v3220, %v2711
        %v3478 = vadd.f32 %v3221, %v2717
        %v3479 = vadd.f32 %v3222, %v2721
        %v3480 = vadd.f32 %v3223, %v2727
        %v3481 = vadd.f32 %v3224, %v2731
        %v3482 = vadd.f32 %v3225, %v2737
        %v3483 = vadd.f32 %v3226, %v2741
        %v3484 = vadd.f32 %v3227, %v2747
        %v3485 = vadd.f32 %v3228, %v2751
        %v3486 = vadd.f32 %v3229, %v2757
        %v3487 = vadd.f32 %v3230, %v2761
        %v3488 = vadd.f32 %v3231, %v2767
        %v3489 = vadd.f32 %v3232, %v2771
        %v3490 = vadd.f32 %v3233, %v2777
        %v3491 = vadd.f32 %v3234, %v2781
        %v3492 = vadd.f32 %v3235, %v2787
        %v3493 = vadd.f32 %v3236, %v2791
        %v3494 = vadd.f32 %v3237, %v2797
        %v3495 = vadd.f32 %v3238, %v2801
        %v3496 = vadd.f32 %v3239, %v2807
        %v3497 = vadd.f32 %v3240, %v2811
        %v3498 = vadd.f32 %v3241, %v2817
        %v3499 = vadd.f32 %v3242, %v2821
        %v3500 = vadd.f32 %v3243, %v2827
        %v3501 = vadd.f32 %v3244, %v2831
        %v3502 = vadd.f32 %v3245, %v2837
        %v3503 = vadd.f32 %v3246, %v2841
        %v3504 = vadd.f32 %v3247, %v2847
        %v3505 = vadd.f32 %v3248, %v2851
        %v3506 = vadd.f32 %v3249, %v2857
        %v3507 = vadd.f32 %v3250, %v2861
        %v3508 = vadd.f32 %v3476, %v3444
        %v3509 = vadd.f32 %v3477, %v3445
        %v3510 = vadd.f32 %v3478, %v3446
        %v3511 = vadd.f32 %v3479, %v3447
        %v3512 = vadd.f32 %v3480, %v3448
        %v3513 = vadd.f32 %v3481, %v3449
        %v3514 = vadd.f32 %v3482, %v3450
        %v3515 = vadd.f32 %v3483, %v3451
        %v3516 = vadd.f32 %v3484, %v3452
        %v3517 = vadd.f32 %v3485, %v3453
        %v3518 = vadd.f32 %v3486, %v3454
        %v3519 = vadd.f32 %v3487, %v3455
        %v3520 = vadd.f32 %v3488, %v3456
        %v3521 = vadd.f32 %v3489, %v3457
        %v3522 = vadd.f32 %v3490, %v3458
        %v3523 = vadd.f32 %v3491, %v3459
        %v3524 = vadd.f32 %v3492, %v3460
        %v3525 = vadd.f32 %v3493, %v3461
        %v3526 = vadd.f32 %v3494, %v3462
        %v3527 = vadd.f32 %v3495, %v3463
        %v3528 = vadd.f32 %v3496, %v3464
        %v3529 = vadd.f32 %v3497, %v3465
        %v3530 = vadd.f32 %v3498, %v3466
        %v3531 = vadd.f32 %v3499, %v3467
        %v3532 = vadd.f32 %v3500, %v3468
        %v3533 = vadd.f32 %v3501, %v3469
        %v3534 = vadd.f32 %v3502, %v3470
        %v3535 = vadd.f32 %v3503, %v3471
        %v3536 = vadd.f32 %v3504, %v3472
        %v3537 = vadd.f32 %v3505, %v3473
        %v3538 = vadd.f32 %v3506, %v3474
        %v3539 = vadd.f32 %v3507, %v3475
        %v3540 = vlaneseq
        %v3541 = vshrl.u32 %v3540, 7
        %v3542 = vsub.s32 0, %v3541
        %v3543 = vrot.slane %v704, %v3542
        %v3544 = vadd.f32 %v3508, %v3543
        %v3545 = vadd.f32 %v3509, %v3543
        %v3546 = vadd.f32 %v3510, %v3543
        %v3547 = vadd.f32 %v3511, %v3543
        %v3548 = vadd.f32 %v3512, %v3543
        %v3549 = vadd.f32 %v3513, %v3543
        %v3550 = vadd.f32 %v3514, %v3543
        %v3551 = vadd.f32 %v3515, %v3543
        %v3552 = vadd.f32 %v3516, %v3543
        %v3553 = vadd.f32 %v3517, %v3543
        %v3554 = vadd.f32 %v3518, %v3543
        %v3555 = vadd.f32 %v3519, %v3543
        %v3556 = vadd.f32 %v3520, %v3543
        %v3557 = vadd.f32 %v3521, %v3543
        %v3558 = vadd.f32 %v3522, %v3543
        %v3559 = vadd.f32 %v3523, %v3543
        %v3560 = vadd.f32 %v3524, %v3543
        %v3561 = vadd.f32 %v3525, %v3543
        %v3562 = vadd.f32 %v3526, %v3543
        %v3563 = vadd.f32 %v3527, %v3543
        %v3564 = vadd.f32 %v3528, %v3543
        %v3565 = vadd.f32 %v3529, %v3543
        %v3566 = vadd.f32 %v3530, %v3543
        %v3567 = vadd.f32 %v3531, %v3543
        %v3568 = vadd.f32 %v3532, %v3543
        %v3569 = vadd.f32 %v3533, %v3543
        %v3570 = vadd.f32 %v3534, %v3543
        %v3571 = vadd.f32 %v3535, %v3543
        %v3572 = vadd.f32 %v3536, %v3543
        %v3573 = vadd.f32 %v3537, %v3543
        %v3574 = vadd.f32 %v3538, %v3543
        %v3575 = vadd.f32 %v3539, %v3543
        %v3576 = vmax.f32 %v3544, 0.0
        %v3577 = vmax.f32 %v3545, 0.0
        %v3578 = vmax.f32 %v3546, 0.0
        %v3579 = vmax.f32 %v3547, 0.0
        %v3580 = vmax.f32 %v3548, 0.0
        %v3581 = vmax.f32 %v3549, 0.0
        %v3582 = vmax.f32 %v3550, 0.0
        %v3583 = vmax.f32 %v3551, 0.0
        %v3584 = vmax.f32 %v3552, 0.0
        %v3585 = vmax.f32 %v3553, 0.0
        %v3586 = vmax.f32 %v3554, 0.0
        %v3587 = vmax.f32 %v3555, 0.0
        %v3588 = vmax.f32 %v3556, 0.0
        %v3589 = vmax.f32 %v3557, 0.0
        %v3590 = vmax.f32 %v3558, 0.0
        %v3591 = vmax.f32 %v3559, 0.0
        %v3592 = vmax.f32 %v3560, 0.0
        %v3593 = vmax.f32 %v3561, 0.0
        %v3594 = vmax.f32 %v3562, 0.0
        %v3595 = vmax.f32 %v3563, 0.0
        %v3596 = vmax.f32 %v3564, 0.0
        %v3597 = vmax.f32 %v3565, 0.0
        %v3598 = vmax.f32 %v3566, 0.0
        %v3599 = vmax.f32 %v3567, 0.0
        %v3600 = vmax.f32 %v3568, 0.0
        %v3601 = vmax.f32 %v3569, 0.0
        %v3602 = vmax.f32 %v3570, 0.0
        %v3603 = vmax.f32 %v3571, 0.0
        %v3604 = vmax.f32 %v3572, 0.0
        %v3605 = vmax.f32 %v3573, 0.0
        %v3606 = vmax.f32 %v3574, 0.0
        %v3607 = vmax.f32 %v3575, 0.0
        %v3608 = vpack.c.bf16 %v3577, %v3576
        %v3609 = vpack.c.bf16 %v3579, %v3578
        %v3610 = vpack.c.bf16 %v3581, %v3580
        %v3611 = vpack.c.bf16 %v3583, %v3582
        %v3612 = vpack.c.bf16 %v3585, %v3584
        %v3613 = vpack.c.bf16 %v3587, %v3586
        %v3614 = vpack.c.bf16 %v3589, %v3588
        %v3615 = vpack.c.bf16 %v3591, %v3590
        %v3616 = vpack.c.bf16 %v3593, %v3592
        %v3617 = vpack.c.bf16 %v3595, %v3594
        %v3618 = vpack.c.bf16 %v3597, %v3596
        %v3619 = vpack.c.bf16 %v3599, %v3598
        %v3620 = vpack.c.bf16 %v3601, %v3600
        %v3621 = vpack.c.bf16 %v3603, %v3602
        %v3622 = vpack.c.bf16 %v3605, %v3604
        %v3623 = vpack.c.bf16 %v3607, %v3606
        %v3624 = vld [vmem:[#allocation11] sm:$0xff]
        %v3625 = vld [vmem:[#allocation11 + $0x8] sm:$0xf]
        %v3626 = vld [vmem:[#allocation11 + $0xc] sm:$0xff]
        %v3627 = vld [vmem:[#allocation11 + $0x14] sm:$0xf]
        %v3628 = vld [vmem:[#allocation11 + $0x18] sm:$0xff]
        %v3629 = vld [vmem:[#allocation11 + $0x20] sm:$0xf]
        %v3630 = vld [vmem:[#allocation11 + $0x24] sm:$0xff]
        %v3631 = vld [vmem:[#allocation11 + $0x2c] sm:$0xf]
        %v3632 = vld [vmem:[#allocation11 + $0x30] sm:$0xff]
        %v3633 = vld [vmem:[#allocation11 + $0x38] sm:$0xf]
        %v3634 = vld [vmem:[#allocation11 + $0x3c] sm:$0xff]
        %v3635 = vld [vmem:[#allocation11 + $0x44] sm:$0xf]
        %v3636 = vld [vmem:[#allocation11 + $0x48] sm:$0xff]
        %v3637 = vld [vmem:[#allocation11 + $0x50] sm:$0xf]
        %v3638 = vld [vmem:[#allocation11 + $0x54] sm:$0xff]
        %v3639 = vld [vmem:[#allocation11 + $0x5c] sm:$0xf]
        %v3640 = vld [vmem:[#allocation11 + $0x60] sm:$0xff]
        %v3641 = vld [vmem:[#allocation11 + $0x68] sm:$0xf]
        %v3642 = vld [vmem:[#allocation11 + $0x6c] sm:$0xff]
        %v3643 = vld [vmem:[#allocation11 + $0x74] sm:$0xf]
        %v3644 = vld [vmem:[#allocation11 + $0x78] sm:$0xff]
        %v3645 = vld [vmem:[#allocation11 + $0x80] sm:$0xf]
        %v3646 = vld [vmem:[#allocation11 + $0x84] sm:$0xff]
        %v3647 = vld [vmem:[#allocation11 + $0x8c] sm:$0xf]
        %v3648 = vld [vmem:[#allocation11 + $0x90] sm:$0xff]
        %v3649 = vld [vmem:[#allocation11 + $0x98] sm:$0xf]
        %v3650 = vld [vmem:[#allocation11 + $0x9c] sm:$0xff]
        %v3651 = vld [vmem:[#allocation11 + $0xa4] sm:$0xf]
        %v3652 = vld [vmem:[#allocation11 + $0xa8] sm:$0xff]
        %v3653 = vld [vmem:[#allocation11 + $0xb0] sm:$0xf]
        %v3654 = vld [vmem:[#allocation11 + $0xb4] sm:$0xff]
        %v3655 = vld [vmem:[#allocation11 + $0xbc] sm:$0xf]
        %v3688 = vunpack.c.l.b16 %v3624
        %v3689 = vunpack.c.h.b16 %v3624
        %v3690 = vunpack.c.l.b16 %v3625
        %v3691 = vunpack.c.l.b16 %v3626
        %v3692 = vunpack.c.h.b16 %v3626
        %v3693 = vunpack.c.l.b16 %v3627
        %v3694 = vunpack.c.l.b16 %v3628
        %v3695 = vunpack.c.h.b16 %v3628
        %v3696 = vunpack.c.l.b16 %v3629
        %v3697 = vunpack.c.l.b16 %v3630
        %v3698 = vunpack.c.h.b16 %v3630
        %v3699 = vunpack.c.l.b16 %v3631
        %v3700 = vunpack.c.l.b16 %v3632
        %v3701 = vunpack.c.h.b16 %v3632
        %v3702 = vunpack.c.l.b16 %v3633
        %v3703 = vunpack.c.l.b16 %v3634
        %v3704 = vunpack.c.h.b16 %v3634
        %v3705 = vunpack.c.l.b16 %v3635
        %v3706 = vunpack.c.l.b16 %v3636
        %v3707 = vunpack.c.h.b16 %v3636
        %v3708 = vunpack.c.l.b16 %v3637
        %v3709 = vunpack.c.l.b16 %v3638
        %v3710 = vunpack.c.h.b16 %v3638
        %v3711 = vunpack.c.l.b16 %v3639
        %v3712 = vunpack.c.l.b16 %v3640
        %v3713 = vunpack.c.h.b16 %v3640
        %v3714 = vunpack.c.l.b16 %v3641
        %v3715 = vunpack.c.l.b16 %v3642
        %v3716 = vunpack.c.h.b16 %v3642
        %v3717 = vunpack.c.l.b16 %v3643
        %v3718 = vunpack.c.l.b16 %v3644
        %v3719 = vunpack.c.h.b16 %v3644
        %v3720 = vunpack.c.l.b16 %v3645
        %v3721 = vunpack.c.l.b16 %v3646
        %v3722 = vunpack.c.h.b16 %v3646
        %v3723 = vunpack.c.l.b16 %v3647
        %v3724 = vunpack.c.l.b16 %v3648
        %v3725 = vunpack.c.h.b16 %v3648
        %v3726 = vunpack.c.l.b16 %v3649
        %v3727 = vunpack.c.l.b16 %v3650
        %v3728 = vunpack.c.h.b16 %v3650
        %v3729 = vunpack.c.l.b16 %v3651
        %v3730 = vunpack.c.l.b16 %v3652
        %v3731 = vunpack.c.h.b16 %v3652
        %v3732 = vunpack.c.l.b16 %v3653
        %v3733 = vunpack.c.l.b16 %v3654
        %v3734 = vunpack.c.h.b16 %v3654
        %v3735 = vunpack.c.l.b16 %v3655
        %v3736 = vpack.c.b16 %v3691, %v3688
        %v3737 = vpack.c.b16 %v3692, %v3689
        %v3738 = vpack.c.b16 %v3693, %v3690
        %v3739 = vpack.c.b16 %v3697, %v3694
        %v3740 = vpack.c.b16 %v3698, %v3695
        %v3741 = vpack.c.b16 %v3699, %v3696
        %v3742 = vpack.c.b16 %v3703, %v3700
        %v3743 = vpack.c.b16 %v3704, %v3701
        %v3744 = vpack.c.b16 %v3705, %v3702
        %v3745 = vpack.c.b16 %v3709, %v3706
        %v3746 = vpack.c.b16 %v3710, %v3707
        %v3747 = vpack.c.b16 %v3711, %v3708
        %v3748 = vpack.c.b16 %v3715, %v3712
        %v3749 = vpack.c.b16 %v3716, %v3713
        %v3750 = vpack.c.b16 %v3717, %v3714
        %v3751 = vpack.c.b16 %v3721, %v3718
        %v3752 = vpack.c.b16 %v3722, %v3719
        %v3753 = vpack.c.b16 %v3723, %v3720
        %v3754 = vpack.c.b16 %v3727, %v3724
        %v3755 = vpack.c.b16 %v3728, %v3725
        %v3756 = vpack.c.b16 %v3729, %v3726
        %v3757 = vpack.c.b16 %v3733, %v3730
        %v3758 = vpack.c.b16 %v3734, %v3731
        %v3759 = vpack.c.b16 %v3735, %v3732
        %3784 = vmatprep.subr.bf16.mxu0 %v3758
        %3785 = vmatpush1.bf16.msra.mxu0 %v3757
        %3786 = vmatprep.subr.bf16.mxu0 %v3755
        %3787 = vmatpush1.bf16.msra.mxu0 %v3754
        %3788 = vmatprep.subr.bf16.mxu0 %v3752
        %3789 = vmatpush1.bf16.msra.mxu0 %v3751
        %3790 = vmatprep.subr.bf16.mxu0 %v3749
        %3791 = vmatpush1.bf16.msra.mxu0 %v3748
        %3792 = vmatprep.subr.bf16.mxu0 %v3746
        %3793 = vmatpush1.bf16.msra.mxu0 %v3745
        %3794 = vmatprep.subr.bf16.mxu0 %v3743
        %3795 = vmatpush1.bf16.msra.mxu0 %v3742
        %3796 = vmatprep.subr.bf16.mxu0 %v3740
        %3797 = vmatpush1.bf16.msra.mxu0 %v3739
        %3798 = vmatprep.subr.bf16.mxu0 %v3737
        %3799 = vmatpush1.bf16.msra.mxu0 %v3736
        %3800 = vmatprep.subr.bf16.mxu0 0
        %3801 = vmatpush2.bf16.msra.mxu0 0
        %3802 = vmatprep.subr.bf16.mxu0 0
        %3803 = vmatpush2.bf16.msra.mxu0 0
        %3804 = vmatprep.subr.bf16.mxu0 0
        %3805 = vmatpush2.bf16.msra.mxu0 0
        %3806 = vmatprep.subr.bf16.mxu0 0
        %3807 = vmatpush2.bf16.msra.mxu0 0
        %3808 = vmatprep.subr.bf16.mxu0 0
        %3809 = vmatpush2.bf16.msra.mxu0 0
        %3810 = vmatprep.subr.bf16.mxu0 0
        %3811 = vmatpush2.bf16.msra.mxu0 0
        %3812 = vmatprep.subr.bf16.mxu0 0
        %3813 = vmatpush2.bf16.msra.mxu0 0
        %3814 = vmatprep.subr.bf16.mxu0 0
        %3815 = vmatpush2.bf16.msra.mxu0 0
        %3816 = vmatprep.mubr.bf16.mxu0 0
        %3817 = vmatmul.mubr.bf16.gmra.mxu0 %v2494
        %v3818 = vpop.f32.mrf.mxu0
        %v3819 = vadd.f32 0.0, %v3818
        %v3820 = vpop.f32.mrf.mxu0
        %v3821 = vadd.f32 0.0, %v3820
        %v3822 = vpop.f32.mrf.mxu0
        %v3823 = vadd.f32 0.0, %v3822
        %v3824 = vpop.f32.mrf.mxu0
        %v3825 = vadd.f32 0.0, %v3824
        %3826 = vmatprep.mubr.bf16.mxu0 0
        %3827 = vmatmul.mubr.bf16.gmra.mxu0 %v2495
        %v3828 = vpop.f32.mrf.mxu0
        %v3829 = vadd.f32 0.0, %v3828
        %v3830 = vpop.f32.mrf.mxu0
        %v3831 = vadd.f32 0.0, %v3830
        %v3832 = vpop.f32.mrf.mxu0
        %v3833 = vadd.f32 0.0, %v3832
        %v3834 = vpop.f32.mrf.mxu0
        %v3835 = vadd.f32 0.0, %v3834
        %3836 = vmatprep.mubr.bf16.mxu0 0
        %3837 = vmatmul.mubr.bf16.gmra.mxu0 %v2496
        %v3838 = vpop.f32.mrf.mxu0
        %v3839 = vadd.f32 0.0, %v3838
        %v3840 = vpop.f32.mrf.mxu0
        %v3841 = vadd.f32 0.0, %v3840
        %v3842 = vpop.f32.mrf.mxu0
        %v3843 = vadd.f32 0.0, %v3842
        %v3844 = vpop.f32.mrf.mxu0
        %v3845 = vadd.f32 0.0, %v3844
        %3846 = vmatprep.mubr.bf16.mxu0 0
        %3847 = vmatmul.mubr.bf16.gmra.mxu0 %v2497
        %v3848 = vpop.f32.mrf.mxu0
        %v3849 = vadd.f32 0.0, %v3848
        %v3850 = vpop.f32.mrf.mxu0
        %v3851 = vadd.f32 0.0, %v3850
        %v3852 = vpop.f32.mrf.mxu0
        %v3853 = vadd.f32 0.0, %v3852
        %v3854 = vpop.f32.mrf.mxu0
        %v3855 = vadd.f32 0.0, %v3854
        %3856 = vmatprep.mubr.bf16.mxu0 0
        %3857 = vmatmul.mubr.bf16.gmra.mxu0 %v2498
        %v3858 = vpop.f32.mrf.mxu0
        %v3859 = vadd.f32 0.0, %v3858
        %v3860 = vpop.f32.mrf.mxu0
        %v3861 = vadd.f32 0.0, %v3860
        %v3862 = vpop.f32.mrf.mxu0
        %v3863 = vadd.f32 0.0, %v3862
        %v3864 = vpop.f32.mrf.mxu0
        %v3865 = vadd.f32 0.0, %v3864
        %3866 = vmatprep.mubr.bf16.mxu0 0
        %3867 = vmatmul.mubr.bf16.gmra.mxu0 %v2499
        %v3868 = vpop.f32.mrf.mxu0
        %v3869 = vadd.f32 0.0, %v3868
        %v3870 = vpop.f32.mrf.mxu0
        %v3871 = vadd.f32 0.0, %v3870
        %v3872 = vpop.f32.mrf.mxu0
        %v3873 = vadd.f32 0.0, %v3872
        %v3874 = vpop.f32.mrf.mxu0
        %v3875 = vadd.f32 0.0, %v3874
        %3876 = vmatprep.mubr.bf16.mxu0 0
        %3877 = vmatmul.mubr.bf16.gmra.mxu0 %v2500
        %v3878 = vpop.f32.mrf.mxu0
        %v3879 = vadd.f32 0.0, %v3878
        %v3880 = vpop.f32.mrf.mxu0
        %v3881 = vadd.f32 0.0, %v3880
        %v3882 = vpop.f32.mrf.mxu0
        %v3883 = vadd.f32 0.0, %v3882
        %v3884 = vpop.f32.mrf.mxu0
        %v3885 = vadd.f32 0.0, %v3884
        %3886 = vmatprep.mubr.bf16.mxu0 0
        %3887 = vmatmul.mubr.bf16.gmra.mxu0 %v2501
        %v3888 = vpop.f32.mrf.mxu0
        %v3889 = vadd.f32 0.0, %v3888
        %v3890 = vpop.f32.mrf.mxu0
        %v3891 = vadd.f32 0.0, %v3890
        %v3892 = vpop.f32.mrf.mxu0
        %v3893 = vadd.f32 0.0, %v3892
        %v3894 = vpop.f32.mrf.mxu0
        %v3895 = vadd.f32 0.0, %v3894
        %3896 = vmatprep.mubr.bf16.mxu0 0
        %3897 = vmatmul.mubr.bf16.gmra.mxu0 %v2502
        %v3898 = vpop.f32.mrf.mxu0
        %v3899 = vadd.f32 0.0, %v3898
        %v3900 = vpop.f32.mrf.mxu0
        %v3901 = vadd.f32 0.0, %v3900
        %v3902 = vpop.f32.mrf.mxu0
        %v3903 = vadd.f32 0.0, %v3902
        %v3904 = vpop.f32.mrf.mxu0
        %v3905 = vadd.f32 0.0, %v3904
        %3906 = vmatprep.mubr.bf16.mxu0 0
        %3907 = vmatmul.mubr.bf16.gmra.mxu0 %v2503
        %v3908 = vpop.f32.mrf.mxu0
        %v3909 = vadd.f32 0.0, %v3908
        %v3910 = vpop.f32.mrf.mxu0
        %v3911 = vadd.f32 0.0, %v3910
        %v3912 = vpop.f32.mrf.mxu0
        %v3913 = vadd.f32 0.0, %v3912
        %v3914 = vpop.f32.mrf.mxu0
        %v3915 = vadd.f32 0.0, %v3914
        %3916 = vmatprep.mubr.bf16.mxu0 0
        %3917 = vmatmul.mubr.bf16.gmra.mxu0 %v2504
        %v3918 = vpop.f32.mrf.mxu0
        %v3919 = vadd.f32 0.0, %v3918
        %v3920 = vpop.f32.mrf.mxu0
        %v3921 = vadd.f32 0.0, %v3920
        %v3922 = vpop.f32.mrf.mxu0
        %v3923 = vadd.f32 0.0, %v3922
        %v3924 = vpop.f32.mrf.mxu0
        %v3925 = vadd.f32 0.0, %v3924
        %3926 = vmatprep.mubr.bf16.mxu0 0
        %3927 = vmatmul.mubr.bf16.gmra.mxu0 %v2505
        %v3928 = vpop.f32.mrf.mxu0
        %v3929 = vadd.f32 0.0, %v3928
        %v3930 = vpop.f32.mrf.mxu0
        %v3931 = vadd.f32 0.0, %v3930
        %v3932 = vpop.f32.mrf.mxu0
        %v3933 = vadd.f32 0.0, %v3932
        %v3934 = vpop.f32.mrf.mxu0
        %v3935 = vadd.f32 0.0, %v3934
        %3936 = vmatprep.mubr.bf16.mxu0 0
        %3937 = vmatmul.mubr.bf16.gmra.mxu0 %v2506
        %v3938 = vpop.f32.mrf.mxu0
        %v3939 = vadd.f32 0.0, %v3938
        %v3940 = vpop.f32.mrf.mxu0
        %v3941 = vadd.f32 0.0, %v3940
        %v3942 = vpop.f32.mrf.mxu0
        %v3943 = vadd.f32 0.0, %v3942
        %v3944 = vpop.f32.mrf.mxu0
        %v3945 = vadd.f32 0.0, %v3944
        %3946 = vmatprep.mubr.bf16.mxu0 0
        %3947 = vmatmul.mubr.bf16.gmra.mxu0 %v2507
        %v3948 = vpop.f32.mrf.mxu0
        %v3949 = vadd.f32 0.0, %v3948
        %v3950 = vpop.f32.mrf.mxu0
        %v3951 = vadd.f32 0.0, %v3950
        %v3952 = vpop.f32.mrf.mxu0
        %v3953 = vadd.f32 0.0, %v3952
        %v3954 = vpop.f32.mrf.mxu0
        %v3955 = vadd.f32 0.0, %v3954
        %3956 = vmatprep.mubr.bf16.mxu0 0
        %3957 = vmatmul.mubr.bf16.gmra.mxu0 %v2508
        %v3958 = vpop.f32.mrf.mxu0
        %v3959 = vadd.f32 0.0, %v3958
        %v3960 = vpop.f32.mrf.mxu0
        %v3961 = vadd.f32 0.0, %v3960
        %v3962 = vpop.f32.mrf.mxu0
        %v3963 = vadd.f32 0.0, %v3962
        %v3964 = vpop.f32.mrf.mxu0
        %v3965 = vadd.f32 0.0, %v3964
        %3966 = vmatprep.mubr.bf16.mxu0 0
        %3967 = vmatmul.mubr.bf16.gmra.mxu0 %v2509
        %v3968 = vpop.f32.mrf.mxu0
        %v3969 = vadd.f32 0.0, %v3968
        %v3970 = vpop.f32.mrf.mxu0
        %v3971 = vadd.f32 0.0, %v3970
        %v3972 = vpop.f32.mrf.mxu0
        %v3973 = vadd.f32 0.0, %v3972
        %v3974 = vpop.f32.mrf.mxu0
        %v3975 = vadd.f32 0.0, %v3974
        %3976 = vdwg.mxu0
        %3977 = vmatprep.subr.bf16.mxu0 0
        %3978 = vmatpush1.bf16.msra.mxu0 %v3759
        %3979 = vmatprep.subr.bf16.mxu0 0
        %3980 = vmatpush1.bf16.msra.mxu0 %v3756
        %3981 = vmatprep.subr.bf16.mxu0 0
        %3982 = vmatpush1.bf16.msra.mxu0 %v3753
        %3983 = vmatprep.subr.bf16.mxu0 0
        %3984 = vmatpush1.bf16.msra.mxu0 %v3750
        %3985 = vmatprep.subr.bf16.mxu0 0
        %3986 = vmatpush1.bf16.msra.mxu0 %v3747
        %3987 = vmatprep.subr.bf16.mxu0 0
        %3988 = vmatpush1.bf16.msra.mxu0 %v3744
        %3989 = vmatprep.subr.bf16.mxu0 0
        %3990 = vmatpush1.bf16.msra.mxu0 %v3741
        %3991 = vmatprep.subr.bf16.mxu0 0
        %3992 = vmatpush1.bf16.msra.mxu0 %v3738
        %3993 = vmatprep.subr.bf16.mxu0 0
        %3994 = vmatpush2.bf16.msra.mxu0 0
        %3995 = vmatprep.subr.bf16.mxu0 0
        %3996 = vmatpush2.bf16.msra.mxu0 0
        %3997 = vmatprep.subr.bf16.mxu0 0
        %3998 = vmatpush2.bf16.msra.mxu0 0
        %3999 = vmatprep.subr.bf16.mxu0 0
        %4000 = vmatpush2.bf16.msra.mxu0 0
        %4001 = vmatprep.subr.bf16.mxu0 0
        %4002 = vmatpush2.bf16.msra.mxu0 0
        %4003 = vmatprep.subr.bf16.mxu0 0
        %4004 = vmatpush2.bf16.msra.mxu0 0
        %4005 = vmatprep.subr.bf16.mxu0 0
        %4006 = vmatpush2.bf16.msra.mxu0 0
        %4007 = vmatprep.subr.bf16.mxu0 0
        %4008 = vmatpush2.bf16.msra.mxu0 0
        %4009 = vmatprep.mubr.bf16.mxu0 0
        %4010 = vmatmul.mubr.bf16.gmra.mxu0 %v2494
        %v4011 = vpop.f32.mrf.mxu0
        %v4012 = vadd.f32 0.0, %v4011
        %v4013 = vpop.f32.mrf.mxu0
        %v4014 = vpop.f32.mrf.mxu0
        %v4015 = vadd.f32 0.0, %v4014
        %v4016 = vpop.f32.mrf.mxu0
        %4017 = vmatprep.mubr.bf16.mxu0 0
        %4018 = vmatmul.mubr.bf16.gmra.mxu0 %v2495
        %v4019 = vpop.f32.mrf.mxu0
        %v4020 = vadd.f32 0.0, %v4019
        %v4021 = vpop.f32.mrf.mxu0
        %v4022 = vpop.f32.mrf.mxu0
        %v4023 = vadd.f32 0.0, %v4022
        %v4024 = vpop.f32.mrf.mxu0
        %4025 = vmatprep.mubr.bf16.mxu0 0
        %4026 = vmatmul.mubr.bf16.gmra.mxu0 %v2496
        %v4027 = vpop.f32.mrf.mxu0
        %v4028 = vadd.f32 0.0, %v4027
        %v4029 = vpop.f32.mrf.mxu0
        %v4030 = vpop.f32.mrf.mxu0
        %v4031 = vadd.f32 0.0, %v4030
        %v4032 = vpop.f32.mrf.mxu0
        %4033 = vmatprep.mubr.bf16.mxu0 0
        %4034 = vmatmul.mubr.bf16.gmra.mxu0 %v2497
        %v4035 = vpop.f32.mrf.mxu0
        %v4036 = vadd.f32 0.0, %v4035
        %v4037 = vpop.f32.mrf.mxu0
        %v4038 = vpop.f32.mrf.mxu0
        %v4039 = vadd.f32 0.0, %v4038
        %v4040 = vpop.f32.mrf.mxu0
        %4041 = vmatprep.mubr.bf16.mxu0 0
        %4042 = vmatmul.mubr.bf16.gmra.mxu0 %v2498
        %v4043 = vpop.f32.mrf.mxu0
        %v4044 = vadd.f32 0.0, %v4043
        %v4045 = vpop.f32.mrf.mxu0
        %v4046 = vpop.f32.mrf.mxu0
        %v4047 = vadd.f32 0.0, %v4046
        %v4048 = vpop.f32.mrf.mxu0
        %4049 = vmatprep.mubr.bf16.mxu0 0
        %4050 = vmatmul.mubr.bf16.gmra.mxu0 %v2499
        %v4051 = vpop.f32.mrf.mxu0
        %v4052 = vadd.f32 0.0, %v4051
        %v4053 = vpop.f32.mrf.mxu0
        %v4054 = vpop.f32.mrf.mxu0
        %v4055 = vadd.f32 0.0, %v4054
        %v4056 = vpop.f32.mrf.mxu0
        %4057 = vmatprep.mubr.bf16.mxu0 0
        %4058 = vmatmul.mubr.bf16.gmra.mxu0 %v2500
        %v4059 = vpop.f32.mrf.mxu0
        %v4060 = vadd.f32 0.0, %v4059
        %v4061 = vpop.f32.mrf.mxu0
        %v4062 = vpop.f32.mrf.mxu0
        %v4063 = vadd.f32 0.0, %v4062
        %v4064 = vpop.f32.mrf.mxu0
        %4065 = vmatprep.mubr.bf16.mxu0 0
        %4066 = vmatmul.mubr.bf16.gmra.mxu0 %v2501
        %v4067 = vpop.f32.mrf.mxu0
        %v4068 = vadd.f32 0.0, %v4067
        %v4069 = vpop.f32.mrf.mxu0
        %v4070 = vpop.f32.mrf.mxu0
        %v4071 = vadd.f32 0.0, %v4070
        %v4072 = vpop.f32.mrf.mxu0
        %4073 = vmatprep.mubr.bf16.mxu0 0
        %4074 = vmatmul.mubr.bf16.gmra.mxu0 %v2502
        %v4075 = vpop.f32.mrf.mxu0
        %v4076 = vadd.f32 0.0, %v4075
        %v4077 = vpop.f32.mrf.mxu0
        %v4078 = vpop.f32.mrf.mxu0
        %v4079 = vadd.f32 0.0, %v4078
        %v4080 = vpop.f32.mrf.mxu0
        %4081 = vmatprep.mubr.bf16.mxu0 0
        %4082 = vmatmul.mubr.bf16.gmra.mxu0 %v2503
        %v4083 = vpop.f32.mrf.mxu0
        %v4084 = vadd.f32 0.0, %v4083
        %v4085 = vpop.f32.mrf.mxu0
        %v4086 = vpop.f32.mrf.mxu0
        %v4087 = vadd.f32 0.0, %v4086
        %v4088 = vpop.f32.mrf.mxu0
        %4089 = vmatprep.mubr.bf16.mxu0 0
        %4090 = vmatmul.mubr.bf16.gmra.mxu0 %v2504
        %v4091 = vpop.f32.mrf.mxu0
        %v4092 = vadd.f32 0.0, %v4091
        %v4093 = vpop.f32.mrf.mxu0
        %v4094 = vpop.f32.mrf.mxu0
        %v4095 = vadd.f32 0.0, %v4094
        %v4096 = vpop.f32.mrf.mxu0
        %4097 = vmatprep.mubr.bf16.mxu0 0
        %4098 = vmatmul.mubr.bf16.gmra.mxu0 %v2505
        %v4099 = vpop.f32.mrf.mxu0
        %v4100 = vadd.f32 0.0, %v4099
        %v4101 = vpop.f32.mrf.mxu0
        %v4102 = vpop.f32.mrf.mxu0
        %v4103 = vadd.f32 0.0, %v4102
        %v4104 = vpop.f32.mrf.mxu0
        %4105 = vmatprep.mubr.bf16.mxu0 0
        %4106 = vmatmul.mubr.bf16.gmra.mxu0 %v2506
        %v4107 = vpop.f32.mrf.mxu0
        %v4108 = vadd.f32 0.0, %v4107
        %v4109 = vpop.f32.mrf.mxu0
        %v4110 = vpop.f32.mrf.mxu0
        %v4111 = vadd.f32 0.0, %v4110
        %v4112 = vpop.f32.mrf.mxu0
        %4113 = vmatprep.mubr.bf16.mxu0 0
        %4114 = vmatmul.mubr.bf16.gmra.mxu0 %v2507
        %v4115 = vpop.f32.mrf.mxu0
        %v4116 = vadd.f32 0.0, %v4115
        %v4117 = vpop.f32.mrf.mxu0
        %v4118 = vpop.f32.mrf.mxu0
        %v4119 = vadd.f32 0.0, %v4118
        %v4120 = vpop.f32.mrf.mxu0
        %4121 = vmatprep.mubr.bf16.mxu0 0
        %4122 = vmatmul.mubr.bf16.gmra.mxu0 %v2508
        %v4123 = vpop.f32.mrf.mxu0
        %v4124 = vadd.f32 0.0, %v4123
        %v4125 = vpop.f32.mrf.mxu0
        %v4126 = vpop.f32.mrf.mxu0
        %v4127 = vadd.f32 0.0, %v4126
        %v4128 = vpop.f32.mrf.mxu0
        %4129 = vmatprep.mubr.bf16.mxu0 0
        %4130 = vmatmul.mubr.bf16.gmra.mxu0 %v2509
        %v4131 = vpop.f32.mrf.mxu0
        %v4132 = vadd.f32 0.0, %v4131
        %v4133 = vpop.f32.mrf.mxu0
        %v4134 = vpop.f32.mrf.mxu0
        %v4135 = vadd.f32 0.0, %v4134
        %v4136 = vpop.f32.mrf.mxu0
        %4137 = vdwg.mxu0
        %v4138 = vrot.slane %v3819, 7
        %v4139 = vrot.slane %v3823, 7
        %v4140 = vrot.slane %v3829, 7
        %v4141 = vrot.slane %v3833, 7
        %v4142 = vrot.slane %v3839, 7
        %v4143 = vrot.slane %v3843, 7
        %v4144 = vrot.slane %v3849, 7
        %v4145 = vrot.slane %v3853, 7
        %v4146 = vrot.slane %v3859, 7
        %v4147 = vrot.slane %v3863, 7
        %v4148 = vrot.slane %v3869, 7
        %v4149 = vrot.slane %v3873, 7
        %v4150 = vrot.slane %v3879, 7
        %v4151 = vrot.slane %v3883, 7
        %v4152 = vrot.slane %v3889, 7
        %v4153 = vrot.slane %v3893, 7
        %v4154 = vrot.slane %v3899, 7
        %v4155 = vrot.slane %v3903, 7
        %v4156 = vrot.slane %v3909, 7
        %v4157 = vrot.slane %v3913, 7
        %v4158 = vrot.slane %v3919, 7
        %v4159 = vrot.slane %v3923, 7
        %v4160 = vrot.slane %v3929, 7
        %v4161 = vrot.slane %v3933, 7
        %v4162 = vrot.slane %v3939, 7
        %v4163 = vrot.slane %v3943, 7
        %v4164 = vrot.slane %v3949, 7
        %v4165 = vrot.slane %v3953, 7
        %v4166 = vrot.slane %v3959, 7
        %v4167 = vrot.slane %v3963, 7
        %v4168 = vrot.slane %v3969, 7
        %v4169 = vrot.slane %v3973, 7
        %v4170 = vsel %vm3058, %v4168, %v4169
        %v4171 = vsel %vm3058, %v4167, %v4168
        %v4172 = vsel %vm3058, %v4166, %v4167
        %v4173 = vsel %vm3058, %v4165, %v4166
        %v4174 = vsel %vm3058, %v4164, %v4165
        %v4175 = vsel %vm3058, %v4163, %v4164
        %v4176 = vsel %vm3058, %v4162, %v4163
        %v4177 = vsel %vm3058, %v4161, %v4162
        %v4178 = vsel %vm3058, %v4160, %v4161
        %v4179 = vsel %vm3058, %v4159, %v4160
        %v4180 = vsel %vm3058, %v4158, %v4159
        %v4181 = vsel %vm3058, %v4157, %v4158
        %v4182 = vsel %vm3058, %v4156, %v4157
        %v4183 = vsel %vm3058, %v4155, %v4156
        %v4184 = vsel %vm3058, %v4154, %v4155
        %v4185 = vsel %vm3058, %v4153, %v4154
        %v4186 = vsel %vm3058, %v4152, %v4153
        %v4187 = vsel %vm3058, %v4151, %v4152
        %v4188 = vsel %vm3058, %v4150, %v4151
        %v4189 = vsel %vm3058, %v4149, %v4150
        %v4190 = vsel %vm3058, %v4148, %v4149
        %v4191 = vsel %vm3058, %v4147, %v4148
        %v4192 = vsel %vm3058, %v4146, %v4147
        %v4193 = vsel %vm3058, %v4145, %v4146
        %v4194 = vsel %vm3058, %v4144, %v4145
        %v4195 = vsel %vm3058, %v4143, %v4144
        %v4196 = vsel %vm3058, %v4142, %v4143
        %v4197 = vsel %vm3058, %v4141, %v4142
        %v4198 = vsel %vm3058, %v4140, %v4141
        %v4199 = vsel %vm3058, %v4139, %v4140
        %v4200 = vsel %vm3058, %v4138, %v4139
        %v4201 = vsel %vm3058, %v4169, %v4138
        %v4202 = vmul.f32 %v3093, %v4201
        %v4203 = vmul.f32 %v3097, %v4200
        %v4204 = vmul.f32 %v3101, %v4199
        %v4205 = vmul.f32 %v3105, %v4198
        %v4206 = vmul.f32 %v3109, %v4197
        %v4207 = vmul.f32 %v3113, %v4196
        %v4208 = vmul.f32 %v3117, %v4195
        %v4209 = vmul.f32 %v3121, %v4194
        %v4210 = vmul.f32 %v3125, %v4193
        %v4211 = vmul.f32 %v3129, %v4192
        %v4212 = vmul.f32 %v3133, %v4191
        %v4213 = vmul.f32 %v3137, %v4190
        %v4214 = vmul.f32 %v3141, %v4189
        %v4215 = vmul.f32 %v3145, %v4188
        %v4216 = vmul.f32 %v3149, %v4187
        %v4217 = vmul.f32 %v3153, %v4186
        %v4218 = vmul.f32 %v3157, %v4185
        %v4219 = vmul.f32 %v3161, %v4184
        %v4220 = vmul.f32 %v3165, %v4183
        %v4221 = vmul.f32 %v3169, %v4182
        %v4222 = vmul.f32 %v3173, %v4181
        %v4223 = vmul.f32 %v3177, %v4180
        %v4224 = vmul.f32 %v3181, %v4179
        %v4225 = vmul.f32 %v3185, %v4178
        %v4226 = vmul.f32 %v3189, %v4177
        %v4227 = vmul.f32 %v3193, %v4176
        %v4228 = vmul.f32 %v3197, %v4175
        %v4229 = vmul.f32 %v3201, %v4174
        %v4230 = vmul.f32 %v3205, %v4173
        %v4231 = vmul.f32 %v3209, %v4172
        %v4232 = vmul.f32 %v3213, %v4171
        %v4233 = vmul.f32 %v3217, %v4170
        %v4234 = vrot.slane %v4012, 1
        %v4235 = vrot.slane %v4015, 1
        %v4236 = vrot.slane %v4020, 1
        %v4237 = vrot.slane %v4023, 1
        %v4238 = vrot.slane %v4028, 1
        %v4239 = vrot.slane %v4031, 1
        %v4240 = vrot.slane %v4036, 1
        %v4241 = vrot.slane %v4039, 1
        %v4242 = vrot.slane %v4044, 1
        %v4243 = vrot.slane %v4047, 1
        %v4244 = vrot.slane %v4052, 1
        %v4245 = vrot.slane %v4055, 1
        %v4246 = vrot.slane %v4060, 1
        %v4247 = vrot.slane %v4063, 1
        %v4248 = vrot.slane %v4068, 1
        %v4249 = vrot.slane %v4071, 1
        %v4250 = vrot.slane %v4076, 1
        %v4251 = vrot.slane %v4079, 1
        %v4252 = vrot.slane %v4084, 1
        %v4253 = vrot.slane %v4087, 1
        %v4254 = vrot.slane %v4092, 1
        %v4255 = vrot.slane %v4095, 1
        %v4256 = vrot.slane %v4100, 1
        %v4257 = vrot.slane %v4103, 1
        %v4258 = vrot.slane %v4108, 1
        %v4259 = vrot.slane %v4111, 1
        %v4260 = vrot.slane %v4116, 1
        %v4261 = vrot.slane %v4119, 1
        %v4262 = vrot.slane %v4124, 1
        %v4263 = vrot.slane %v4127, 1
        %v4264 = vrot.slane %v4132, 1
        %v4265 = vrot.slane %v4135, 1
        %v4266 = vsel %vm3283, %v4264, %v4265
        %v4267 = vsel %vm3283, %v4263, %v4264
        %v4268 = vsel %vm3283, %v4262, %v4263
        %v4269 = vsel %vm3283, %v4261, %v4262
        %v4270 = vsel %vm3283, %v4260, %v4261
        %v4271 = vsel %vm3283, %v4259, %v4260
        %v4272 = vsel %vm3283, %v4258, %v4259
        %v4273 = vsel %vm3283, %v4257, %v4258
        %v4274 = vsel %vm3283, %v4256, %v4257
        %v4275 = vsel %vm3283, %v4255, %v4256
        %v4276 = vsel %vm3283, %v4254, %v4255
        %v4277 = vsel %vm3283, %v4253, %v4254
        %v4278 = vsel %vm3283, %v4252, %v4253
        %v4279 = vsel %vm3283, %v4251, %v4252
        %v4280 = vsel %vm3283, %v4250, %v4251
        %v4281 = vsel %vm3283, %v4249, %v4250
        %v4282 = vsel %vm3283, %v4248, %v4249
        %v4283 = vsel %vm3283, %v4247, %v4248
        %v4284 = vsel %vm3283, %v4246, %v4247
        %v4285 = vsel %vm3283, %v4245, %v4246
        %v4286 = vsel %vm3283, %v4244, %v4245
        %v4287 = vsel %vm3283, %v4243, %v4244
        %v4288 = vsel %vm3283, %v4242, %v4243
        %v4289 = vsel %vm3283, %v4241, %v4242
        %v4290 = vsel %vm3283, %v4240, %v4241
        %v4291 = vsel %vm3283, %v4239, %v4240
        %v4292 = vsel %vm3283, %v4238, %v4239
        %v4293 = vsel %vm3283, %v4237, %v4238
        %v4294 = vsel %vm3283, %v4236, %v4237
        %v4295 = vsel %vm3283, %v4235, %v4236
        %v4296 = vsel %vm3283, %v4234, %v4235
        %v4297 = vsel %vm3283, %v4265, %v4234
        %v4298 = vmul.f32 %v3318, %v4296
        %v4299 = vmul.f32 %v3322, %v4295
        %v4300 = vmul.f32 %v3326, %v4294
        %v4301 = vmul.f32 %v3330, %v4293
        %v4302 = vmul.f32 %v3334, %v4292
        %v4303 = vmul.f32 %v3338, %v4291
        %v4304 = vmul.f32 %v3342, %v4290
        %v4305 = vmul.f32 %v3346, %v4289
        %v4306 = vmul.f32 %v3350, %v4288
        %v4307 = vmul.f32 %v3354, %v4287
        %v4308 = vmul.f32 %v3358, %v4286
        %v4309 = vmul.f32 %v3362, %v4285
        %v4310 = vmul.f32 %v3366, %v4284
        %v4311 = vmul.f32 %v3370, %v4283
        %v4312 = vmul.f32 %v3374, %v4282
        %v4313 = vmul.f32 %v3378, %v4281
        %v4314 = vmul.f32 %v3382, %v4280
        %v4315 = vmul.f32 %v3386, %v4279
        %v4316 = vmul.f32 %v3390, %v4278
        %v4317 = vmul.f32 %v3394, %v4277
        %v4318 = vmul.f32 %v3398, %v4276
        %v4319 = vmul.f32 %v3402, %v4275
        %v4320 = vmul.f32 %v3406, %v4274
        %v4321 = vmul.f32 %v3410, %v4273
        %v4322 = vmul.f32 %v3414, %v4272
        %v4323 = vmul.f32 %v3418, %v4271
        %v4324 = vmul.f32 %v3422, %v4270
        %v4325 = vmul.f32 %v3426, %v4269
        %v4326 = vmul.f32 %v3430, %v4268
        %v4327 = vmul.f32 %v3434, %v4267
        %v4328 = vmul.f32 %v3438, %v4266
        %v4329 = vmul.f32 %v3442, %v4297
        %v4330 = vadd.f32 %v4202, %v3821
        %v4331 = vadd.f32 %v4203, %v3825
        %v4332 = vadd.f32 %v4204, %v3831
        %v4333 = vadd.f32 %v4205, %v3835
        %v4334 = vadd.f32 %v4206, %v3841
        %v4335 = vadd.f32 %v4207, %v3845
        %v4336 = vadd.f32 %v4208, %v3851
        %v4337 = vadd.f32 %v4209, %v3855
        %v4338 = vadd.f32 %v4210, %v3861
        %v4339 = vadd.f32 %v4211, %v3865
        %v4340 = vadd.f32 %v4212, %v3871
        %v4341 = vadd.f32 %v4213, %v3875
        %v4342 = vadd.f32 %v4214, %v3881
        %v4343 = vadd.f32 %v4215, %v3885
        %v4344 = vadd.f32 %v4216, %v3891
        %v4345 = vadd.f32 %v4217, %v3895
        %v4346 = vadd.f32 %v4218, %v3901
        %v4347 = vadd.f32 %v4219, %v3905
        %v4348 = vadd.f32 %v4220, %v3911
        %v4349 = vadd.f32 %v4221, %v3915
        %v4350 = vadd.f32 %v4222, %v3921
        %v4351 = vadd.f32 %v4223, %v3925
        %v4352 = vadd.f32 %v4224, %v3931
        %v4353 = vadd.f32 %v4225, %v3935
        %v4354 = vadd.f32 %v4226, %v3941
        %v4355 = vadd.f32 %v4227, %v3945
        %v4356 = vadd.f32 %v4228, %v3951
        %v4357 = vadd.f32 %v4229, %v3955
        %v4358 = vadd.f32 %v4230, %v3961
        %v4359 = vadd.f32 %v4231, %v3965
        %v4360 = vadd.f32 %v4232, %v3971
        %v4361 = vadd.f32 %v4233, %v3975
        %v4362 = vadd.f32 %v4330, %v4298
        %v4363 = vadd.f32 %v4331, %v4299
        %v4364 = vadd.f32 %v4332, %v4300
        %v4365 = vadd.f32 %v4333, %v4301
        %v4366 = vadd.f32 %v4334, %v4302
        %v4367 = vadd.f32 %v4335, %v4303
        %v4368 = vadd.f32 %v4336, %v4304
        %v4369 = vadd.f32 %v4337, %v4305
        %v4370 = vadd.f32 %v4338, %v4306
        %v4371 = vadd.f32 %v4339, %v4307
        %v4372 = vadd.f32 %v4340, %v4308
        %v4373 = vadd.f32 %v4341, %v4309
        %v4374 = vadd.f32 %v4342, %v4310
        %v4375 = vadd.f32 %v4343, %v4311
        %v4376 = vadd.f32 %v4344, %v4312
        %v4377 = vadd.f32 %v4345, %v4313
        %v4378 = vadd.f32 %v4346, %v4314
        %v4379 = vadd.f32 %v4347, %v4315
        %v4380 = vadd.f32 %v4348, %v4316
        %v4381 = vadd.f32 %v4349, %v4317
        %v4382 = vadd.f32 %v4350, %v4318
        %v4383 = vadd.f32 %v4351, %v4319
        %v4384 = vadd.f32 %v4352, %v4320
        %v4385 = vadd.f32 %v4353, %v4321
        %v4386 = vadd.f32 %v4354, %v4322
        %v4387 = vadd.f32 %v4355, %v4323
        %v4388 = vadd.f32 %v4356, %v4324
        %v4389 = vadd.f32 %v4357, %v4325
        %v4390 = vadd.f32 %v4358, %v4326
        %v4391 = vadd.f32 %v4359, %v4327
        %v4392 = vadd.f32 %v4360, %v4328
        %v4393 = vadd.f32 %v4361, %v4329
        %v4394 = vlaneseq
        %v4395 = vshrl.u32 %v4394, 7
        %v4396 = vsub.s32 0, %v4395
        %v4397 = vrot.slane %v705, %v4396
        %v4398 = vadd.f32 %v4362, %v4397
        %v4399 = vadd.f32 %v4363, %v4397
        %v4400 = vadd.f32 %v4364, %v4397
        %v4401 = vadd.f32 %v4365, %v4397
        %v4402 = vadd.f32 %v4366, %v4397
        %v4403 = vadd.f32 %v4367, %v4397
        %v4404 = vadd.f32 %v4368, %v4397
        %v4405 = vadd.f32 %v4369, %v4397
        %v4406 = vadd.f32 %v4370, %v4397
        %v4407 = vadd.f32 %v4371, %v4397
        %v4408 = vadd.f32 %v4372, %v4397
        %v4409 = vadd.f32 %v4373, %v4397
        %v4410 = vadd.f32 %v4374, %v4397
        %v4411 = vadd.f32 %v4375, %v4397
        %v4412 = vadd.f32 %v4376, %v4397
        %v4413 = vadd.f32 %v4377, %v4397
        %v4414 = vadd.f32 %v4378, %v4397
        %v4415 = vadd.f32 %v4379, %v4397
        %v4416 = vadd.f32 %v4380, %v4397
        %v4417 = vadd.f32 %v4381, %v4397
        %v4418 = vadd.f32 %v4382, %v4397
        %v4419 = vadd.f32 %v4383, %v4397
        %v4420 = vadd.f32 %v4384, %v4397
        %v4421 = vadd.f32 %v4385, %v4397
        %v4422 = vadd.f32 %v4386, %v4397
        %v4423 = vadd.f32 %v4387, %v4397
        %v4424 = vadd.f32 %v4388, %v4397
        %v4425 = vadd.f32 %v4389, %v4397
        %v4426 = vadd.f32 %v4390, %v4397
        %v4427 = vadd.f32 %v4391, %v4397
        %v4428 = vadd.f32 %v4392, %v4397
        %v4429 = vadd.f32 %v4393, %v4397
        %v4430 = vmax.f32 %v4398, 0.0
        %v4431 = vmax.f32 %v4399, 0.0
        %v4432 = vmax.f32 %v4400, 0.0
        %v4433 = vmax.f32 %v4401, 0.0
        %v4434 = vmax.f32 %v4402, 0.0
        %v4435 = vmax.f32 %v4403, 0.0
        %v4436 = vmax.f32 %v4404, 0.0
        %v4437 = vmax.f32 %v4405, 0.0
        %v4438 = vmax.f32 %v4406, 0.0
        %v4439 = vmax.f32 %v4407, 0.0
        %v4440 = vmax.f32 %v4408, 0.0
        %v4441 = vmax.f32 %v4409, 0.0
        %v4442 = vmax.f32 %v4410, 0.0
        %v4443 = vmax.f32 %v4411, 0.0
        %v4444 = vmax.f32 %v4412, 0.0
        %v4445 = vmax.f32 %v4413, 0.0
        %v4446 = vmax.f32 %v4414, 0.0
        %v4447 = vmax.f32 %v4415, 0.0
        %v4448 = vmax.f32 %v4416, 0.0
        %v4449 = vmax.f32 %v4417, 0.0
        %v4450 = vmax.f32 %v4418, 0.0
        %v4451 = vmax.f32 %v4419, 0.0
        %v4452 = vmax.f32 %v4420, 0.0
        %v4453 = vmax.f32 %v4421, 0.0
        %v4454 = vmax.f32 %v4422, 0.0
        %v4455 = vmax.f32 %v4423, 0.0
        %v4456 = vmax.f32 %v4424, 0.0
        %v4457 = vmax.f32 %v4425, 0.0
        %v4458 = vmax.f32 %v4426, 0.0
        %v4459 = vmax.f32 %v4427, 0.0
        %v4460 = vmax.f32 %v4428, 0.0
        %v4461 = vmax.f32 %v4429, 0.0
        %v4462 = vpack.c.bf16 %v4431, %v4430
        %v4463 = vpack.c.bf16 %v4433, %v4432
        %v4464 = vpack.c.bf16 %v4435, %v4434
        %v4465 = vpack.c.bf16 %v4437, %v4436
        %v4466 = vpack.c.bf16 %v4439, %v4438
        %v4467 = vpack.c.bf16 %v4441, %v4440
        %v4468 = vpack.c.bf16 %v4443, %v4442
        %v4469 = vpack.c.bf16 %v4445, %v4444
        %v4470 = vpack.c.bf16 %v4447, %v4446
        %v4471 = vpack.c.bf16 %v4449, %v4448
        %v4472 = vpack.c.bf16 %v4451, %v4450
        %v4473 = vpack.c.bf16 %v4453, %v4452
        %v4474 = vpack.c.bf16 %v4455, %v4454
        %v4475 = vpack.c.bf16 %v4457, %v4456
        %v4476 = vpack.c.bf16 %v4459, %v4458
        %v4477 = vpack.c.bf16 %v4461, %v4460
        %v4478 = vld [vmem:[%s10] sm:$0xf]
        %4479 = vmatprep.subr.bf16.mxu0 0
        %4480 = vmatpush1.bf16.xpose.msra.mxu0 %v3615
        %4481 = vmatprep.subr.bf16.mxu0 0
        %4482 = vmatpush1.bf16.xpose.msra.mxu0 %v3614
        %4483 = vmatprep.subr.bf16.mxu0 0
        %4484 = vmatpush1.bf16.xpose.msra.mxu0 %v3613
        %4485 = vmatprep.subr.bf16.mxu0 0
        %4486 = vmatpush1.bf16.xpose.msra.mxu0 %v3612
        %4487 = vmatprep.subr.bf16.mxu0 0
        %4488 = vmatpush1.bf16.xpose.msra.mxu0 %v3611
        %4489 = vmatprep.subr.bf16.mxu0 0
        %4490 = vmatpush1.bf16.xpose.msra.mxu0 %v3610
        %4491 = vmatprep.subr.bf16.mxu0 0
        %4492 = vmatpush1.bf16.xpose.msra.mxu0 %v3609
        %4493 = vmatprep.subr.bf16.mxu0 0
        %4494 = vmatpush1.bf16.xpose.msra.mxu0 %v3608
        %4495 = vmatprep.subr.bf16.mxu0 0
        %4496 = vmatpush2.bf16.xpose.msra.mxu0 %v3623
        %4497 = vmatprep.subr.bf16.mxu0 0
        %4498 = vmatpush2.bf16.xpose.msra.mxu0 %v3622
        %4499 = vmatprep.subr.bf16.mxu0 0
        %4500 = vmatpush2.bf16.xpose.msra.mxu0 %v3621
        %4501 = vmatprep.subr.bf16.mxu0 0
        %4502 = vmatpush2.bf16.xpose.msra.mxu0 %v3620
        %4503 = vmatprep.subr.bf16.mxu0 0
        %4504 = vmatpush2.bf16.xpose.msra.mxu0 %v3619
        %4505 = vmatprep.subr.bf16.mxu0 0
        %4506 = vmatpush2.bf16.xpose.msra.mxu0 %v3618
        %4507 = vmatprep.subr.bf16.mxu0 0
        %4508 = vmatpush2.bf16.xpose.msra.mxu0 %v3617
        %4509 = vmatprep.subr.bf16.mxu0 0
        %4510 = vmatpush2.bf16.xpose.msra.mxu0 %v3616
        %4511 = vmatprep.mubr.bf16.mxu0 0
        %4512 = vmatmul.mubr.bf16.gmra.mxu0 %v4478
        %v4513 = vpop.f32.mrf.mxu0
        %v4514 = vadd.f32 0.0, %v4513
        %v4515 = vpop.f32.mrf.mxu0
        %v4516 = vadd.f32 0.0, %v4515
        %v4517 = vpop.f32.mrf.mxu0
        %v4518 = vpop.f32.mrf.mxu0
        %4519 = vdwg.mxu0
        %4520 = vmatprep.subr.bf16.mxu0 0
        %4521 = vmatpush1.bf16.xpose.msra.mxu0 %v4469
        %4522 = vmatprep.subr.bf16.mxu0 0
        %4523 = vmatpush1.bf16.xpose.msra.mxu0 %v4468
        %4524 = vmatprep.subr.bf16.mxu0 0
        %4525 = vmatpush1.bf16.xpose.msra.mxu0 %v4467
        %4526 = vmatprep.subr.bf16.mxu0 0
        %4527 = vmatpush1.bf16.xpose.msra.mxu0 %v4466
        %4528 = vmatprep.subr.bf16.mxu0 0
        %4529 = vmatpush1.bf16.xpose.msra.mxu0 %v4465
        %4530 = vmatprep.subr.bf16.mxu0 0
        %4531 = vmatpush1.bf16.xpose.msra.mxu0 %v4464
        %4532 = vmatprep.subr.bf16.mxu0 0
        %4533 = vmatpush1.bf16.xpose.msra.mxu0 %v4463
        %4534 = vmatprep.subr.bf16.mxu0 0
        %4535 = vmatpush1.bf16.xpose.msra.mxu0 %v4462
        %4536 = vmatprep.subr.bf16.mxu0 0
        %4537 = vmatpush2.bf16.xpose.msra.mxu0 %v4477
        %4538 = vmatprep.subr.bf16.mxu0 0
        %4539 = vmatpush2.bf16.xpose.msra.mxu0 %v4476
        %4540 = vmatprep.subr.bf16.mxu0 0
        %4541 = vmatpush2.bf16.xpose.msra.mxu0 %v4475
        %4542 = vmatprep.subr.bf16.mxu0 0
        %4543 = vmatpush2.bf16.xpose.msra.mxu0 %v4474
        %4544 = vmatprep.subr.bf16.mxu0 0
        %4545 = vmatpush2.bf16.xpose.msra.mxu0 %v4473
        %4546 = vmatprep.subr.bf16.mxu0 0
        %4547 = vmatpush2.bf16.xpose.msra.mxu0 %v4472
        %4548 = vmatprep.subr.bf16.mxu0 0
        %4549 = vmatpush2.bf16.xpose.msra.mxu0 %v4471
        %4550 = vmatprep.subr.bf16.mxu0 0
        %4551 = vmatpush2.bf16.xpose.msra.mxu0 %v4470
        %4552 = vmatprep.mubr.bf16.mxu0 0
        %4553 = vmatmul.mubr.bf16.gmra.mxu0 %v4478
        %v4554 = vpop.f32.mrf.mxu0
        %v4555 = vadd.f32 0.0, %v4554
        %v4556 = vpop.f32.mrf.mxu0
        %v4557 = vadd.f32 0.0, %v4556
        %v4558 = vpop.f32.mrf.mxu0
        %v4559 = vpop.f32.mrf.mxu0
        %4560 = vdwg.mxu0
        %s4561 = sld [smem:[#allocation12]]
        %v4562 = vstv %s4561
        %v4563 = vadd.f32 %v4514, %v4562
        %v4564 = vadd.f32 %v4516, %v4562
        %v4566 = vlaneseq
        %v4567 = vshrl.u32 %v4566, 7
        %v4568 = vsub.s32 0, %v4567
        %v4569 = vrot.slane %v701, %v4568
        %v4570 = vlaneseq
        %v4571 = vshrl.u32 %v4570, 7
        %v4572 = vsub.s32 1, %v4571
        %v4573 = vrot.slane %v701, %v4572
        %v4576 = vadd.f32 %v4563, %v4569
        %v4577 = vadd.f32 %v4564, %v4573
        %v4580 = vcombine.low %v4576, %v4577
        %v4582 = vunpack.c.l.s4 1966171168
        %v4583 = vunpack.c.0.s8 %v4582
        %v4584 = vlaneseq
        %v4585 = vshrl.u32 %v4584, 7
        %v4586 = vsub.s32 %v4583, %v4585
        %v4587 = vrot.slane %v4580, %v4586
        %v4589 = vunpack.c.l.s4 1966171168
        %v4590 = vunpack.c.0.s8 %v4589
        %v4591 = vlaneseq
        %v4592 = vshrl.u32 %v4591, 7
        %v4593 = vsub.s32 %v4590, %v4592
        %v4594 = vrot.slane %v4587, %v4593
        %v4596 = vlaneseq
        %vm4597 = vcmp.ge.s32.totalorder %v4596, 0
        %vm4598 = vcmp.lt.s32.totalorder %v4596, 256
        %vm4599 = vmand %vm4597, %vm4598
        %4600 = vst.msk [vmem:[%s550] ss:$2 sm:$0x3] %vm4599, %v4594
        %s4601 = sld [smem:[#allocation12 + $0x1]]
        %v4602 = vstv %s4601
        %v4603 = vadd.f32 %v4555, %v4602
        %v4604 = vadd.f32 %v4557, %v4602
        %v4605 = vadd.f32 %v4603, %v4569
        %v4606 = vadd.f32 %v4604, %v4573
        %v4609 = vcombine.low %v4605, %v4606
        %v4611 = vunpack.c.l.s4 1966171168
        %v4612 = vunpack.c.0.s8 %v4611
        %v4613 = vlaneseq
        %v4614 = vshrl.u32 %v4613, 7
        %v4615 = vsub.s32 %v4612, %v4614
        %v4616 = vrot.slane %v4609, %v4615
        %v4617 = vcombine.high %v4616, %v4616
        %v4619 = vunpack.c.l.s4 1966171168
        %v4620 = vunpack.c.0.s8 %v4619
        %v4621 = vlaneseq
        %v4622 = vshrl.u32 %v4621, 7
        %v4623 = vsub.s32 %v4620, %v4622
        %v4624 = vrot.slane %v4617, %v4623
        %s4626 = scalar_lea.vmem %s550, 1 [#allocation13]
        %4627 = vst.msk [vmem:[%s4626] ss:$2 sm:$0x3] %vm4599, %v4624
        %s4628 = sand.u32 %s312, 1
        %s4629 = scalar_lea.sflag [#allocation4], %s4628
        %s4630 = sand.u32 %s312, 1
        %s4631 = smul.addr %s4630, 4
        %s4632 = scalar_lea.vmem [#allocation13], %s4631
        // Predicated region
        $region93: #{tpu_custom_call.1} parent=67 // pred_check
          %p4633 = pneg %p322
        $region94: #{tpu_custom_call.1} parent=67 // pred_check_branch
          %4635 = sbr.rel (%p4633) target = $region96
        $region95: #{tpu_custom_call.1} parent=67 // pred_region
          %s4636 = smul.u32 2, %s32
          %s4638 = ssub.s32 64, 64
          %4639 = vsyncadd %s4629, %s4638
          %s4640 = smul.addr %s4636, 32
          %s4641 = scalar_lea.hbm %s12, %s4640
          %s4643 = sshll.u32 %s4632, 4
          %s4644 = int_to_ptr.vmem [resolvable:$true] %s4643
          %4646 = dma.vmem_to_hbm [thread:$0]  %s4644, 64, %s4641, %s4629
        $region96: #{tpu_custom_call.1} parent=67 // pred_fallthru
          _
      $region68: #{tpu_custom_call.1} parent=5 // pred_fallthru
        _
      %p4647 = scmp.le.s32.totalorder 2, %s27
      // Predicated region
      $region97: #{tpu_custom_call.1} parent=5 // pred_check
        %p4648 = pneg %p4647
      $region98: #{tpu_custom_call.1} parent=5 // pred_check_branch
        %4650 = sbr.rel (%p4648) target = $region100
      $region99: #{tpu_custom_call.1} parent=5 // pred_region
        %s4651 = ssub.s32 %s27, 2
        // Predicated region
        $region101: #{tpu_custom_call.1} parent=99 // pred_check
          %p4652 = pneg %p328
        $region102: #{tpu_custom_call.1} parent=99 // pred_check_branch
          %4654 = sbr.rel (%p4652) target = $region104
        $region103: #{tpu_custom_call.1} parent=99 // pred_region
          %s4655 = sand.u32 %s313, 1
          %s4656 = scalar_lea.sflag [#allocation4], %s4655
          %s4657 = sand.u32 %s313, 1
          %s4658 = smul.addr %s4657, 4
          %s4659 = scalar_lea.vmem [#allocation13], %s4658
          %4660 = dma.done %s4656, 64
        $region104: #{tpu_custom_call.1} parent=99 // pred_fallthru
          _
      $region100: #{tpu_custom_call.1} parent=5 // pred_fallthru
        _
    $region6: #{tpu_custom_call.1} parent=1 // loop_footer
      %s31 = sadd.s32 1, %s27
    $region7: #{tpu_custom_call.1} parent=1 // loop_footer_branch
      %26 = sbr.rel target = $region3
    $region8: #{tpu_custom_call.1} parent=1 // loop_exit
      _
    %4661 = vsyncpa [#allocation3], 1
    %s4662 = scalar_lea.sflag [#allocation3], 1
    %4663 = vsyncpa %s4662, 1
    %4664 = vsyncpa [#allocation7], 1
    %4665 = vsyncpa [#allocation10], 1
    %4666 = vsyncpa [#allocation4], 1
    %s4667 = scalar_lea.sflag [#allocation4], 1
    %4668 = vsyncpa %s4667, 1
    %4669 = vsyncpa [#allocation5], 1
    %s4670 = scalar_lea.sflag [#allocation5], 1
    %4671 = vsyncpa %s4670, 1

</llo_original>
